<compile_context>
chip_gen: v5e
topology: v5e:2x2
jax: 0.10.0
libtpu: 0.0.40
codegen_flags: <defaults>
</compile_context>

<pallas_src>
import math
import functools

import jax
import jax.numpy as jnp
from jax.experimental import pallas as pl
from jax.experimental.pallas import tpu as pltpu


def _pick_q_tile(seq_len, need_fn, budget_bytes, max_tile=512):
    """Largest query tile (multiple of 8 dividing seq_len, or seq_len itself)
    whose per-grid-step VMEM footprint fits the budget."""
    cands = [t for t in range(8, min(seq_len, max_tile) + 1, 8) if seq_len % t == 0]
    if seq_len <= max_tile and seq_len not in cands:
        cands.append(seq_len)          # full-extent block is always legal
    if not cands:
        cands = [seq_len]              # no 8-aligned divisor: best effort
    cands.sort(reverse=True)
    for t in cands:
        if need_fn(t) <= budget_bytes:
            return t
    return cands[-1]


# ---------------------------------------------------------------------------
# Fused MHA kernel: one grid step = (one batch, one query tile)
# ---------------------------------------------------------------------------
def _mha_kernel(q_ref, k_ref, v_ref,
                wq_ref, bq_ref, wk_ref, bk_ref, wv_ref, bv_ref,
                wo_ref, bo_ref,
                o_ref, p_ref,
                kp_ref, vp_ref, acc_ref,
                *, head_num, head_dim, scale, matmul_dtype):
    mm = q_ref.dtype if matmul_dtype is None else matmul_dtype
    cast = lambda x: x.astype(mm)

    # ---- K / V projections: once per batch, kept resident in VMEM scratch ----
    @pl.when(pl.program_id(1) == 0)
    def _():
        kp = jnp.dot(cast(k_ref[0]), cast(wk_ref[...]),
                     preferred_element_type=jnp.float32) + bk_ref[...]
        vp = jnp.dot(cast(v_ref[0]), cast(wv_ref[...]),
                     preferred_element_type=jnp.float32) + bv_ref[...]
        kp_ref[...] = kp.astype(kp_ref.dtype)
        vp_ref[...] = vp.astype(vp_ref.dtype)

    # ---- Q projection for this query tile; fold 1/sqrt(d_head) into q ----
    qp = jnp.dot(cast(q_ref[0]), cast(wq_ref[...]),
                 preferred_element_type=jnp.float32) + bq_ref[...]
    qp = cast(qp * scale)                       # (tq, D) in matmul dtype

    kp = kp_ref[...]                            # (S, D) in matmul dtype
    vp = vp_ref[...]                            # (S, D) in matmul dtype

    for h in range(head_num):                   # static unrolled loop over heads
        sl = slice(h * head_dim, (h + 1) * head_dim)

        # q @ k^T without an explicit transpose: contract the last dims.
        scores = jax.lax.dot_general(
            qp[:, sl], kp[:, sl], (((1,), (1,)), ((), ())),
            preferred_element_type=jnp.float32)              # (tq, S)

        # Numerically-stable softmax, exact division (probs are a user-facing output).
        m = jnp.max(scores, axis=-1, keepdims=True)
        e = jnp.exp(scores - m)
        s = jnp.sum(e, axis=-1, keepdims=True)
        p = e / s

        # dropout is identity in eval mode
        p_ref[0, h] = p.astype(p_ref.dtype)

        # Write this head's context straight into its column slice (no concat).
        acc_ref[:, sl] = jnp.dot(cast(p), vp[:, sl],
                                 preferred_element_type=jnp.float32)

    # ---- fused output projection ----
    o = jnp.dot(cast(acc_ref[...]), cast(wo_ref[...]),
                preferred_element_type=jnp.float32) + bo_ref[...]
    o_ref[0] = o.astype(o_ref.dtype)


# ---------------------------------------------------------------------------
# MultiHeadAttention forward (single pallas_call)
# ---------------------------------------------------------------------------
def multi_head_attention(q, k, v, params, head_num, head_dim, *,
                         matmul_dtype=jnp.bfloat16, attn_dtype=jnp.float32,
                         vmem_budget_bytes=48 * 1024 * 1024):
    """q, k, v: (B, S, d_model). params: list of 4 (w, b), w stored (in, out)."""
    B, S, d_model = q.shape
    assert d_model == head_num * head_dim

    mm_dtype = q.dtype if matmul_dtype is None else matmul_dtype
    in_bytes = jnp.dtype(q.dtype).itemsize
    mm_bytes = jnp.dtype(mm_dtype).itemsize
    p_bytes = jnp.dtype(attn_dtype).itemsize

    (wq, bq), (wk, bk), (wv, bv), (wo, bo) = params
    # Pre-cast weights once (not per grid step); biases stay f32 (added to f32 acc).
    wq, wk, wv, wo = (w.astype(mm_dtype) for w in (wq, wk, wv, wo))
    bq2, bk2, bv2, bo2 = (b.astype(jnp.float32).reshape(1, d_model)
                          for b in (bq, bk, bv, bo))

    # -------- VMEM-aware query-tile selection --------
    def vmem_need(tq):
        fixed = (2 * S * d_model * in_bytes              # K, V input blocks (single buf)
                 + 2 * S * d_model * mm_bytes            # kp / vp scratch
                 + 4 * d_model * d_model * mm_bytes      # weights (single buf)
                 + 4 * d_model * 4)                      # biases
        per_tile = (2 * tq * d_model * in_bytes          # Q block (double buffered)
                    + 2 * tq * d_model * in_bytes        # O block (double buffered)
                    + 2 * head_num * tq * S * p_bytes    # P block (double buffered)
                    + tq * d_model * 4                   # concat-free accumulator
                    + 4 * tq * S * 4)                    # softmax temporaries
        return fixed + per_tile

    tq = _pick_q_tile(S, vmem_need, vmem_budget_bytes)
    n_q = S // tq if S % tq == 0 else -(-S // tq)
    need = vmem_need(tq)
    vmem_limit = int(min(max(need * 1.4 + (4 << 20), 32 << 20), 64 << 20))

    scale = 1.0 / math.sqrt(head_dim)
    kernel = functools.partial(_mha_kernel, head_num=head_num, head_dim=head_dim,
                               scale=scale, matmul_dtype=matmul_dtype)

    # Advisory cost estimate (no redundant K/V re-projection anymore).
    flops = B * (8 * S * d_model * d_model + 4 * S * S * d_model)
    transcendentals = B * head_num * S * S
    bytes_accessed = (4 * B * S * d_model * in_bytes + 4 * d_model * d_model * mm_bytes
                      + 4 * d_model * 4 + B * head_num * S * S * p_bytes)

    def run(single_buffer_constants):
        def const_spec(shape, index_map):
            # Block index is constant across qi -> single-buffer to save VMEM.
            if single_buffer_constants:
                return pl.BlockSpec(shape, index_map,
                                    pipeline_mode=pl.Buffered(buffer_count=1))
            return pl.BlockSpec(shape, index_map)

        q_spec = pl.BlockSpec((1, tq, d_model), lambda b, i: (b, i, 0))
        kv_spec = const_spec((1, S, d_model), lambda b, i: (b, 0, 0))
        w_spec = const_spec((d_model, d_model), lambda b, i: (0, 0))
        b_spec = const_spec((1, d_model), lambda b, i: (0, 0))

        return pl.pallas_call(
            kernel,
            out_shape=(
                jax.ShapeDtypeStruct((B, S, d_model), q.dtype),
                jax.ShapeDtypeStruct((B, head_num, S, S), attn_dtype),
            ),
            grid=(B, n_q),
            in_specs=[q_spec, kv_spec, kv_spec,
                      w_spec, b_spec, w_spec, b_spec, w_spec, b_spec,
                      w_spec, b_spec],
            out_specs=(
                pl.BlockSpec((1, tq, d_model), lambda b, i: (b, i, 0)),
                pl.BlockSpec((1, head_num, tq, S), lambda b, i: (b, 0, i, 0)),
            ),
            scratch_shapes=[
                pltpu.VMEM((S, d_model), mm_dtype),      # projected K (per batch)
                pltpu.VMEM((S, d_model), mm_dtype),      # projected V (per batch)
                pltpu.VMEM((tq, d_model), jnp.float32),  # per-tile head accumulator
            ],
            compiler_params=pltpu.CompilerParams(
                # qi must be sequential (kp/vp scratch persists across query tiles).
                dimension_semantics=("parallel", "arbitrary"),
                vmem_limit_bytes=vmem_limit),
            cost_estimate=pl.CostEstimate(flops=flops,
                                          transcendentals=transcendentals,
                                          bytes_accessed=bytes_accessed),
        )(q, k, v, wq, bq2, wk, bk2, wv, bv2, wo, bo2)

    try:
        return run(True)
    except Exception:  # fallback if pipeline_mode=pl.Buffered(1) is unsupported
        return run(False)


# ---------------------------------------------------------------------------
# Pure-JAX reference (correctness check)
# ---------------------------------------------------------------------------
def reference_mha(q, k, v, params, head_num, head_dim):
    B, S, d_model = q.shape

    def project(x, w, b):
        y = x @ w + b
        return jnp.transpose(y.reshape(B, S, head_num, head_dim), (0, 2, 1, 3))

    qh, kh, vh = (project(x, *p) for x, p in zip((q, k, v), params[:3]))
    scores = jnp.einsum("bhqd,bhkd->bhqk", qh, kh) / math.sqrt(head_dim)
    p = jax.nn.softmax(scores, axis=-1)
    x = jnp.einsum("bhqk,bhkd->bhqd", p, vh)
    x = jnp.transpose(x, (0, 2, 1, 3)).reshape(B, S, d_model)
    return x @ params[3][0] + params[3][1], p


if __name__ == "__main__":
    B, S = 2, 8
    head_num, head_dim = 4, 8
    d_model = head_num * head_dim  # 32

    key = jax.random.PRNGKey(0)
    keys = jax.random.split(key, 12)

    q = jax.random.normal(keys[0], (B, S, d_model), dtype=jnp.float32)
    k = jax.random.normal(keys[1], (B, S, d_model), dtype=jnp.float32)
    v = jax.random.normal(keys[2], (B, S, d_model), dtype=jnp.float32)

    # 4 Linear(d_model, d_model) layers, nn.Linear-style uniform init.
    bound = 1.0 / math.sqrt(d_model)
    params = []
    for i in range(4):
        w = jax.random.uniform(keys[3 + 2 * i], (d_model, d_model),
                               minval=-bound, maxval=bound, dtype=jnp.float32)
        b = jax.random.uniform(keys[4 + 2 * i], (d_model,),
                               minval=-bound, maxval=bound, dtype=jnp.float32)
        params.append((w, b))

    ref_out, ref_attn = reference_mha(q, k, v, params, head_num, head_dim)

    # 1) Exact-dtype path (matmul_dtype=None): validates kernel structure tightly.
    out32, attn32 = multi_head_attention(q, k, v, params, head_num, head_dim,
                                         matmul_dtype=None)
    jax.block_until_ready((out32, attn32))
    assert out32.shape == (B, S, d_model) and attn32.shape == (B, head_num, S, S)
    assert jnp.allclose(out32, ref_out, atol=1e-4, rtol=1e-4)
    assert jnp.allclose(attn32, ref_attn, atol=1e-4, rtol=1e-4)

    # 2) Default bf16-matmul path (f32 accumulation): expect ~1e-2 level deltas.
    out, attn = multi_head_attention(q, k, v, params, head_num, head_dim)
    jax.block_until_ready((out, attn))
    assert out.shape == (B, S, d_model) and attn.shape == (B, head_num, S, S)
    assert jnp.allclose(out, ref_out, atol=3e-2, rtol=3e-2)
    assert jnp.allclose(attn, ref_attn, atol=3e-2, rtol=3e-2)

    print("KERNEL_OK")
</pallas_src>

<mosaic_0001>
module attributes {stable_mosaic.version = 11 : i64} {
  func.func @_mha_kernel(%arg0: i32, %arg1: i32, %arg2: memref<1x8x32xf32, #tpu.memory_space<vmem>>, %arg3: memref<1x8x32xf32, #tpu.memory_space<vmem>>, %arg4: memref<1x8x32xf32, #tpu.memory_space<vmem>>, %arg5: memref<32x32xf32, #tpu.memory_space<vmem>>, %arg6: memref<1x32xf32, #tpu.memory_space<vmem>>, %arg7: memref<32x32xf32, #tpu.memory_space<vmem>>, %arg8: memref<1x32xf32, #tpu.memory_space<vmem>>, %arg9: memref<32x32xf32, #tpu.memory_space<vmem>>, %arg10: memref<1x32xf32, #tpu.memory_space<vmem>>, %arg11: memref<32x32xf32, #tpu.memory_space<vmem>>, %arg12: memref<1x32xf32, #tpu.memory_space<vmem>>, %arg13: memref<1x8x32xf32, #tpu.memory_space<vmem>>, %arg14: memref<1x4x8x8xf32, #tpu.memory_space<vmem>>, %arg15: memref<8x32xf32, #tpu.memory_space<vmem>>, %arg16: memref<8x32xf32, #tpu.memory_space<vmem>>, %arg17: memref<8x32xf32, #tpu.memory_space<vmem>>) attributes {dimension_semantics = [#tpu.dimension_semantics<parallel>, #tpu.dimension_semantics<arbitrary>], iteration_bounds = array<i64: 2, 1>, scalar_prefetch = 0 : i64, scratch_operands = 3 : i64, tpu.core_type = #tpu.core_type<tc>, window_params = [{transform_indices = @transform_0, window_bounds = array<i64: 1, 8, 32>}, {pipeline_mode = #tpu.pipeline_mode<synchronous>, transform_indices = @transform_1, window_bounds = array<i64: 1, 8, 32>}, {pipeline_mode = #tpu.pipeline_mode<synchronous>, transform_indices = @transform_2, window_bounds = array<i64: 1, 8, 32>}, {pipeline_mode = #tpu.pipeline_mode<synchronous>, transform_indices = @transform_3, window_bounds = array<i64: 32, 32>}, {pipeline_mode = #tpu.pipeline_mode<synchronous>, transform_indices = @transform_4, window_bounds = array<i64: 1, 32>}, {pipeline_mode = #tpu.pipeline_mode<synchronous>, transform_indices = @transform_5, window_bounds = array<i64: 32, 32>}, {pipeline_mode = #tpu.pipeline_mode<synchronous>, transform_indices = @transform_6, window_bounds = array<i64: 1, 32>}, {pipeline_mode = #tpu.pipeline_mode<synchronous>, transform_indices = @transform_7, window_bounds = array<i64: 32, 32>}, {pipeline_mode = #tpu.pipeline_mode<synchronous>, transform_indices = @transform_8, window_bounds = array<i64: 1, 32>}, {pipeline_mode = #tpu.pipeline_mode<synchronous>, transform_indices = @transform_9, window_bounds = array<i64: 32, 32>}, {pipeline_mode = #tpu.pipeline_mode<synchronous>, transform_indices = @transform_10, window_bounds = array<i64: 1, 32>}, {transform_indices = @transform_11, window_bounds = array<i64: 1, 8, 32>}, {transform_indices = @transform_12, window_bounds = array<i64: 1, 4, 8, 8>}]} {
    %c0_i32 = arith.constant 0 : i32
    %0 = arith.cmpi eq, %arg1, %c0_i32 : i32
    %1 = arith.extui %0 : i1 to i32
    %c0_i32_0 = arith.constant 0 : i32
    %2 = arith.cmpi ne, %1, %c0_i32_0 : i32
    scf.if %2 {
      %c0_56 = arith.constant 0 : index
      %c0_57 = arith.constant 0 : index
      %c0_58 = arith.constant 0 : index
      %95 = vector.load %arg3[%c0_56, %c0_57, %c0_58] : memref<1x8x32xf32, #tpu.memory_space<vmem>>, vector<1x8x32xf32>
      %96 = vector.shape_cast %95 : vector<1x8x32xf32> to vector<8x32xf32>
      %c0_59 = arith.constant 0 : index
      %c0_60 = arith.constant 0 : index
      %97 = vector.load %arg7[%c0_59, %c0_60] : memref<32x32xf32, #tpu.memory_space<vmem>>, vector<32x32xf32>
      %cst_61 = arith.constant dense<0.000000e+00> : vector<8x32xf32>
      %98 = tpu.matmul %96, %97, %cst_61 {dimension_numbers = #tpu.dot_dimension_numbers<[1], [0], [0], [1], [0, 0, 1, 1], [], []>} : vector<8x32xf32>, vector<32x32xf32>, vector<8x32xf32> -> vector<8x32xf32>
      %c0_62 = arith.constant 0 : index
      %c0_63 = arith.constant 0 : index
      %99 = vector.load %arg8[%c0_62, %c0_63] : memref<1x32xf32, #tpu.memory_space<vmem>>, vector<1x32xf32>
      %100 = vector.broadcast %99 : vector<1x32xf32> to vector<8x32xf32>
      %101 = arith.addf %98, %100 : vector<8x32xf32>
      %c0_64 = arith.constant 0 : index
      %c0_65 = arith.constant 0 : index
      %c0_66 = arith.constant 0 : index
      %102 = vector.load %arg4[%c0_64, %c0_65, %c0_66] : memref<1x8x32xf32, #tpu.memory_space<vmem>>, vector<1x8x32xf32>
      %103 = vector.shape_cast %102 : vector<1x8x32xf32> to vector<8x32xf32>
      %c0_67 = arith.constant 0 : index
      %c0_68 = arith.constant 0 : index
      %104 = vector.load %arg9[%c0_67, %c0_68] : memref<32x32xf32, #tpu.memory_space<vmem>>, vector<32x32xf32>
      %cst_69 = arith.constant dense<0.000000e+00> : vector<8x32xf32>
      %105 = tpu.matmul %103, %104, %cst_69 {dimension_numbers = #tpu.dot_dimension_numbers<[1], [0], [0], [1], [0, 0, 1, 1], [], []>} : vector<8x32xf32>, vector<32x32xf32>, vector<8x32xf32> -> vector<8x32xf32>
      %c0_70 = arith.constant 0 : index
      %c0_71 = arith.constant 0 : index
      %106 = vector.load %arg10[%c0_70, %c0_71] : memref<1x32xf32, #tpu.memory_space<vmem>>, vector<1x32xf32>
      %107 = vector.broadcast %106 : vector<1x32xf32> to vector<8x32xf32>
      %108 = arith.addf %105, %107 : vector<8x32xf32>
      %c0_72 = arith.constant 0 : index
      %c0_73 = arith.constant 0 : index
      %109 = vector.load %arg15[%c0_72, %c0_73] : memref<8x32xf32, #tpu.memory_space<vmem>>, vector<8x32xf32>
      tpu.vector_store %arg15[%c0_72, %c0_73], %101 {strides = array<i32>} : memref<8x32xf32, #tpu.memory_space<vmem>>, vector<8x32xf32>,
      %c0_74 = arith.constant 0 : index
      %c0_75 = arith.constant 0 : index
      %110 = vector.load %arg16[%c0_74, %c0_75] : memref<8x32xf32, #tpu.memory_space<vmem>>, vector<8x32xf32>
      tpu.vector_store %arg16[%c0_74, %c0_75], %108 {strides = array<i32>} : memref<8x32xf32, #tpu.memory_space<vmem>>, vector<8x32xf32>,
    } else {
    }
    %c0 = arith.constant 0 : index
    %c0_1 = arith.constant 0 : index
    %c0_2 = arith.constant 0 : index
    %3 = vector.load %arg2[%c0, %c0_1, %c0_2] : memref<1x8x32xf32, #tpu.memory_space<vmem>>, vector<1x8x32xf32>
    %4 = vector.shape_cast %3 : vector<1x8x32xf32> to vector<8x32xf32>
    %c0_3 = arith.constant 0 : index
    %c0_4 = arith.constant 0 : index
    %5 = vector.load %arg5[%c0_3, %c0_4] : memref<32x32xf32, #tpu.memory_space<vmem>>, vector<32x32xf32>
    %cst = arith.constant dense<0.000000e+00> : vector<8x32xf32>
    %6 = tpu.matmul %4, %5, %cst {dimension_numbers = #tpu.dot_dimension_numbers<[1], [0], [0], [1], [0, 0, 1, 1], [], []>} : vector<8x32xf32>, vector<32x32xf32>, vector<8x32xf32> -> vector<8x32xf32>
    %c0_5 = arith.constant 0 : index
    %c0_6 = arith.constant 0 : index
    %7 = vector.load %arg6[%c0_5, %c0_6] : memref<1x32xf32, #tpu.memory_space<vmem>>, vector<1x32xf32>
    %8 = vector.broadcast %7 : vector<1x32xf32> to vector<8x32xf32>
    %9 = arith.addf %6, %8 : vector<8x32xf32>
    %cst_7 = arith.constant 0.353553385 : f32
    %10 = vector.broadcast %cst_7 : f32 to vector<8x32xf32>
    %11 = arith.mulf %9, %10 : vector<8x32xf32>
    %c0_8 = arith.constant 0 : index
    %c0_9 = arith.constant 0 : index
    %12 = vector.load %arg15[%c0_8, %c0_9] : memref<8x32xf32, #tpu.memory_space<vmem>>, vector<8x32xf32>
    %c0_10 = arith.constant 0 : index
    %c0_11 = arith.constant 0 : index
    %13 = vector.load %arg16[%c0_10, %c0_11] : memref<8x32xf32, #tpu.memory_space<vmem>>, vector<8x32xf32>
    %14 = vector.extract_strided_slice %11 {offsets = [0, 0], sizes = [8, 8], strides = [1, 1]} : vector<8x32xf32> to vector<8x8xf32>
    %15 = vector.extract_strided_slice %12 {offsets = [0, 0], sizes = [8, 8], strides = [1, 1]} : vector<8x32xf32> to vector<8x8xf32>
    %cst_12 = arith.constant dense<0.000000e+00> : vector<8x8xf32>
    %16 = tpu.matmul %14, %15, %cst_12 {dimension_numbers = #tpu.dot_dimension_numbers<[1], [1], [0], [0], [0, 0, 1, 0], [], []>} : vector<8x8xf32>, vector<8x8xf32>, vector<8x8xf32> -> vector<8x8xf32>
    %cst_13 = arith.constant dense<0xFF800000> : vector<8xf32>
    %17 = vector.multi_reduction <maximumf>, %16, %cst_13 [1] : vector<8x8xf32> to vector<8xf32>
    %18 = vector.shape_cast %17 : vector<8xf32> to vector<8x1xf32>
    %19 = vector.broadcast %18 : vector<8x1xf32> to vector<8x8xf32>
    %20 = arith.subf %16, %19 : vector<8x8xf32>
    %21 = math.exp %20 : vector<8x8xf32>
    %cst_14 = arith.constant dense<0.000000e+00> : vector<8xf32>
    %22 = vector.multi_reduction <add>, %21, %cst_14 [1] : vector<8x8xf32> to vector<8xf32>
    %23 = vector.shape_cast %22 : vector<8xf32> to vector<8x1xf32>
    %24 = vector.broadcast %23 : vector<8x1xf32> to vector<8x8xf32>
    %25 = arith.divf %21, %24 : vector<8x8xf32>
    %c0_15 = arith.constant 0 : index
    %c0_16 = arith.constant 0 : index
    %c0_17 = arith.constant 0 : index
    %c0_18 = arith.constant 0 : index
    %26 = vector.load %arg14[%c0_15, %c0_16, %c0_17, %c0_18] : memref<1x4x8x8xf32, #tpu.memory_space<vmem>>, vector<1x1x8x8xf32>
    %27 = vector.shape_cast %26 : vector<1x1x8x8xf32> to vector<8x8xf32>
    %28 = vector.shape_cast %25 : vector<8x8xf32> to vector<1x1x8x8xf32>
    tpu.vector_store %arg14[%c0_15, %c0_16, %c0_17, %c0_18], %28 {strides = array<i32>} : memref<1x4x8x8xf32, #tpu.memory_space<vmem>>, vector<1x1x8x8xf32>,
    %29 = vector.extract_strided_slice %13 {offsets = [0, 0], sizes = [8, 8], strides = [1, 1]} : vector<8x32xf32> to vector<8x8xf32>
    %cst_19 = arith.constant dense<0.000000e+00> : vector<8x8xf32>
    %30 = tpu.matmul %25, %29, %cst_19 {dimension_numbers = #tpu.dot_dimension_numbers<[1], [0], [0], [1], [0, 0, 1, 1], [], []>} : vector<8x8xf32>, vector<8x8xf32>, vector<8x8xf32> -> vector<8x8xf32>
    %c0_20 = arith.constant 0 : index
    %c0_21 = arith.constant 0 : index
    %31 = vector.load %arg17[%c0_20, %c0_21] : memref<8x32xf32, #tpu.memory_space<vmem>>, vector<8x8xf32>
    tpu.vector_store %arg17[%c0_20, %c0_21], %30 {strides = array<i32>} : memref<8x32xf32, #tpu.memory_space<vmem>>, vector<8x8xf32>,
    %32 = vector.extract_strided_slice %11 {offsets = [0, 8], sizes = [8, 8], strides = [1, 1]} : vector<8x32xf32> to vector<8x8xf32>
    %33 = vector.extract_strided_slice %12 {offsets = [0, 8], sizes = [8, 8], strides = [1, 1]} : vector<8x32xf32> to vector<8x8xf32>
    %cst_22 = arith.constant dense<0.000000e+00> : vector<8x8xf32>
    %34 = tpu.matmul %32, %33, %cst_22 {dimension_numbers = #tpu.dot_dimension_numbers<[1], [1], [0], [0], [0, 0, 1, 0], [], []>} : vector<8x8xf32>, vector<8x8xf32>, vector<8x8xf32> -> vector<8x8xf32>
    %cst_23 = arith.constant dense<0xFF800000> : vector<8xf32>
    %35 = vector.multi_reduction <maximumf>, %34, %cst_23 [1] : vector<8x8xf32> to vector<8xf32>
    %36 = vector.shape_cast %35 : vector<8xf32> to vector<8x1xf32>
    %37 = vector.broadcast %36 : vector<8x1xf32> to vector<8x8xf32>
    %38 = arith.subf %34, %37 : vector<8x8xf32>
    %39 = math.exp %38 : vector<8x8xf32>
    %cst_24 = arith.constant dense<0.000000e+00> : vector<8xf32>
    %40 = vector.multi_reduction <add>, %39, %cst_24 [1] : vector<8x8xf32> to vector<8xf32>
    %41 = vector.shape_cast %40 : vector<8xf32> to vector<8x1xf32>
    %42 = vector.broadcast %41 : vector<8x1xf32> to vector<8x8xf32>
    %43 = arith.divf %39, %42 : vector<8x8xf32>
    %c0_25 = arith.constant 0 : index
    %c1 = arith.constant 1 : index
    %c0_26 = arith.constant 0 : index
    %c0_27 = arith.constant 0 : index
    %44 = vector.load %arg14[%c0_25, %c1, %c0_26, %c0_27] : memref<1x4x8x8xf32, #tpu.memory_space<vmem>>, vector<1x1x8x8xf32>
    %45 = vector.shape_cast %44 : vector<1x1x8x8xf32> to vector<8x8xf32>
    %46 = vector.shape_cast %43 : vector<8x8xf32> to vector<1x1x8x8xf32>
    tpu.vector_store %arg14[%c0_25, %c1, %c0_26, %c0_27], %46 {strides = array<i32>} : memref<1x4x8x8xf32, #tpu.memory_space<vmem>>, vector<1x1x8x8xf32>,
    %47 = vector.extract_strided_slice %13 {offsets = [0, 8], sizes = [8, 8], strides = [1, 1]} : vector<8x32xf32> to vector<8x8xf32>
    %cst_28 = arith.constant dense<0.000000e+00> : vector<8x8xf32>
    %48 = tpu.matmul %43, %47, %cst_28 {dimension_numbers = #tpu.dot_dimension_numbers<[1], [0], [0], [1], [0, 0, 1, 1], [], []>} : vector<8x8xf32>, vector<8x8xf32>, vector<8x8xf32> -> vector<8x8xf32>
    %c0_29 = arith.constant 0 : index
    %c8 = arith.constant 8 : index
    %49 = vector.load %arg17[%c0_29, %c8] : memref<8x32xf32, #tpu.memory_space<vmem>>, vector<8x8xf32>
    tpu.vector_store %arg17[%c0_29, %c8], %48 {strides = array<i32>} : memref<8x32xf32, #tpu.memory_space<vmem>>, vector<8x8xf32>,
    %50 = vector.extract_strided_slice %11 {offsets = [0, 16], sizes = [8, 8], strides = [1, 1]} : vector<8x32xf32> to vector<8x8xf32>
    %51 = vector.extract_strided_slice %12 {offsets = [0, 16], sizes = [8, 8], strides = [1, 1]} : vector<8x32xf32> to vector<8x8xf32>
    %cst_30 = arith.constant dense<0.000000e+00> : vector<8x8xf32>
    %52 = tpu.matmul %50, %51, %cst_30 {dimension_numbers = #tpu.dot_dimension_numbers<[1], [1], [0], [0], [0, 0, 1, 0], [], []>} : vector<8x8xf32>, vector<8x8xf32>, vector<8x8xf32> -> vector<8x8xf32>
    %cst_31 = arith.constant dense<0xFF800000> : vector<8xf32>
    %53 = vector.multi_reduction <maximumf>, %52, %cst_31 [1] : vector<8x8xf32> to vector<8xf32>
    %54 = vector.shape_cast %53 : vector<8xf32> to vector<8x1xf32>
    %55 = vector.broadcast %54 : vector<8x1xf32> to vector<8x8xf32>
    %56 = arith.subf %52, %55 : vector<8x8xf32>
    %57 = math.exp %56 : vector<8x8xf32>
    %cst_32 = arith.constant dense<0.000000e+00> : vector<8xf32>
    %58 = vector.multi_reduction <add>, %57, %cst_32 [1] : vector<8x8xf32> to vector<8xf32>
    %59 = vector.shape_cast %58 : vector<8xf32> to vector<8x1xf32>
    %60 = vector.broadcast %59 : vector<8x1xf32> to vector<8x8xf32>
    %61 = arith.divf %57, %60 : vector<8x8xf32>
    %c0_33 = arith.constant 0 : index
    %c2 = arith.constant 2 : index
    %c0_34 = arith.constant 0 : index
    %c0_35 = arith.constant 0 : index
    %62 = vector.load %arg14[%c0_33, %c2, %c0_34, %c0_35] : memref<1x4x8x8xf32, #tpu.memory_space<vmem>>, vector<1x1x8x8xf32>
    %63 = vector.shape_cast %62 : vector<1x1x8x8xf32> to vector<8x8xf32>
    %64 = vector.shape_cast %61 : vector<8x8xf32> to vector<1x1x8x8xf32>
    tpu.vector_store %arg14[%c0_33, %c2, %c0_34, %c0_35], %64 {strides = array<i32>} : memref<1x4x8x8xf32, #tpu.memory_space<vmem>>, vector<1x1x8x8xf32>,
    %65 = vector.extract_strided_slice %13 {offsets = [0, 16], sizes = [8, 8], strides = [1, 1]} : vector<8x32xf32> to vector<8x8xf32>
    %cst_36 = arith.constant dense<0.000000e+00> : vector<8x8xf32>
    %66 = tpu.matmul %61, %65, %cst_36 {dimension_numbers = #tpu.dot_dimension_numbers<[1], [0], [0], [1], [0, 0, 1, 1], [], []>} : vector<8x8xf32>, vector<8x8xf32>, vector<8x8xf32> -> vector<8x8xf32>
    %c0_37 = arith.constant 0 : index
    %c16 = arith.constant 16 : index
    %67 = vector.load %arg17[%c0_37, %c16] : memref<8x32xf32, #tpu.memory_space<vmem>>, vector<8x8xf32>
    tpu.vector_store %arg17[%c0_37, %c16], %66 {strides = array<i32>} : memref<8x32xf32, #tpu.memory_space<vmem>>, vector<8x8xf32>,
    %68 = vector.extract_strided_slice %11 {offsets = [0, 24], sizes = [8, 8], strides = [1, 1]} : vector<8x32xf32> to vector<8x8xf32>
    %69 = vector.extract_strided_slice %12 {offsets = [0, 24], sizes = [8, 8], strides = [1, 1]} : vector<8x32xf32> to vector<8x8xf32>
    %cst_38 = arith.constant dense<0.000000e+00> : vector<8x8xf32>
    %70 = tpu.matmul %68, %69, %cst_38 {dimension_numbers = #tpu.dot_dimension_numbers<[1], [1], [0], [0], [0, 0, 1, 0], [], []>} : vector<8x8xf32>, vector<8x8xf32>, vector<8x8xf32> -> vector<8x8xf32>
    %cst_39 = arith.constant dense<0xFF800000> : vector<8xf32>
    %71 = vector.multi_reduction <maximumf>, %70, %cst_39 [1] : vector<8x8xf32> to vector<8xf32>
    %72 = vector.shape_cast %71 : vector<8xf32> to vector<8x1xf32>
    %73 = vector.broadcast %72 : vector<8x1xf32> to vector<8x8xf32>
    %74 = arith.subf %70, %73 : vector<8x8xf32>
    %75 = math.exp %74 : vector<8x8xf32>
    %cst_40 = arith.constant dense<0.000000e+00> : vector<8xf32>
    %76 = vector.multi_reduction <add>, %75, %cst_40 [1] : vector<8x8xf32> to vector<8xf32>
    %77 = vector.shape_cast %76 : vector<8xf32> to vector<8x1xf32>
    %78 = vector.broadcast %77 : vector<8x1xf32> to vector<8x8xf32>
    %79 = arith.divf %75, %78 : vector<8x8xf32>
    %c0_41 = arith.constant 0 : index
    %c3 = arith.constant 3 : index
    %c0_42 = arith.constant 0 : index
    %c0_43 = arith.constant 0 : index
    %80 = vector.load %arg14[%c0_41, %c3, %c0_42, %c0_43] : memref<1x4x8x8xf32, #tpu.memory_space<vmem>>, vector<1x1x8x8xf32>
    %81 = vector.shape_cast %80 : vector<1x1x8x8xf32> to vector<8x8xf32>
    %82 = vector.shape_cast %79 : vector<8x8xf32> to vector<1x1x8x8xf32>
    tpu.vector_store %arg14[%c0_41, %c3, %c0_42, %c0_43], %82 {strides = array<i32>} : memref<1x4x8x8xf32, #tpu.memory_space<vmem>>, vector<1x1x8x8xf32>,
    %83 = vector.extract_strided_slice %13 {offsets = [0, 24], sizes = [8, 8], strides = [1, 1]} : vector<8x32xf32> to vector<8x8xf32>
    %cst_44 = arith.constant dense<0.000000e+00> : vector<8x8xf32>
    %84 = tpu.matmul %79, %83, %cst_44 {dimension_numbers = #tpu.dot_dimension_numbers<[1], [0], [0], [1], [0, 0, 1, 1], [], []>} : vector<8x8xf32>, vector<8x8xf32>, vector<8x8xf32> -> vector<8x8xf32>
    %c0_45 = arith.constant 0 : index
    %c24 = arith.constant 24 : index
    %85 = vector.load %arg17[%c0_45, %c24] : memref<8x32xf32, #tpu.memory_space<vmem>>, vector<8x8xf32>
    tpu.vector_store %arg17[%c0_45, %c24], %84 {strides = array<i32>} : memref<8x32xf32, #tpu.memory_space<vmem>>, vector<8x8xf32>,
    %c0_46 = arith.constant 0 : index
    %c0_47 = arith.constant 0 : index
    %86 = vector.load %arg17[%c0_46, %c0_47] : memref<8x32xf32, #tpu.memory_space<vmem>>, vector<8x32xf32>
    %c0_48 = arith.constant 0 : index
    %c0_49 = arith.constant 0 : index
    %87 = vector.load %arg11[%c0_48, %c0_49] : memref<32x32xf32, #tpu.memory_space<vmem>>, vector<32x32xf32>
    %cst_50 = arith.constant dense<0.000000e+00> : vector<8x32xf32>
    %88 = tpu.matmul %86, %87, %cst_50 {dimension_numbers = #tpu.dot_dimension_numbers<[1], [0], [0], [1], [0, 0, 1, 1], [], []>} : vector<8x32xf32>, vector<32x32xf32>, vector<8x32xf32> -> vector<8x32xf32>
    %c0_51 = arith.constant 0 : index
    %c0_52 = arith.constant 0 : index
    %89 = vector.load %arg12[%c0_51, %c0_52] : memref<1x32xf32, #tpu.memory_space<vmem>>, vector<1x32xf32>
    %90 = vector.broadcast %89 : vector<1x32xf32> to vector<8x32xf32>
    %91 = arith.addf %88, %90 : vector<8x32xf32>
    %c0_53 = arith.constant 0 : index
    %c0_54 = arith.constant 0 : index
    %c0_55 = arith.constant 0 : index
    %92 = vector.load %arg13[%c0_53, %c0_54, %c0_55] : memref<1x8x32xf32, #tpu.memory_space<vmem>>, vector<1x8x32xf32>
    %93 = vector.shape_cast %92 : vector<1x8x32xf32> to vector<8x32xf32>
    %94 = vector.shape_cast %91 : vector<8x32xf32> to vector<1x8x32xf32>
    tpu.vector_store %arg13[%c0_53, %c0_54, %c0_55], %94 {strides = array<i32>} : memref<1x8x32xf32, #tpu.memory_space<vmem>>, vector<1x8x32xf32>,
    return
  }
  func.func @transform_0(%arg0: i32, %arg1: i32) -> (i32, i32, i32) {
    %c0_i32 = arith.constant 0 : i32
    %c0_i32_0 = arith.constant 0 : i32
    return %arg0, %arg1, %c0_i32 : i32, i32, i32
  }
  func.func @transform_1(%arg0: i32, %arg1: i32) -> (i32, i32, i32) {
    %c0_i32 = arith.constant 0 : i32
    %c0_i32_0 = arith.constant 0 : i32
    %c0_i32_1 = arith.constant 0 : i32
    return %arg0, %c0_i32, %c0_i32_0 : i32, i32, i32
  }
  func.func @transform_2(%arg0: i32, %arg1: i32) -> (i32, i32, i32) {
    %c0_i32 = arith.constant 0 : i32
    %c0_i32_0 = arith.constant 0 : i32
    %c0_i32_1 = arith.constant 0 : i32
    return %arg0, %c0_i32, %c0_i32_0 : i32, i32, i32
  }
  func.func @transform_3(%arg0: i32, %arg1: i32) -> (i32, i32) {
    %c0_i32 = arith.constant 0 : i32
    %c0_i32_0 = arith.constant 0 : i32
    %c0_i32_1 = arith.constant 0 : i32
    return %c0_i32, %c0_i32_0 : i32, i32
  }
  func.func @transform_4(%arg0: i32, %arg1: i32) -> (i32, i32) {
    %c0_i32 = arith.constant 0 : i32
    %c0_i32_0 = arith.constant 0 : i32
    %c0_i32_1 = arith.constant 0 : i32
    return %c0_i32, %c0_i32_0 : i32, i32
  }
  func.func @transform_5(%arg0: i32, %arg1: i32) -> (i32, i32) {
    %c0_i32 = arith.constant 0 : i32
    %c0_i32_0 = arith.constant 0 : i32
    %c0_i32_1 = arith.constant 0 : i32
    return %c0_i32, %c0_i32_0 : i32, i32
  }
  func.func @transform_6(%arg0: i32, %arg1: i32) -> (i32, i32) {
    %c0_i32 = arith.constant 0 : i32
    %c0_i32_0 = arith.constant 0 : i32
    %c0_i32_1 = arith.constant 0 : i32
    return %c0_i32, %c0_i32_0 : i32, i32
  }
  func.func @transform_7(%arg0: i32, %arg1: i32) -> (i32, i32) {
    %c0_i32 = arith.constant 0 : i32
    %c0_i32_0 = arith.constant 0 : i32
    %c0_i32_1 = arith.constant 0 : i32
    return %c0_i32, %c0_i32_0 : i32, i32
  }
  func.func @transform_8(%arg0: i32, %arg1: i32) -> (i32, i32) {
    %c0_i32 = arith.constant 0 : i32
    %c0_i32_0 = arith.constant 0 : i32
    %c0_i32_1 = arith.constant 0 : i32
    return %c0_i32, %c0_i32_0 : i32, i32
  }
  func.func @transform_9(%arg0: i32, %arg1: i32) -> (i32, i32) {
    %c0_i32 = arith.constant 0 : i32
    %c0_i32_0 = arith.constant 0 : i32
    %c0_i32_1 = arith.constant 0 : i32
    return %c0_i32, %c0_i32_0 : i32, i32
  }
  func.func @transform_10(%arg0: i32, %arg1: i32) -> (i32, i32) {
    %c0_i32 = arith.constant 0 : i32
    %c0_i32_0 = arith.constant 0 : i32
    %c0_i32_1 = arith.constant 0 : i32
    return %c0_i32, %c0_i32_0 : i32, i32
  }
  func.func @transform_11(%arg0: i32, %arg1: i32) -> (i32, i32, i32) {
    %c0_i32 = arith.constant 0 : i32
    %c0_i32_0 = arith.constant 0 : i32
    return %arg0, %arg1, %c0_i32 : i32, i32, i32
  }
  func.func @transform_12(%arg0: i32, %arg1: i32) -> (i32, i32, i32, i32) {
    %c0_i32 = arith.constant 0 : i32
    %c0_i32_0 = arith.constant 0 : i32
    %c0_i32_1 = arith.constant 0 : i32
    return %arg0, %c0_i32, %arg1, %c0_i32_0 : i32, i32, i32, i32
  }
}

module attributes {stable_mosaic.version = 11 : i64} {
  func.func @_mha_kernel(%arg0: i32, %arg1: i32, %arg2: memref<1x8x32xf32, #tpu.memory_space<vmem>>, %arg3: memref<1x8x32xf32, #tpu.memory_space<vmem>>, %arg4: memref<1x8x32xf32, #tpu.memory_space<vmem>>, %arg5: memref<32x32xf32, #tpu.memory_space<vmem>>, %arg6: memref<1x32xf32, #tpu.memory_space<vmem>>, %arg7: memref<32x32xf32, #tpu.memory_space<vmem>>, %arg8: memref<1x32xf32, #tpu.memory_space<vmem>>, %arg9: memref<32x32xf32, #tpu.memory_space<vmem>>, %arg10: memref<1x32xf32, #tpu.memory_space<vmem>>, %arg11: memref<32x32xf32, #tpu.memory_space<vmem>>, %arg12: memref<1x32xf32, #tpu.memory_space<vmem>>, %arg13: memref<1x8x32xf32, #tpu.memory_space<vmem>>, %arg14: memref<1x4x8x8xf32, #tpu.memory_space<vmem>>, %arg15: memref<8x32xf32, #tpu.memory_space<vmem>>, %arg16: memref<8x32xf32, #tpu.memory_space<vmem>>, %arg17: memref<8x32xf32, #tpu.memory_space<vmem>>) attributes {dimension_semantics = [#tpu.dimension_semantics<parallel>, #tpu.dimension_semantics<arbitrary>], iteration_bounds = array<i64: 2, 1>, scalar_prefetch = 0 : i64, scratch_operands = 3 : i64, tpu.core_type = #tpu.core_type<tc>, window_params = [{transform_indices = @transform_0, window_bounds = array<i64: 1, 8, 32>}, {transform_indices = @transform_1, window_bounds = array<i64: 1, 8, 32>}, {transform_indices = @transform_2, window_bounds = array<i64: 1, 8, 32>}, {pipeline_mode = #tpu.pipeline_mode<synchronous>, transform_indices = @transform_3, window_bounds = array<i64: 32, 32>}, {pipeline_mode = #tpu.pipeline_mode<synchronous>, transform_indices = @transform_4, window_bounds = array<i64: 1, 32>}, {pipeline_mode = #tpu.pipeline_mode<synchronous>, transform_indices = @transform_5, window_bounds = array<i64: 32, 32>}, {pipeline_mode = #tpu.pipeline_mode<synchronous>, transform_indices = @transform_6, window_bounds = array<i64: 1, 32>}, {pipeline_mode = #tpu.pipeline_mode<synchronous>, transform_indices = @transform_7, window_bounds = array<i64: 32, 32>}, {pipeline_mode = #tpu.pipeline_mode<synchronous>, transform_indices = @transform_8, window_bounds = array<i64: 1, 32>}, {pipeline_mode = #tpu.pipeline_mode<synchronous>, transform_indices = @transform_9, window_bounds = array<i64: 32, 32>}, {pipeline_mode = #tpu.pipeline_mode<synchronous>, transform_indices = @transform_10, window_bounds = array<i64: 1, 32>}, {transform_indices = @transform_11, window_bounds = array<i64: 1, 8, 32>}, {transform_indices = @transform_12, window_bounds = array<i64: 1, 4, 8, 8>}]} {
    %c0_i32 = arith.constant 0 : i32
    %0 = arith.cmpi eq, %arg1, %c0_i32 : i32
    %1 = arith.extui %0 : i1 to i32
    %c0_i32_0 = arith.constant 0 : i32
    %2 = arith.cmpi ne, %1, %c0_i32_0 : i32
    scf.if %2 {
      %c0_56 = arith.constant 0 : index
      %c0_57 = arith.constant 0 : index
      %c0_58 = arith.constant 0 : index
      %95 = vector.load %arg3[%c0_56, %c0_57, %c0_58] : memref<1x8x32xf32, #tpu.memory_space<vmem>>, vector<1x8x32xf32>
      %96 = vector.shape_cast %95 : vector<1x8x32xf32> to vector<8x32xf32>
      %c0_59 = arith.constant 0 : index
      %c0_60 = arith.constant 0 : index
      %97 = vector.load %arg7[%c0_59, %c0_60] : memref<32x32xf32, #tpu.memory_space<vmem>>, vector<32x32xf32>
      %cst_61 = arith.constant dense<0.000000e+00> : vector<8x32xf32>
      %98 = tpu.matmul %96, %97, %cst_61 {dimension_numbers = #tpu.dot_dimension_numbers<[1], [0], [0], [1], [0, 0, 1, 1], [], []>} : vector<8x32xf32>, vector<32x32xf32>, vector<8x32xf32> -> vector<8x32xf32>
      %c0_62 = arith.constant 0 : index
      %c0_63 = arith.constant 0 : index
      %99 = vector.load %arg8[%c0_62, %c0_63] : memref<1x32xf32, #tpu.memory_space<vmem>>, vector<1x32xf32>
      %100 = vector.broadcast %99 : vector<1x32xf32> to vector<8x32xf32>
      %101 = arith.addf %98, %100 : vector<8x32xf32>
      %c0_64 = arith.constant 0 : index
      %c0_65 = arith.constant 0 : index
      %c0_66 = arith.constant 0 : index
      %102 = vector.load %arg4[%c0_64, %c0_65, %c0_66] : memref<1x8x32xf32, #tpu.memory_space<vmem>>, vector<1x8x32xf32>
      %103 = vector.shape_cast %102 : vector<1x8x32xf32> to vector<8x32xf32>
      %c0_67 = arith.constant 0 : index
      %c0_68 = arith.constant 0 : index
      %104 = vector.load %arg9[%c0_67, %c0_68] : memref<32x32xf32, #tpu.memory_space<vmem>>, vector<32x32xf32>
      %cst_69 = arith.constant dense<0.000000e+00> : vector<8x32xf32>
      %105 = tpu.matmul %103, %104, %cst_69 {dimension_numbers = #tpu.dot_dimension_numbers<[1], [0], [0], [1], [0, 0, 1, 1], [], []>} : vector<8x32xf32>, vector<32x32xf32>, vector<8x32xf32> -> vector<8x32xf32>
      %c0_70 = arith.constant 0 : index
      %c0_71 = arith.constant 0 : index
      %106 = vector.load %arg10[%c0_70, %c0_71] : memref<1x32xf32, #tpu.memory_space<vmem>>, vector<1x32xf32>
      %107 = vector.broadcast %106 : vector<1x32xf32> to vector<8x32xf32>
      %108 = arith.addf %105, %107 : vector<8x32xf32>
      %c0_72 = arith.constant 0 : index
      %c0_73 = arith.constant 0 : index
      %109 = vector.load %arg15[%c0_72, %c0_73] : memref<8x32xf32, #tpu.memory_space<vmem>>, vector<8x32xf32>
      tpu.vector_store %arg15[%c0_72, %c0_73], %101 {strides = array<i32>} : memref<8x32xf32, #tpu.memory_space<vmem>>, vector<8x32xf32>,
      %c0_74 = arith.constant 0 : index
      %c0_75 = arith.constant 0 : index
      %110 = vector.load %arg16[%c0_74, %c0_75] : memref<8x32xf32, #tpu.memory_space<vmem>>, vector<8x32xf32>
      tpu.vector_store %arg16[%c0_74, %c0_75], %108 {strides = array<i32>} : memref<8x32xf32, #tpu.memory_space<vmem>>, vector<8x32xf32>,
    } else {
    }
    %c0 = arith.constant 0 : index
    %c0_1 = arith.constant 0 : index
    %c0_2 = arith.constant 0 : index
    %3 = vector.load %arg2[%c0, %c0_1, %c0_2] : memref<1x8x32xf32, #tpu.memory_space<vmem>>, vector<1x8x32xf32>
    %4 = vector.shape_cast %3 : vector<1x8x32xf32> to vector<8x32xf32>
    %c0_3 = arith.constant 0 : index
    %c0_4 = arith.constant 0 : index
    %5 = vector.load %arg5[%c0_3, %c0_4] : memref<32x32xf32, #tpu.memory_space<vmem>>, vector<32x32xf32>
    %cst = arith.constant dense<0.000000e+00> : vector<8x32xf32>
    %6 = tpu.matmul %4, %5, %cst {dimension_numbers = #tpu.dot_dimension_numbers<[1], [0], [0], [1], [0, 0, 1, 1], [], []>} : vector<8x32xf32>, vector<32x32xf32>, vector<8x32xf32> -> vector<8x32xf32>
    %c0_5 = arith.constant 0 : index
    %c0_6 = arith.constant 0 : index
    %7 = vector.load %arg6[%c0_5, %c0_6] : memref<1x32xf32, #tpu.memory_space<vmem>>, vector<1x32xf32>
    %8 = vector.broadcast %7 : vector<1x32xf32> to vector<8x32xf32>
    %9 = arith.addf %6, %8 : vector<8x32xf32>
    %cst_7 = arith.constant 0.353553385 : f32
    %10 = vector.broadcast %cst_7 : f32 to vector<8x32xf32>
    %11 = arith.mulf %9, %10 : vector<8x32xf32>
    %c0_8 = arith.constant 0 : index
    %c0_9 = arith.constant 0 : index
    %12 = vector.load %arg15[%c0_8, %c0_9] : memref<8x32xf32, #tpu.memory_space<vmem>>, vector<8x32xf32>
    %c0_10 = arith.constant 0 : index
    %c0_11 = arith.constant 0 : index
    %13 = vector.load %arg16[%c0_10, %c0_11] : memref<8x32xf32, #tpu.memory_space<vmem>>, vector<8x32xf32>
    %14 = vector.extract_strided_slice %11 {offsets = [0, 0], sizes = [8, 8], strides = [1, 1]} : vector<8x32xf32> to vector<8x8xf32>
    %15 = vector.extract_strided_slice %12 {offsets = [0, 0], sizes = [8, 8], strides = [1, 1]} : vector<8x32xf32> to vector<8x8xf32>
    %cst_12 = arith.constant dense<0.000000e+00> : vector<8x8xf32>
    %16 = tpu.matmul %14, %15, %cst_12 {dimension_numbers = #tpu.dot_dimension_numbers<[1], [1], [0], [0], [0, 0, 1, 0], [], []>} : vector<8x8xf32>, vector<8x8xf32>, vector<8x8xf32> -> vector<8x8xf32>
    %cst_13 = arith.constant dense<0xFF800000> : vector<8xf32>
    %17 = vector.multi_reduction <maximumf>, %16, %cst_13 [1] : vector<8x8xf32> to vector<8xf32>
    %18 = vector.shape_cast %17 : vector<8xf32> to vector<8x1xf32>
    %19 = vector.broadcast %18 : vector<8x1xf32> to vector<8x8xf32>
    %20 = arith.subf %16, %19 : vector<8x8xf32>
    %21 = math.exp %20 : vector<8x8xf32>
    %cst_14 = arith.constant dense<0.000000e+00> : vector<8xf32>
    %22 = vector.multi_reduction <add>, %21, %cst_14 [1] : vector<8x8xf32> to vector<8xf32>
    %23 = vector.shape_cast %22 : vector<8xf32> to vector<8x1xf32>
    %24 = vector.broadcast %23 : vector<8x1xf32> to vector<8x8xf32>
    %25 = arith.divf %21, %24 : vector<8x8xf32>
    %c0_15 = arith.constant 0 : index
    %c0_16 = arith.constant 0 : index
    %c0_17 = arith.constant 0 : index
    %c0_18 = arith.constant 0 : index
    %26 = vector.load %arg14[%c0_15, %c0_16, %c0_17, %c0_18] : memref<1x4x8x8xf32, #tpu.memory_space<vmem>>, vector<1x1x8x8xf32>
    %27 = vector.shape_cast %26 : vector<1x1x8x8xf32> to vector<8x8xf32>
    %28 = vector.shape_cast %25 : vector<8x8xf32> to vector<1x1x8x8xf32>
    tpu.vector_store %arg14[%c0_15, %c0_16, %c0_17, %c0_18], %28 {strides = array<i32>} : memref<1x4x8x8xf32, #tpu.memory_space<vmem>>, vector<1x1x8x8xf32>,
    %29 = vector.extract_strided_slice %13 {offsets = [0, 0], sizes = [8, 8], strides = [1, 1]} : vector<8x32xf32> to vector<8x8xf32>
    %cst_19 = arith.constant dense<0.000000e+00> : vector<8x8xf32>
    %30 = tpu.matmul %25, %29, %cst_19 {dimension_numbers = #tpu.dot_dimension_numbers<[1], [0], [0], [1], [0, 0, 1, 1], [], []>} : vector<8x8xf32>, vector<8x8xf32>, vector<8x8xf32> -> vector<8x8xf32>
    %c0_20 = arith.constant 0 : index
    %c0_21 = arith.constant 0 : index
    %31 = vector.load %arg17[%c0_20, %c0_21] : memref<8x32xf32, #tpu.memory_space<vmem>>, vector<8x8xf32>
    tpu.vector_store %arg17[%c0_20, %c0_21], %30 {strides = array<i32>} : memref<8x32xf32, #tpu.memory_space<vmem>>, vector<8x8xf32>,
    %32 = vector.extract_strided_slice %11 {offsets = [0, 8], sizes = [8, 8], strides = [1, 1]} : vector<8x32xf32> to vector<8x8xf32>
    %33 = vector.extract_strided_slice %12 {offsets = [0, 8], sizes = [8, 8], strides = [1, 1]} : vector<8x32xf32> to vector<8x8xf32>
    %cst_22 = arith.constant dense<0.000000e+00> : vector<8x8xf32>
    %34 = tpu.matmul %32, %33, %cst_22 {dimension_numbers = #tpu.dot_dimension_numbers<[1], [1], [0], [0], [0, 0, 1, 0], [], []>} : vector<8x8xf32>, vector<8x8xf32>, vector<8x8xf32> -> vector<8x8xf32>
    %cst_23 = arith.constant dense<0xFF800000> : vector<8xf32>
    %35 = vector.multi_reduction <maximumf>, %34, %cst_23 [1] : vector<8x8xf32> to vector<8xf32>
    %36 = vector.shape_cast %35 : vector<8xf32> to vector<8x1xf32>
    %37 = vector.broadcast %36 : vector<8x1xf32> to vector<8x8xf32>
    %38 = arith.subf %34, %37 : vector<8x8xf32>
    %39 = math.exp %38 : vector<8x8xf32>
    %cst_24 = arith.constant dense<0.000000e+00> : vector<8xf32>
    %40 = vector.multi_reduction <add>, %39, %cst_24 [1] : vector<8x8xf32> to vector<8xf32>
    %41 = vector.shape_cast %40 : vector<8xf32> to vector<8x1xf32>
    %42 = vector.broadcast %41 : vector<8x1xf32> to vector<8x8xf32>
    %43 = arith.divf %39, %42 : vector<8x8xf32>
    %c0_25 = arith.constant 0 : index
    %c1 = arith.constant 1 : index
    %c0_26 = arith.constant 0 : index
    %c0_27 = arith.constant 0 : index
    %44 = vector.load %arg14[%c0_25, %c1, %c0_26, %c0_27] : memref<1x4x8x8xf32, #tpu.memory_space<vmem>>, vector<1x1x8x8xf32>
    %45 = vector.shape_cast %44 : vector<1x1x8x8xf32> to vector<8x8xf32>
    %46 = vector.shape_cast %43 : vector<8x8xf32> to vector<1x1x8x8xf32>
    tpu.vector_store %arg14[%c0_25, %c1, %c0_26, %c0_27], %46 {strides = array<i32>} : memref<1x4x8x8xf32, #tpu.memory_space<vmem>>, vector<1x1x8x8xf32>,
    %47 = vector.extract_strided_slice %13 {offsets = [0, 8], sizes = [8, 8], strides = [1, 1]} : vector<8x32xf32> to vector<8x8xf32>
    %cst_28 = arith.constant dense<0.000000e+00> : vector<8x8xf32>
    %48 = tpu.matmul %43, %47, %cst_28 {dimension_numbers = #tpu.dot_dimension_numbers<[1], [0], [0], [1], [0, 0, 1, 1], [], []>} : vector<8x8xf32>, vector<8x8xf32>, vector<8x8xf32> -> vector<8x8xf32>
    %c0_29 = arith.constant 0 : index
    %c8 = arith.constant 8 : index
    %49 = vector.load %arg17[%c0_29, %c8] : memref<8x32xf32, #tpu.memory_space<vmem>>, vector<8x8xf32>
    tpu.vector_store %arg17[%c0_29, %c8], %48 {strides = array<i32>} : memref<8x32xf32, #tpu.memory_space<vmem>>, vector<8x8xf32>,
    %50 = vector.extract_strided_slice %11 {offsets = [0, 16], sizes = [8, 8], strides = [1, 1]} : vector<8x32xf32> to vector<8x8xf32>
    %51 = vector.extract_strided_slice %12 {offsets = [0, 16], sizes = [8, 8], strides = [1, 1]} : vector<8x32xf32> to vector<8x8xf32>
    %cst_30 = arith.constant dense<0.000000e+00> : vector<8x8xf32>
    %52 = tpu.matmul %50, %51, %cst_30 {dimension_numbers = #tpu.dot_dimension_numbers<[1], [1], [0], [0], [0, 0, 1, 0], [], []>} : vector<8x8xf32>, vector<8x8xf32>, vector<8x8xf32> -> vector<8x8xf32>
    %cst_31 = arith.constant dense<0xFF800000> : vector<8xf32>
    %53 = vector.multi_reduction <maximumf>, %52, %cst_31 [1] : vector<8x8xf32> to vector<8xf32>
    %54 = vector.shape_cast %53 : vector<8xf32> to vector<8x1xf32>
    %55 = vector.broadcast %54 : vector<8x1xf32> to vector<8x8xf32>
    %56 = arith.subf %52, %55 : vector<8x8xf32>
    %57 = math.exp %56 : vector<8x8xf32>
    %cst_32 = arith.constant dense<0.000000e+00> : vector<8xf32>
    %58 = vector.multi_reduction <add>, %57, %cst_32 [1] : vector<8x8xf32> to vector<8xf32>
    %59 = vector.shape_cast %58 : vector<8xf32> to vector<8x1xf32>
    %60 = vector.broadcast %59 : vector<8x1xf32> to vector<8x8xf32>
    %61 = arith.divf %57, %60 : vector<8x8xf32>
    %c0_33 = arith.constant 0 : index
    %c2 = arith.constant 2 : index
    %c0_34 = arith.constant 0 : index
    %c0_35 = arith.constant 0 : index
    %62 = vector.load %arg14[%c0_33, %c2, %c0_34, %c0_35] : memref<1x4x8x8xf32, #tpu.memory_space<vmem>>, vector<1x1x8x8xf32>
    %63 = vector.shape_cast %62 : vector<1x1x8x8xf32> to vector<8x8xf32>
    %64 = vector.shape_cast %61 : vector<8x8xf32> to vector<1x1x8x8xf32>
    tpu.vector_store %arg14[%c0_33, %c2, %c0_34, %c0_35], %64 {strides = array<i32>} : memref<1x4x8x8xf32, #tpu.memory_space<vmem>>, vector<1x1x8x8xf32>,
    %65 = vector.extract_strided_slice %13 {offsets = [0, 16], sizes = [8, 8], strides = [1, 1]} : vector<8x32xf32> to vector<8x8xf32>
    %cst_36 = arith.constant dense<0.000000e+00> : vector<8x8xf32>
    %66 = tpu.matmul %61, %65, %cst_36 {dimension_numbers = #tpu.dot_dimension_numbers<[1], [0], [0], [1], [0, 0, 1, 1], [], []>} : vector<8x8xf32>, vector<8x8xf32>, vector<8x8xf32> -> vector<8x8xf32>
    %c0_37 = arith.constant 0 : index
    %c16 = arith.constant 16 : index
    %67 = vector.load %arg17[%c0_37, %c16] : memref<8x32xf32, #tpu.memory_space<vmem>>, vector<8x8xf32>
    tpu.vector_store %arg17[%c0_37, %c16], %66 {strides = array<i32>} : memref<8x32xf32, #tpu.memory_space<vmem>>, vector<8x8xf32>,
    %68 = vector.extract_strided_slice %11 {offsets = [0, 24], sizes = [8, 8], strides = [1, 1]} : vector<8x32xf32> to vector<8x8xf32>
    %69 = vector.extract_strided_slice %12 {offsets = [0, 24], sizes = [8, 8], strides = [1, 1]} : vector<8x32xf32> to vector<8x8xf32>
    %cst_38 = arith.constant dense<0.000000e+00> : vector<8x8xf32>
    %70 = tpu.matmul %68, %69, %cst_38 {dimension_numbers = #tpu.dot_dimension_numbers<[1], [1], [0], [0], [0, 0, 1, 0], [], []>} : vector<8x8xf32>, vector<8x8xf32>, vector<8x8xf32> -> vector<8x8xf32>
    %cst_39 = arith.constant dense<0xFF800000> : vector<8xf32>
    %71 = vector.multi_reduction <maximumf>, %70, %cst_39 [1] : vector<8x8xf32> to vector<8xf32>
    %72 = vector.shape_cast %71 : vector<8xf32> to vector<8x1xf32>
    %73 = vector.broadcast %72 : vector<8x1xf32> to vector<8x8xf32>
    %74 = arith.subf %70, %73 : vector<8x8xf32>
    %75 = math.exp %74 : vector<8x8xf32>
    %cst_40 = arith.constant dense<0.000000e+00> : vector<8xf32>
    %76 = vector.multi_reduction <add>, %75, %cst_40 [1] : vector<8x8xf32> to vector<8xf32>
    %77 = vector.shape_cast %76 : vector<8xf32> to vector<8x1xf32>
    %78 = vector.broadcast %77 : vector<8x1xf32> to vector<8x8xf32>
    %79 = arith.divf %75, %78 : vector<8x8xf32>
    %c0_41 = arith.constant 0 : index
    %c3 = arith.constant 3 : index
    %c0_42 = arith.constant 0 : index
    %c0_43 = arith.constant 0 : index
    %80 = vector.load %arg14[%c0_41, %c3, %c0_42, %c0_43] : memref<1x4x8x8xf32, #tpu.memory_space<vmem>>, vector<1x1x8x8xf32>
    %81 = vector.shape_cast %80 : vector<1x1x8x8xf32> to vector<8x8xf32>
    %82 = vector.shape_cast %79 : vector<8x8xf32> to vector<1x1x8x8xf32>
    tpu.vector_store %arg14[%c0_41, %c3, %c0_42, %c0_43], %82 {strides = array<i32>} : memref<1x4x8x8xf32, #tpu.memory_space<vmem>>, vector<1x1x8x8xf32>,
    %83 = vector.extract_strided_slice %13 {offsets = [0, 24], sizes = [8, 8], strides = [1, 1]} : vector<8x32xf32> to vector<8x8xf32>
    %cst_44 = arith.constant dense<0.000000e+00> : vector<8x8xf32>
    %84 = tpu.matmul %79, %83, %cst_44 {dimension_numbers = #tpu.dot_dimension_numbers<[1], [0], [0], [1], [0, 0, 1, 1], [], []>} : vector<8x8xf32>, vector<8x8xf32>, vector<8x8xf32> -> vector<8x8xf32>
    %c0_45 = arith.constant 0 : index
    %c24 = arith.constant 24 : index
    %85 = vector.load %arg17[%c0_45, %c24] : memref<8x32xf32, #tpu.memory_space<vmem>>, vector<8x8xf32>
    tpu.vector_store %arg17[%c0_45, %c24], %84 {strides = array<i32>} : memref<8x32xf32, #tpu.memory_space<vmem>>, vector<8x8xf32>,
    %c0_46 = arith.constant 0 : index
    %c0_47 = arith.constant 0 : index
    %86 = vector.load %arg17[%c0_46, %c0_47] : memref<8x32xf32, #tpu.memory_space<vmem>>, vector<8x32xf32>
    %c0_48 = arith.constant 0 : index
    %c0_49 = arith.constant 0 : index
    %87 = vector.load %arg11[%c0_48, %c0_49] : memref<32x32xf32, #tpu.memory_space<vmem>>, vector<32x32xf32>
    %cst_50 = arith.constant dense<0.000000e+00> : vector<8x32xf32>
    %88 = tpu.matmul %86, %87, %cst_50 {dimension_numbers = #tpu.dot_dimension_numbers<[1], [0], [0], [1], [0, 0, 1, 1], [], []>} : vector<8x32xf32>, vector<32x32xf32>, vector<8x32xf32> -> vector<8x32xf32>
    %c0_51 = arith.constant 0 : index
    %c0_52 = arith.constant 0 : index
    %89 = vector.load %arg12[%c0_51, %c0_52] : memref<1x32xf32, #tpu.memory_space<vmem>>, vector<1x32xf32>
    %90 = vector.broadcast %89 : vector<1x32xf32> to vector<8x32xf32>
    %91 = arith.addf %88, %90 : vector<8x32xf32>
    %c0_53 = arith.constant 0 : index
    %c0_54 = arith.constant 0 : index
    %c0_55 = arith.constant 0 : index
    %92 = vector.load %arg13[%c0_53, %c0_54, %c0_55] : memref<1x8x32xf32, #tpu.memory_space<vmem>>, vector<1x8x32xf32>
    %93 = vector.shape_cast %92 : vector<1x8x32xf32> to vector<8x32xf32>
    %94 = vector.shape_cast %91 : vector<8x32xf32> to vector<1x8x32xf32>
    tpu.vector_store %arg13[%c0_53, %c0_54, %c0_55], %94 {strides = array<i32>} : memref<1x8x32xf32, #tpu.memory_space<vmem>>, vector<1x8x32xf32>,
    return
  }
  func.func @transform_0(%arg0: i32, %arg1: i32) -> (i32, i32, i32) {
    %c0_i32 = arith.constant 0 : i32
    %c0_i32_0 = arith.constant 0 : i32
    return %arg0, %arg1, %c0_i32 : i32, i32, i32
  }
  func.func @transform_1(%arg0: i32, %arg1: i32) -> (i32, i32, i32) {
    %c0_i32 = arith.constant 0 : i32
    %c0_i32_0 = arith.constant 0 : i32
    %c0_i32_1 = arith.constant 0 : i32
    return %arg0, %c0_i32, %c0_i32_0 : i32, i32, i32
  }
  func.func @transform_2(%arg0: i32, %arg1: i32) -> (i32, i32, i32) {
    %c0_i32 = arith.constant 0 : i32
    %c0_i32_0 = arith.constant 0 : i32
    %c0_i32_1 = arith.constant 0 : i32
    return %arg0, %c0_i32, %c0_i32_0 : i32, i32, i32
  }
  func.func @transform_3(%arg0: i32, %arg1: i32) -> (i32, i32) {
    %c0_i32 = arith.constant 0 : i32
    %c0_i32_0 = arith.constant 0 : i32
    %c0_i32_1 = arith.constant 0 : i32
    return %c0_i32, %c0_i32_0 : i32, i32
  }
  func.func @transform_4(%arg0: i32, %arg1: i32) -> (i32, i32) {
    %c0_i32 = arith.constant 0 : i32
    %c0_i32_0 = arith.constant 0 : i32
    %c0_i32_1 = arith.constant 0 : i32
    return %c0_i32, %c0_i32_0 : i32, i32
  }
  func.func @transform_5(%arg0: i32, %arg1: i32) -> (i32, i32) {
    %c0_i32 = arith.constant 0 : i32
    %c0_i32_0 = arith.constant 0 : i32
    %c0_i32_1 = arith.constant 0 : i32
    return %c0_i32, %c0_i32_0 : i32, i32
  }
  func.func @transform_6(%arg0: i32, %arg1: i32) -> (i32, i32) {
    %c0_i32 = arith.constant 0 : i32
    %c0_i32_0 = arith.constant 0 : i32
    %c0_i32_1 = arith.constant 0 : i32
    return %c0_i32, %c0_i32_0 : i32, i32
  }
  func.func @transform_7(%arg0: i32, %arg1: i32) -> (i32, i32) {
    %c0_i32 = arith.constant 0 : i32
    %c0_i32_0 = arith.constant 0 : i32
    %c0_i32_1 = arith.constant 0 : i32
    return %c0_i32, %c0_i32_0 : i32, i32
  }
  func.func @transform_8(%arg0: i32, %arg1: i32) -> (i32, i32) {
    %c0_i32 = arith.constant 0 : i32
    %c0_i32_0 = arith.constant 0 : i32
    %c0_i32_1 = arith.constant 0 : i32
    return %c0_i32, %c0_i32_0 : i32, i32
  }
  func.func @transform_9(%arg0: i32, %arg1: i32) -> (i32, i32) {
    %c0_i32 = arith.constant 0 : i32
    %c0_i32_0 = arith.constant 0 : i32
    %c0_i32_1 = arith.constant 0 : i32
    return %c0_i32, %c0_i32_0 : i32, i32
  }
  func.func @transform_10(%arg0: i32, %arg1: i32) -> (i32, i32) {
    %c0_i32 = arith.constant 0 : i32
    %c0_i32_0 = arith.constant 0 : i32
    %c0_i32_1 = arith.constant 0 : i32
    return %c0_i32, %c0_i32_0 : i32, i32
  }
  func.func @transform_11(%arg0: i32, %arg1: i32) -> (i32, i32, i32) {
    %c0_i32 = arith.constant 0 : i32
    %c0_i32_0 = arith.constant 0 : i32
    return %arg0, %arg1, %c0_i32 : i32, i32, i32
  }
  func.func @transform_12(%arg0: i32, %arg1: i32) -> (i32, i32, i32, i32) {
    %c0_i32 = arith.constant 0 : i32
    %c0_i32_0 = arith.constant 0 : i32
    %c0_i32_1 = arith.constant 0 : i32
    return %arg0, %c0_i32, %arg1, %c0_i32_0 : i32, i32, i32, i32
  }
}

</mosaic_0001>

<llo_original>
// kernel: tpu_custom_call.1
$region0: #{tpu_custom_call.1}
  #allocation0 [shape = 'u32[]', space=smem, size = 0x4, offset = 0x4, fixed_abs, tag = 'smem constant byte address 0x4 - core index']
  #allocation1 [shape = 'u32[72,128]{1,0:T(1,128)}', space=vmem, size = 0x9000, scoped, tag = 'internal scratch']
  #allocation2 [shape = 'f32[8,32]{1,0:T(8,128)}', space=vmem, size = 0x1000, scoped, tag = 'scratch operand']
  #allocation3 [shape = 'f32[8,32]{1,0:T(8,128)}', space=vmem, size = 0x1000, scoped, tag = 'scratch operand']
  #allocation4 [shape = 'f32[8,32]{1,0:T(8,128)}', space=vmem, size = 0x1000, scoped, tag = 'scratch operand']
  %s0 = inlined_call_operand.hbm [shape: f32[2,8,32], index: 0, kind: input, shape index: {}]
  %s1 = inlined_call_operand.hbm [shape: f32[2,8,32], index: 1, kind: input, shape index: {}]
  %s2 = inlined_call_operand.hbm [shape: f32[2,8,32], index: 2, kind: input, shape index: {}]
  %s3 = inlined_call_operand.hbm [shape: f32[32,32], index: 3, kind: input, shape index: {}]
  %s4 = inlined_call_operand.vmem [shape: f32[1,32], index: 4, kind: input, shape index: {}]
  %s5 = inlined_call_operand.hbm [shape: f32[32,32], index: 5, kind: input, shape index: {}]
  %s6 = inlined_call_operand.vmem [shape: f32[1,32], index: 6, kind: input, shape index: {}]
  %s7 = inlined_call_operand.hbm [shape: f32[32,32], index: 7, kind: input, shape index: {}]
  %s8 = inlined_call_operand.vmem [shape: f32[1,32], index: 8, kind: input, shape index: {}]
  %s9 = inlined_call_operand.hbm [shape: f32[32,32], index: 9, kind: input, shape index: {}]
  %s10 = inlined_call_operand.vmem [shape: f32[1,32], index: 10, kind: input, shape index: {}]
  %s11 = inlined_call_operand.hbm [shape: f32[2,8,32], index: 11, kind: output, shape index: {0}]
  %s12 = inlined_call_operand.hbm [shape: f32[2,4,8,8], index: 12, kind: output, shape index: {1}]
  %13 = xla_tuple %s11, %s12
  %s14 = sld [smem:[#allocation0]]
  $region117: #{tpu_custom_call.1} parent=0
    _
  %s16 = ssub.s32 1, %s14
  %s17 = scalar_select 0, %s16, %s14
  $region1: #{tpu_custom_call.1} parent=0
    #allocation5 [shape = 'u8[8192]{0}', space=vmem, size = 0x2000, scoped, tag = 'input window, operand 0']
    #allocation6 [shape = 's32[2]{0}', space=sflag, size = 0x8, scoped, tag = 'scoped memory for tpu_custom_call.1']
    #allocation7 [shape = 's32[2]{0}', space=sflag, size = 0x8, scoped, tag = 'scoped memory for tpu_custom_call.1']
    #allocation8 [shape = 'u8[4096]{0}', space=vmem, size = 0x1000, scoped, tag = 'input window, operand 1, single buffered']
    #allocation9 [shape = 's32[1]{0}', space=sflag, size = 0x4, scoped, tag = 'scoped memory for tpu_custom_call.1']
    #allocation10 [shape = 'u8[4096]{0}', space=vmem, size = 0x1000, scoped, tag = 'input window, operand 2, single buffered']
    #allocation11 [shape = 'u8[16384]{0}', space=vmem, size = 0x4000, scoped, tag = 'input window, operand 3, single buffered']
    #allocation12 [shape = 's32[1]{0}', space=sflag, size = 0x4, scoped, tag = 'scoped memory for tpu_custom_call.1']
    #allocation13 [shape = 'u8[16384]{0}', space=vmem, size = 0x4000, scoped, tag = 'input window, operand 5, single buffered']
    #allocation14 [shape = 'u8[16384]{0}', space=vmem, size = 0x4000, scoped, tag = 'input window, operand 7, single buffered']
    #allocation15 [shape = 's32[1]{0}', space=sflag, size = 0x4, scoped, tag = 'scoped memory for tpu_custom_call.1']
    #allocation16 [shape = 'u8[16384]{0}', space=vmem, size = 0x4000, scoped, tag = 'input window, operand 9, single buffered']
    #allocation17 [shape = 'u8[8192]{0}', space=vmem, size = 0x2000, scoped, tag = 'output window, operand 0']
    #allocation18 [shape = 'u8[32768]{0}', space=vmem, size = 0x8000, scoped, tag = 'output window, operand 1']
    #allocation19 [shape = 's32[2]{0}', space=sflag, size = 0x8, scoped, tag = 'scoped memory for tpu_custom_call.1']
    %18 = vsyncpa [#allocation6], 0
    %s19 = scalar_lea.sflag [#allocation6], 1
    %20 = vsyncpa %s19, 0
    %21 = vsyncpa [#allocation9], 0
    %22 = vsyncpa [#allocation12], 0
    %23 = vsyncpa [#allocation15], 0
    %24 = vsyncpa [#allocation7], 0
    %s25 = scalar_lea.sflag [#allocation7], 1
    %26 = vsyncpa %s25, 0
    %27 = vsyncpa [#allocation19], 0
    %s28 = scalar_lea.sflag [#allocation19], 1
    %29 = vsyncpa %s28, 0
    loop: start=0, step=1, limit=4
    $region2: #{tpu_custom_call.1} parent=1 // loop_pre_header
      _
    $region3: #{tpu_custom_call.1} parent=1 // loop_header
      %s31 = sphi 0, %s35
      %p32 = scmp.ge.s32.totalorder %s31, 4
      %s38 = sphi 0, %s50
      %s39 = sphi 0, %s46
      %s40 = sphi 0, %s38
      %s41 = sphi 0, %s39
      %s42 = sphi 0, %s40
      %s43 = sphi 0, %s41
      %s55 = sphi 0, %s57
      %s58 = sphi 0, %s55
      %s59 = sphi 0, %s58
      %s75 = sphi 0, %s59
      %s81 = sphi 0, %s83
      %s84 = sphi 0, %s81
      %s85 = sphi 0, %s84
      %s101 = sphi 0, %s85
      %s107 = sphi 0, %s109
      %s110 = sphi 0, %s107
      %s111 = sphi 0, %s110
      %s127 = sphi 0, %s111
      %s131 = sphi 0, %s131
      %s133 = sphi 0, %s131
      %s134 = sphi 0, %s133
      %s148 = sphi 0, %s134
      %s152 = sphi 0, %s152
      %s154 = sphi 0, %s152
      %s155 = sphi 0, %s154
      %s169 = sphi 0, %s155
      %s173 = sphi 0, %s173
      %s175 = sphi 0, %s173
      %s176 = sphi 0, %s175
      %s190 = sphi 0, %s176
      %s194 = sphi 0, %s194
      %s196 = sphi 0, %s194
      %s197 = sphi 0, %s196
      %s211 = sphi 0, %s197
      %s215 = sphi 0, %s215
      %s217 = sphi 0, %s215
      %s218 = sphi 0, %s217
      %s232 = sphi 0, %s218
      %s236 = sphi 0, %s236
      %s238 = sphi 0, %s236
      %s239 = sphi 0, %s238
      %s253 = sphi 0, %s239
      %s257 = sphi 0, %s257
      %s259 = sphi 0, %s257
      %s260 = sphi 0, %s259
      %s274 = sphi 0, %s260
      %s278 = sphi 0, %s278
      %s280 = sphi 0, %s278
      %s281 = sphi 0, %s280
      %s295 = sphi 0, %s281
      %s303 = sphi 0, %s305
      %s306 = sphi 0, %s303
      %s307 = sphi 0, %s306
      %s323 = sphi 0, %s307
      %s331 = sphi 0, %s333
      %s334 = sphi 0, %s331
      %s335 = sphi 0, %s334
      %s351 = sphi 0, %s335
    $region4: #{tpu_custom_call.1} parent=1 // loop_header_branch
      %34 = sbr.rel (%p32) target = $region8
    $region5: #{tpu_custom_call.1} parent=1 // loop_body
      %s36 = ssub.s32 %s31, 1
      %s37 = ssub.s32 %s31, 2
      %s44 = sadd.s32 1, %s39
      %p45 = scmp.ge.s32.totalorder %s44, 1
      %s46 = scalar_select %p45, 0, %s44
      %s47 = sadd.s32 1, %s38
      %s48 = scalar_select %p45, %s47, %s38
      %p49 = scmp.ge.s32.totalorder %s48, 2
      %s50 = scalar_select %p49, 0, %s48
      %s51 = ssub.s32 %s38, %s50
      %s52 = ssub.s32 %s39, %s46
      %s53 = sor.u32 %s51, %s52
      %p54 = scmp.eq.s32.totalorder %s53, 0
      %s56 = sadd.s32 %s55, 1
      %s57 = scalar_select %p54, %s55, %s56
      %p60 = pneg %p54
      %p61 = scmp.eq.s32.totalorder %s31, 1
      %p62 = por %p60, %p61
      %p63 = scmp.ne.s32.totalorder %s55, %s58
      %p64 = scmp.eq.s32.totalorder %s31, 0
      %p65 = por %p63, %p64
      %p66 = scmp.ne.s32.totalorder %s55, %s58
      %p67 = scmp.eq.s32.totalorder %s36, 1
      %p68 = por %p66, %p67
      %p69 = scmp.ne.s32.totalorder %s58, %s59
      %p70 = scmp.eq.s32.totalorder %s36, 0
      %p71 = por %p69, %p70
      %p72 = scmp.ne.s32.totalorder %s58, %s59
      %p73 = scmp.eq.s32.totalorder %s37, 1
      %p74 = por %p72, %p73
      %p76 = scmp.ne.s32.totalorder %s59, %s75
      %p77 = scmp.eq.s32.totalorder %s37, 0
      %p78 = por %p76, %p77
      %s79 = ssub.s32 %s38, %s50
      %p80 = scmp.eq.s32.totalorder %s79, 0
      %s82 = sadd.s32 %s81, 1
      %s83 = scalar_select %p80, %s81, %s82
      %p86 = pneg %p80
      %p87 = scmp.eq.s32.totalorder %s31, 1
      %p88 = por %p86, %p87
      %p89 = scmp.ne.s32.totalorder %s81, %s84
      %p90 = scmp.eq.s32.totalorder %s31, 0
      %p91 = por %p89, %p90
      %p92 = scmp.ne.s32.totalorder %s81, %s84
      %p93 = scmp.eq.s32.totalorder %s36, 1
      %p94 = por %p92, %p93
      %p95 = scmp.ne.s32.totalorder %s84, %s85
      %p96 = scmp.eq.s32.totalorder %s36, 0
      %p97 = por %p95, %p96
      %p98 = scmp.ne.s32.totalorder %s84, %s85
      %p99 = scmp.eq.s32.totalorder %s37, 1
      %p100 = por %p98, %p99
      %p102 = scmp.ne.s32.totalorder %s85, %s101
      %p103 = scmp.eq.s32.totalorder %s37, 0
      %p104 = por %p102, %p103
      %s105 = ssub.s32 %s38, %s50
      %p106 = scmp.eq.s32.totalorder %s105, 0
      %s108 = sadd.s32 %s107, 1
      %s109 = scalar_select %p106, %s107, %s108
      %p112 = pneg %p106
      %p113 = scmp.eq.s32.totalorder %s31, 1
      %p114 = por %p112, %p113
      %p115 = scmp.ne.s32.totalorder %s107, %s110
      %p116 = scmp.eq.s32.totalorder %s31, 0
      %p117 = por %p115, %p116
      %p118 = scmp.ne.s32.totalorder %s107, %s110
      %p119 = scmp.eq.s32.totalorder %s36, 1
      %p120 = por %p118, %p119
      %p121 = scmp.ne.s32.totalorder %s110, %s111
      %p122 = scmp.eq.s32.totalorder %s36, 0
      %p123 = por %p121, %p122
      %p124 = scmp.ne.s32.totalorder %s110, %s111
      %p125 = scmp.eq.s32.totalorder %s37, 1
      %p126 = por %p124, %p125
      %p128 = scmp.ne.s32.totalorder %s111, %s127
      %p129 = scmp.eq.s32.totalorder %s37, 0
      %p130 = por %p128, %p129
      %s132 = sadd.s32 %s131, 1
      %p135 = scmp.eq.s32.totalorder %s31, 1
      %p136 = scmp.ne.s32.totalorder %s131, %s133
      %p137 = scmp.eq.s32.totalorder %s31, 0
      %p138 = por %p136, %p137
      %p139 = scmp.ne.s32.totalorder %s131, %s133
      %p140 = scmp.eq.s32.totalorder %s36, 1
      %p141 = por %p139, %p140
      %p142 = scmp.ne.s32.totalorder %s133, %s134
      %p143 = scmp.eq.s32.totalorder %s36, 0
      %p144 = por %p142, %p143
      %p145 = scmp.ne.s32.totalorder %s133, %s134
      %p146 = scmp.eq.s32.totalorder %s37, 1
      %p147 = por %p145, %p146
      %p149 = scmp.ne.s32.totalorder %s134, %s148
      %p150 = scmp.eq.s32.totalorder %s37, 0
      %p151 = por %p149, %p150
      %s153 = sadd.s32 %s152, 1
      %p156 = scmp.eq.s32.totalorder %s31, 1
      %p157 = scmp.ne.s32.totalorder %s152, %s154
      %p158 = scmp.eq.s32.totalorder %s31, 0
      %p159 = por %p157, %p158
      %p160 = scmp.ne.s32.totalorder %s152, %s154
      %p161 = scmp.eq.s32.totalorder %s36, 1
      %p162 = por %p160, %p161
      %p163 = scmp.ne.s32.totalorder %s154, %s155
      %p164 = scmp.eq.s32.totalorder %s36, 0
      %p165 = por %p163, %p164
      %p166 = scmp.ne.s32.totalorder %s154, %s155
      %p167 = scmp.eq.s32.totalorder %s37, 1
      %p168 = por %p166, %p167
      %p170 = scmp.ne.s32.totalorder %s155, %s169
      %p171 = scmp.eq.s32.totalorder %s37, 0
      %p172 = por %p170, %p171
      %s174 = sadd.s32 %s173, 1
      %p177 = scmp.eq.s32.totalorder %s31, 1
      %p178 = scmp.ne.s32.totalorder %s173, %s175
      %p179 = scmp.eq.s32.totalorder %s31, 0
      %p180 = por %p178, %p179
      %p181 = scmp.ne.s32.totalorder %s173, %s175
      %p182 = scmp.eq.s32.totalorder %s36, 1
      %p183 = por %p181, %p182
      %p184 = scmp.ne.s32.totalorder %s175, %s176
      %p185 = scmp.eq.s32.totalorder %s36, 0
      %p186 = por %p184, %p185
      %p187 = scmp.ne.s32.totalorder %s175, %s176
      %p188 = scmp.eq.s32.totalorder %s37, 1
      %p189 = por %p187, %p188
      %p191 = scmp.ne.s32.totalorder %s176, %s190
      %p192 = scmp.eq.s32.totalorder %s37, 0
      %p193 = por %p191, %p192
      %s195 = sadd.s32 %s194, 1
      %p198 = scmp.eq.s32.totalorder %s31, 1
      %p199 = scmp.ne.s32.totalorder %s194, %s196
      %p200 = scmp.eq.s32.totalorder %s31, 0
      %p201 = por %p199, %p200
      %p202 = scmp.ne.s32.totalorder %s194, %s196
      %p203 = scmp.eq.s32.totalorder %s36, 1
      %p204 = por %p202, %p203
      %p205 = scmp.ne.s32.totalorder %s196, %s197
      %p206 = scmp.eq.s32.totalorder %s36, 0
      %p207 = por %p205, %p206
      %p208 = scmp.ne.s32.totalorder %s196, %s197
      %p209 = scmp.eq.s32.totalorder %s37, 1
      %p210 = por %p208, %p209
      %p212 = scmp.ne.s32.totalorder %s197, %s211
      %p213 = scmp.eq.s32.totalorder %s37, 0
      %p214 = por %p212, %p213
      %s216 = sadd.s32 %s215, 1
      %p219 = scmp.eq.s32.totalorder %s31, 1
      %p220 = scmp.ne.s32.totalorder %s215, %s217
      %p221 = scmp.eq.s32.totalorder %s31, 0
      %p222 = por %p220, %p221
      %p223 = scmp.ne.s32.totalorder %s215, %s217
      %p224 = scmp.eq.s32.totalorder %s36, 1
      %p225 = por %p223, %p224
      %p226 = scmp.ne.s32.totalorder %s217, %s218
      %p227 = scmp.eq.s32.totalorder %s36, 0
      %p228 = por %p226, %p227
      %p229 = scmp.ne.s32.totalorder %s217, %s218
      %p230 = scmp.eq.s32.totalorder %s37, 1
      %p231 = por %p229, %p230
      %p233 = scmp.ne.s32.totalorder %s218, %s232
      %p234 = scmp.eq.s32.totalorder %s37, 0
      %p235 = por %p233, %p234
      %s237 = sadd.s32 %s236, 1
      %p240 = scmp.eq.s32.totalorder %s31, 1
      %p241 = scmp.ne.s32.totalorder %s236, %s238
      %p242 = scmp.eq.s32.totalorder %s31, 0
      %p243 = por %p241, %p242
      %p244 = scmp.ne.s32.totalorder %s236, %s238
      %p245 = scmp.eq.s32.totalorder %s36, 1
      %p246 = por %p244, %p245
      %p247 = scmp.ne.s32.totalorder %s238, %s239
      %p248 = scmp.eq.s32.totalorder %s36, 0
      %p249 = por %p247, %p248
      %p250 = scmp.ne.s32.totalorder %s238, %s239
      %p251 = scmp.eq.s32.totalorder %s37, 1
      %p252 = por %p250, %p251
      %p254 = scmp.ne.s32.totalorder %s239, %s253
      %p255 = scmp.eq.s32.totalorder %s37, 0
      %p256 = por %p254, %p255
      %s258 = sadd.s32 %s257, 1
      %p261 = scmp.eq.s32.totalorder %s31, 1
      %p262 = scmp.ne.s32.totalorder %s257, %s259
      %p263 = scmp.eq.s32.totalorder %s31, 0
      %p264 = por %p262, %p263
      %p265 = scmp.ne.s32.totalorder %s257, %s259
      %p266 = scmp.eq.s32.totalorder %s36, 1
      %p267 = por %p265, %p266
      %p268 = scmp.ne.s32.totalorder %s259, %s260
      %p269 = scmp.eq.s32.totalorder %s36, 0
      %p270 = por %p268, %p269
      %p271 = scmp.ne.s32.totalorder %s259, %s260
      %p272 = scmp.eq.s32.totalorder %s37, 1
      %p273 = por %p271, %p272
      %p275 = scmp.ne.s32.totalorder %s260, %s274
      %p276 = scmp.eq.s32.totalorder %s37, 0
      %p277 = por %p275, %p276
      %s279 = sadd.s32 %s278, 1
      %p282 = scmp.eq.s32.totalorder %s31, 1
      %p283 = scmp.ne.s32.totalorder %s278, %s280
      %p284 = scmp.eq.s32.totalorder %s31, 0
      %p285 = por %p283, %p284
      %p286 = scmp.ne.s32.totalorder %s278, %s280
      %p287 = scmp.eq.s32.totalorder %s36, 1
      %p288 = por %p286, %p287
      %p289 = scmp.ne.s32.totalorder %s280, %s281
      %p290 = scmp.eq.s32.totalorder %s36, 0
      %p291 = por %p289, %p290
      %p292 = scmp.ne.s32.totalorder %s280, %s281
      %p293 = scmp.eq.s32.totalorder %s37, 1
      %p294 = por %p292, %p293
      %p296 = scmp.ne.s32.totalorder %s281, %s295
      %p297 = scmp.eq.s32.totalorder %s37, 0
      %p298 = por %p296, %p297
      %s299 = ssub.s32 %s38, %s50
      %s300 = ssub.s32 %s39, %s46
      %s301 = sor.u32 %s299, %s300
      %p302 = scmp.eq.s32.totalorder %s301, 0
      %s304 = sadd.s32 %s303, 1
      %s305 = scalar_select %p302, %s303, %s304
      %p308 = pneg %p302
      %p309 = scmp.eq.s32.totalorder %s31, 1
      %p310 = por %p308, %p309
      %p311 = scmp.ne.s32.totalorder %s303, %s306
      %p312 = scmp.eq.s32.totalorder %s31, 0
      %p313 = por %p311, %p312
      %p314 = scmp.ne.s32.totalorder %s303, %s306
      %p315 = scmp.eq.s32.totalorder %s36, 1
      %p316 = por %p314, %p315
      %p317 = scmp.ne.s32.totalorder %s306, %s307
      %p318 = scmp.eq.s32.totalorder %s36, 0
      %p319 = por %p317, %p318
      %p320 = scmp.ne.s32.totalorder %s306, %s307
      %p321 = scmp.eq.s32.totalorder %s37, 1
      %p322 = por %p320, %p321
      %p324 = scmp.ne.s32.totalorder %s307, %s323
      %p325 = scmp.eq.s32.totalorder %s37, 0
      %p326 = por %p324, %p325
      %s327 = ssub.s32 %s38, %s50
      %s328 = ssub.s32 %s39, %s46
      %s329 = sor.u32 %s327, %s328
      %p330 = scmp.eq.s32.totalorder %s329, 0
      %s332 = sadd.s32 %s331, 1
      %s333 = scalar_select %p330, %s331, %s332
      %p336 = pneg %p330
      %p337 = scmp.eq.s32.totalorder %s31, 1
      %p338 = por %p336, %p337
      %p339 = scmp.ne.s32.totalorder %s331, %s334
      %p340 = scmp.eq.s32.totalorder %s31, 0
      %p341 = por %p339, %p340
      %p342 = scmp.ne.s32.totalorder %s331, %s334
      %p343 = scmp.eq.s32.totalorder %s36, 1
      %p344 = por %p342, %p343
      %p345 = scmp.ne.s32.totalorder %s334, %s335
      %p346 = scmp.eq.s32.totalorder %s36, 0
      %p347 = por %p345, %p346
      %p348 = scmp.ne.s32.totalorder %s334, %s335
      %p349 = scmp.eq.s32.totalorder %s37, 1
      %p350 = por %p348, %p349
      %p352 = scmp.ne.s32.totalorder %s335, %s351
      %p353 = scmp.eq.s32.totalorder %s37, 0
      %p354 = por %p352, %p353
      %p355 = scmp.le.s32.totalorder 1, %s31
      %p356 = scmp.lt.s32.totalorder %s31, 3
      %p357 = pnand %p355, %p356
      %p358 = pneg %p357
      // Predicated region
      $region9: #{tpu_custom_call.1} parent=5 // pred_check
        _
      $region10: #{tpu_custom_call.1} parent=5 // pred_check_branch
        %360 = sbr.rel (%p357) target = $region12
      $region11: #{tpu_custom_call.1} parent=5 // pred_region
        %s361 = ssub.s32 %s31, 1
        // Predicated region
        $region13: #{tpu_custom_call.1} parent=11 // pred_check
          %p362 = pneg %p97
        $region14: #{tpu_custom_call.1} parent=11 // pred_check_branch
          %364 = sbr.rel (%p362) target = $region16
        $region15: #{tpu_custom_call.1} parent=11 // pred_region
          %366 = vsyncadd [#allocation9], 0
          %s367 = smul.addr %s40, 8
          %s368 = scalar_lea.hbm %s1, %s367
          %s370 = sshll.u32 %s368, 4
          %s371 = int_to_ptr.hbm [resolvable:$true] %s370
          %s372 = sshll.u32 [#allocation8], 4
          %s373 = int_to_ptr.vmem [resolvable:$true] %s372
          %375 = dma.hbm_to_vmem [thread:$0]  %s371, 128, %s373, [#allocation9]
        $region16: #{tpu_custom_call.1} parent=11 // pred_fallthru
          _
        // Predicated region
        $region17: #{tpu_custom_call.1} parent=11 // pred_check
          %p376 = pneg %p123
        $region18: #{tpu_custom_call.1} parent=11 // pred_check_branch
          %378 = sbr.rel (%p376) target = $region20
        $region19: #{tpu_custom_call.1} parent=11 // pred_region
          %380 = vsyncadd [#allocation9], 0
          %s381 = smul.addr %s40, 8
          %s382 = scalar_lea.hbm %s2, %s381
          %s384 = sshll.u32 %s382, 4
          %s385 = int_to_ptr.hbm [resolvable:$true] %s384
          %s386 = sshll.u32 [#allocation10], 4
          %s387 = int_to_ptr.vmem [resolvable:$true] %s386
          %389 = dma.hbm_to_vmem [thread:$0]  %s385, 128, %s387, [#allocation9]
        $region20: #{tpu_custom_call.1} parent=11 // pred_fallthru
          _
        // Predicated region
        $region21: #{tpu_custom_call.1} parent=11 // pred_check
          %p390 = pneg %p144
        $region22: #{tpu_custom_call.1} parent=11 // pred_check_branch
          %392 = sbr.rel (%p390) target = $region24
        $region23: #{tpu_custom_call.1} parent=11 // pred_region
          %394 = vsyncadd [#allocation12], 0
          %s395 = sshll.u32 %s3, 4
          %s396 = int_to_ptr.hbm [resolvable:$true] %s395
          %s397 = sshll.u32 [#allocation11], 4
          %s398 = int_to_ptr.vmem [resolvable:$true] %s397
          %403 = dma.hbm_to_vmem [thread:$0]  %s396, 512, %s398, [#allocation12], 128, 128, 8
        $region24: #{tpu_custom_call.1} parent=11 // pred_fallthru
          _
        // Predicated region
        $region25: #{tpu_custom_call.1} parent=11 // pred_check
          %p404 = pneg %p165
        $region26: #{tpu_custom_call.1} parent=11 // pred_check_branch
          %406 = sbr.rel (%p404) target = $region28
        $region27: #{tpu_custom_call.1} parent=11 // pred_region
          _
        $region28: #{tpu_custom_call.1} parent=11 // pred_fallthru
          _
        // Predicated region
        $region29: #{tpu_custom_call.1} parent=11 // pred_check
          %p407 = pneg %p186
        $region30: #{tpu_custom_call.1} parent=11 // pred_check_branch
          %409 = sbr.rel (%p407) target = $region32
        $region31: #{tpu_custom_call.1} parent=11 // pred_region
          %411 = vsyncadd [#allocation12], 0
          %s412 = sshll.u32 %s5, 4
          %s413 = int_to_ptr.hbm [resolvable:$true] %s412
          %s414 = sshll.u32 [#allocation13], 4
          %s415 = int_to_ptr.vmem [resolvable:$true] %s414
          %420 = dma.hbm_to_vmem [thread:$0]  %s413, 512, %s415, [#allocation12], 128, 128, 8
        $region32: #{tpu_custom_call.1} parent=11 // pred_fallthru
          _
        // Predicated region
        $region33: #{tpu_custom_call.1} parent=11 // pred_check
          %p421 = pneg %p207
        $region34: #{tpu_custom_call.1} parent=11 // pred_check_branch
          %423 = sbr.rel (%p421) target = $region36
        $region35: #{tpu_custom_call.1} parent=11 // pred_region
          _
        $region36: #{tpu_custom_call.1} parent=11 // pred_fallthru
          _
        // Predicated region
        $region37: #{tpu_custom_call.1} parent=11 // pred_check
          %p424 = pneg %p228
        $region38: #{tpu_custom_call.1} parent=11 // pred_check_branch
          %426 = sbr.rel (%p424) target = $region40
        $region39: #{tpu_custom_call.1} parent=11 // pred_region
          %428 = vsyncadd [#allocation15], 0
          %s429 = sshll.u32 %s7, 4
          %s430 = int_to_ptr.hbm [resolvable:$true] %s429
          %s431 = sshll.u32 [#allocation14], 4
          %s432 = int_to_ptr.vmem [resolvable:$true] %s431
          %437 = dma.hbm_to_vmem [thread:$0]  %s430, 512, %s432, [#allocation15], 128, 128, 8
        $region40: #{tpu_custom_call.1} parent=11 // pred_fallthru
          _
        // Predicated region
        $region41: #{tpu_custom_call.1} parent=11 // pred_check
          %p438 = pneg %p249
        $region42: #{tpu_custom_call.1} parent=11 // pred_check_branch
          %440 = sbr.rel (%p438) target = $region44
        $region43: #{tpu_custom_call.1} parent=11 // pred_region
          _
        $region44: #{tpu_custom_call.1} parent=11 // pred_fallthru
          _
        // Predicated region
        $region45: #{tpu_custom_call.1} parent=11 // pred_check
          %p441 = pneg %p270
        $region46: #{tpu_custom_call.1} parent=11 // pred_check_branch
          %443 = sbr.rel (%p441) target = $region48
        $region47: #{tpu_custom_call.1} parent=11 // pred_region
          %445 = vsyncadd [#allocation15], 0
          %s446 = sshll.u32 %s9, 4
          %s447 = int_to_ptr.hbm [resolvable:$true] %s446
          %s448 = sshll.u32 [#allocation16], 4
          %s449 = int_to_ptr.vmem [resolvable:$true] %s448
          %454 = dma.hbm_to_vmem [thread:$0]  %s447, 512, %s449, [#allocation15], 128, 128, 8
        $region48: #{tpu_custom_call.1} parent=11 // pred_fallthru
          _
        // Predicated region
        $region49: #{tpu_custom_call.1} parent=11 // pred_check
          %p455 = pneg %p291
        $region50: #{tpu_custom_call.1} parent=11 // pred_check_branch
          %457 = sbr.rel (%p455) target = $region52
        $region51: #{tpu_custom_call.1} parent=11 // pred_region
          _
        $region52: #{tpu_custom_call.1} parent=11 // pred_fallthru
          _
      $region12: #{tpu_custom_call.1} parent=5 // pred_fallthru
        _
      %p458 = scmp.lt.s32.totalorder %s31, 2
      // Predicated region
      $region53: #{tpu_custom_call.1} parent=5 // pred_check
        %p459 = pneg %p458
      $region54: #{tpu_custom_call.1} parent=5 // pred_check_branch
        %461 = sbr.rel (%p459) target = $region56
      $region55: #{tpu_custom_call.1} parent=5 // pred_region
        // Predicated region
        $region57: #{tpu_custom_call.1} parent=55 // pred_check
          %p462 = pneg %p65
        $region58: #{tpu_custom_call.1} parent=55 // pred_check_branch
          %464 = sbr.rel (%p462) target = $region60
        $region59: #{tpu_custom_call.1} parent=55 // pred_region
          %s465 = sand.u32 %s55, 1
          %s466 = scalar_lea.sflag [#allocation6], %s465
          %s467 = sand.u32 %s55, 1
          %s468 = smul.addr %s467, 8
          %s469 = scalar_lea.vmem [#allocation5], %s468
          %471 = vsyncadd %s466, 0
          %s472 = sadd.s32 %s39, %s38
          %s473 = smul.addr %s472, 8
          %s474 = scalar_lea.hbm %s0, %s473
          %s476 = sshll.u32 %s474, 4
          %s477 = int_to_ptr.hbm [resolvable:$true] %s476
          %s478 = sshll.u32 %s469, 4
          %s479 = int_to_ptr.vmem [resolvable:$true] %s478
          %481 = dma.hbm_to_vmem [thread:$0]  %s477, 128, %s479, %s466
        $region60: #{tpu_custom_call.1} parent=55 // pred_fallthru
          _
      $region56: #{tpu_custom_call.1} parent=5 // pred_fallthru
        _
      %p482 = scmp.le.s32.totalorder 1, %s31
      %p483 = scmp.lt.s32.totalorder %s31, 3
      %p484 = pnand %p482, %p483
      %p485 = pneg %p484
      // Predicated region
      $region61: #{tpu_custom_call.1} parent=5 // pred_check
        _
      $region62: #{tpu_custom_call.1} parent=5 // pred_check_branch
        %487 = sbr.rel (%p484) target = $region64
      $region63: #{tpu_custom_call.1} parent=5 // pred_region
        %s488 = ssub.s32 %s31, 1
        %s489 = sand.u32 %s58, 1
        %s490 = scalar_lea.sflag [#allocation6], %s489
        %s491 = sand.u32 %s58, 1
        %s492 = smul.addr %s491, 8
        %s493 = scalar_lea.vmem [#allocation5], %s492
        // Predicated region
        $region65: #{tpu_custom_call.1} parent=63 // pred_check
          %p494 = pneg %p71
        $region66: #{tpu_custom_call.1} parent=63 // pred_check_branch
          %496 = sbr.rel (%p494) target = $region68
        $region67: #{tpu_custom_call.1} parent=63 // pred_region
          %498 = dma.done %s490, 128
        $region68: #{tpu_custom_call.1} parent=63 // pred_fallthru
          _
        // Predicated region
        $region69: #{tpu_custom_call.1} parent=63 // pred_check
          %p499 = pneg %p97
        $region70: #{tpu_custom_call.1} parent=63 // pred_check_branch
          %501 = sbr.rel (%p499) target = $region72
        $region71: #{tpu_custom_call.1} parent=63 // pred_region
          %503 = dma.done [#allocation9], 128
        $region72: #{tpu_custom_call.1} parent=63 // pred_fallthru
          _
        // Predicated region
        $region73: #{tpu_custom_call.1} parent=63 // pred_check
          %p504 = pneg %p123
        $region74: #{tpu_custom_call.1} parent=63 // pred_check_branch
          %506 = sbr.rel (%p504) target = $region76
        $region75: #{tpu_custom_call.1} parent=63 // pred_region
          %508 = dma.done [#allocation9], 128
        $region76: #{tpu_custom_call.1} parent=63 // pred_fallthru
          _
        // Predicated region
        $region77: #{tpu_custom_call.1} parent=63 // pred_check
          %p509 = pneg %p144
        $region78: #{tpu_custom_call.1} parent=63 // pred_check_branch
          %511 = sbr.rel (%p509) target = $region80
        $region79: #{tpu_custom_call.1} parent=63 // pred_region
          %513 = dma.done [#allocation12], 512
        $region80: #{tpu_custom_call.1} parent=63 // pred_fallthru
          _
        // Predicated region
        $region81: #{tpu_custom_call.1} parent=63 // pred_check
          %p514 = pneg %p186
        $region82: #{tpu_custom_call.1} parent=63 // pred_check_branch
          %516 = sbr.rel (%p514) target = $region84
        $region83: #{tpu_custom_call.1} parent=63 // pred_region
          %518 = dma.done [#allocation12], 512
        $region84: #{tpu_custom_call.1} parent=63 // pred_fallthru
          _
        // Predicated region
        $region85: #{tpu_custom_call.1} parent=63 // pred_check
          %p519 = pneg %p228
        $region86: #{tpu_custom_call.1} parent=63 // pred_check_branch
          %521 = sbr.rel (%p519) target = $region88
        $region87: #{tpu_custom_call.1} parent=63 // pred_region
          %523 = dma.done [#allocation15], 512
        $region88: #{tpu_custom_call.1} parent=63 // pred_fallthru
          _
        // Predicated region
        $region89: #{tpu_custom_call.1} parent=63 // pred_check
          %p524 = pneg %p270
        $region90: #{tpu_custom_call.1} parent=63 // pred_check_branch
          %526 = sbr.rel (%p524) target = $region92
        $region91: #{tpu_custom_call.1} parent=63 // pred_region
          %528 = dma.done [#allocation15], 512
        $region92: #{tpu_custom_call.1} parent=63 // pred_fallthru
          _
        %s529 = sand.u32 %s58, 1
        %s530 = scalar_lea.sflag [#allocation6], %s529
        %s531 = sand.u32 %s58, 1
        %s532 = smul.addr %s531, 8
        %s533 = scalar_lea.vmem [#allocation5], %s532
        %p534 = pneg %p71
        %p535 = pneg %p68
        %p536 = pneg %p97
        %p537 = pneg %p94
        %p538 = pneg %p123
        %p539 = pneg %p120
        %p540 = pneg %p144
        %p541 = pneg %p141
        %p542 = pneg %p165
        %p543 = pneg %p162
        %p544 = pneg %p186
        %p545 = pneg %p183
        %p546 = pneg %p207
        %p547 = pneg %p204
        %p548 = pneg %p228
        %p549 = pneg %p225
        %p550 = pneg %p249
        %p551 = pneg %p246
        %p552 = pneg %p270
        %p553 = pneg %p267
        %p554 = pneg %p291
        %p555 = pneg %p288
        %p556 = pneg %p319
        %p557 = pneg %p316
        %s558 = sand.u32 %s306, 1
        %s559 = scalar_lea.sflag [#allocation7], %s558
        %s560 = sand.u32 %s306, 1
        %s561 = smul.addr %s560, 8
        %s562 = scalar_lea.vmem [#allocation17], %s561
        %p563 = pneg %p347
        %p564 = pneg %p344
        %s565 = sand.u32 %s334, 1
        %s566 = scalar_lea.sflag [#allocation19], %s565
        %s567 = sand.u32 %s334, 1
        %s568 = smul.addr %s567, 32
        %s569 = scalar_lea.vmem [#allocation18], %s568
        %p570 = scmp.eq.s32.totalorder %s41, 0
        // Predicated region
        $region93: #{tpu_custom_call.1} parent=63 // pred_check
          %p571 = pneg %p570
        $region94: #{tpu_custom_call.1} parent=63 // pred_check_branch
          %573 = sbr.rel (%p571) target = $region96
        $region95: #{tpu_custom_call.1} parent=63 // pred_region
          %v574 = vld [vmem:[#allocation8] sm:$0xff]
          %v575 = vld [vmem:[#allocation13] sm:$0xff]
          %v576 = vld [vmem:[#allocation13 + $0x8] sm:$0xff]
          %v577 = vld [vmem:[#allocation13 + $0x10] sm:$0xff]
          %v578 = vld [vmem:[#allocation13 + $0x18] sm:$0xff]
          %v579 = vld [vmem:[%s6] sm:$0x1]
          %v581 = vperm.slane %v579, 0
          %vm583 = vcmask 261120
          %v585 = vsel %vm583, %v574, 0
          %587 = vmatpush.msra.mxu0 0.0
          %588 = vmatpush.msra.mxu0 0.0
          %589 = vmatpush.msra.mxu0 0.0
          %590 = vmatpush.msra.mxu0 0.0
          %591 = vmatpush.msra.mxu0 0.0
          %592 = vmatpush.msra.mxu0 0.0
          %593 = vmatpush.msra.mxu0 0.0
          %594 = vmatpush.msra.mxu0 0.0
          %595 = vmatpush.msra.mxu0 0.0
          %596 = vmatpush.msra.mxu0 0.0
          %597 = vmatpush.msra.mxu0 0.0
          %598 = vmatpush.msra.mxu0 0.0
          %599 = vmatpush.msra.mxu0 %v578
          %600 = vmatpush.msra.mxu0 %v577
          %601 = vmatpush.msra.mxu0 %v576
          %602 = vmatpush.msra.mxu0 %v575
          %603 = vmatmul.f32.gmra.mxu0 %v585
          %v604 = vpop.f32.mrf.mxu0
          %v605 = vadd.f32 %v581, %v604
          %606 = vdwg.mxu0
          %v607 = vld [vmem:[#allocation10] sm:$0xff]
          %v608 = vld [vmem:[#allocation14] sm:$0xff]
          %v609 = vld [vmem:[#allocation14 + $0x8] sm:$0xff]
          %v610 = vld [vmem:[#allocation14 + $0x10] sm:$0xff]
          %v611 = vld [vmem:[#allocation14 + $0x18] sm:$0xff]
          %v612 = vld [vmem:[%s8] sm:$0x1]
          %v614 = vperm.slane %v612, 0
          %v617 = vsel %vm583, %v607, 0
          %619 = vmatpush.msra.mxu0 0.0
          %620 = vmatpush.msra.mxu0 0.0
          %621 = vmatpush.msra.mxu0 0.0
          %622 = vmatpush.msra.mxu0 0.0
          %623 = vmatpush.msra.mxu0 0.0
          %624 = vmatpush.msra.mxu0 0.0
          %625 = vmatpush.msra.mxu0 0.0
          %626 = vmatpush.msra.mxu0 0.0
          %627 = vmatpush.msra.mxu0 0.0
          %628 = vmatpush.msra.mxu0 0.0
          %629 = vmatpush.msra.mxu0 0.0
          %630 = vmatpush.msra.mxu0 0.0
          %631 = vmatpush.msra.mxu0 %v611
          %632 = vmatpush.msra.mxu0 %v610
          %633 = vmatpush.msra.mxu0 %v609
          %634 = vmatpush.msra.mxu0 %v608
          %635 = vmatmul.f32.gmra.mxu0 %v617
          %v636 = vpop.f32.mrf.mxu0
          %v637 = vadd.f32 %v614, %v636
          %638 = vdwg.mxu0
          %639 = vst.msk [vmem:[#allocation2] sm:$0xff] %vm583, %v605
          %640 = vst.msk [vmem:[#allocation3] sm:$0xff] %vm583, %v637
        $region96: #{tpu_custom_call.1} parent=63 // pred_fallthru
          _
        %v641 = vld [vmem:[%s493] sm:$0xff]
        %v642 = vld [vmem:[#allocation11] sm:$0xff]
        %v643 = vld [vmem:[#allocation11 + $0x8] sm:$0xff]
        %v644 = vld [vmem:[#allocation11 + $0x10] sm:$0xff]
        %v645 = vld [vmem:[#allocation11 + $0x18] sm:$0xff]
        %v646 = vld [vmem:[%s4] sm:$0x1]
        %v648 = vperm.slane %v646, 0
        %vm650 = vcmask 261120
        %v652 = vsel %vm650, %v641, 0
        %654 = vmatpush.msra.mxu0 0.0
        %655 = vmatpush.msra.mxu0 0.0
        %656 = vmatpush.msra.mxu0 0.0
        %657 = vmatpush.msra.mxu0 0.0
        %658 = vmatpush.msra.mxu0 0.0
        %659 = vmatpush.msra.mxu0 0.0
        %660 = vmatpush.msra.mxu0 0.0
        %661 = vmatpush.msra.mxu0 0.0
        %662 = vmatpush.msra.mxu0 0.0
        %663 = vmatpush.msra.mxu0 0.0
        %664 = vmatpush.msra.mxu0 0.0
        %665 = vmatpush.msra.mxu0 0.0
        %666 = vmatpush.msra.mxu0 %v645
        %667 = vmatpush.msra.mxu0 %v644
        %668 = vmatpush.msra.mxu0 %v643
        %669 = vmatpush.msra.mxu0 %v642
        %670 = vmatmul.f32.gmra.mxu0 %v652
        %v671 = vpop.f32.mrf.mxu0
        %v672 = vadd.f32 %v648, %v671
        %673 = vdwg.mxu0
        %v674 = vmul.f32 %v672, 0.35355338
        %v675 = vld [vmem:[#allocation2] sm:$0xff]
        %v676 = vld [vmem:[#allocation3] sm:$0xff]
        %vm677 = vcmask 64512
        %v679 = vsel %vm677, %v674, 0
        %v682 = vsel %vm677, %v675, 0
        %684 = vmatpush.xpose.msra.mxu0 0.0
        %685 = vmatpush.xpose.msra.mxu0 0.0
        %686 = vmatpush.xpose.msra.mxu0 0.0
        %687 = vmatpush.xpose.msra.mxu0 0.0
        %688 = vmatpush.xpose.msra.mxu0 0.0
        %689 = vmatpush.xpose.msra.mxu0 0.0
        %690 = vmatpush.xpose.msra.mxu0 0.0
        %691 = vmatpush.xpose.msra.mxu0 0.0
        %692 = vmatpush.xpose.msra.mxu0 0.0
        %693 = vmatpush.xpose.msra.mxu0 0.0
        %694 = vmatpush.xpose.msra.mxu0 0.0
        %695 = vmatpush.xpose.msra.mxu0 0.0
        %696 = vmatpush.xpose.msra.mxu0 0.0
        %697 = vmatpush.xpose.msra.mxu0 0.0
        %698 = vmatpush.xpose.msra.mxu0 0.0
        %699 = vmatpush.xpose.msra.mxu0 %v682
        %700 = vmatmul.f32.gmra.mxu0 %v679
        %v701 = vpop.f32.mrf.mxu0
        %v702 = vadd.f32 0.0, %v701
        %703 = vdwg.mxu0
        %v704 = vsel %vm677, %v702, -inf
        %705 = vmax.xlane.f32.xlu0 %v704
        %v706 = vpop.xlane.xlu0 %705
        %v707 = vsub.f32 %v702, %v706
        %v708 = vmul.f32 %v707, 1.442695
        %v709 = vpow.pop %v708
        %v710 = vsel %vm677, %v709, 0.0
        %711 = vadd.xlane.f32.xlu0 %v710
        %v712 = vpop.xlane.xlu0 %711
        %v713 = vrcp.pop %v712
        %v714 = vmul.f32 %v712, %v713
        %v715 = vsub.f32 1.0, %v714
        %v716 = vmul.f32 %v713, %v715
        %v717 = vadd.f32 %v713, %v716
        %vm718 = vweird.f32 %v712
        %vm719 = vweird.f32 %v713
        %vm720 = vmor %vm718, %vm719
        %v721 = vsel %vm720, %v713, %v717
        %v722 = vand.u32 2147483647, %v712
        %vm723 = vcmp.eq.f32.partialorder %v722, 8.507059e+37
        %v724 = vand.u32 %v712, 2147483648
        %v725 = vor.u32 1.1754944e-38, %v724
        %v726 = vsel %vm723, %v725, %v721
        %v727 = vmul.f32 %v709, %v726
        %728 = vst.msk [vmem:[%s569] sm:$0xff] %vm677, %v727
        %v730 = vsel %vm677, %v727, 0
        %732 = vmatpush.msra.mxu0 0.0
        %733 = vmatpush.msra.mxu0 0.0
        %734 = vmatpush.msra.mxu0 0.0
        %735 = vmatpush.msra.mxu0 0.0
        %736 = vmatpush.msra.mxu0 0.0
        %737 = vmatpush.msra.mxu0 0.0
        %738 = vmatpush.msra.mxu0 0.0
        %739 = vmatpush.msra.mxu0 0.0
        %740 = vmatpush.msra.mxu0 0.0
        %741 = vmatpush.msra.mxu0 0.0
        %742 = vmatpush.msra.mxu0 0.0
        %743 = vmatpush.msra.mxu0 0.0
        %744 = vmatpush.msra.mxu0 0.0
        %745 = vmatpush.msra.mxu0 0.0
        %746 = vmatpush.msra.mxu0 0.0
        %747 = vmatpush.msra.mxu0 %v676
        %748 = vmatmul.f32.gmra.mxu0 %v730
        %v749 = vpop.f32.mrf.mxu0
        %v750 = vadd.f32 0.0, %v749
        %751 = vdwg.mxu0
        %752 = vst.msk [vmem:[#allocation4] sm:$0xff] %vm677, %v750
        %753 = vrot.lane.b32.xlu0 %v674, 120
        %v754 = vpop.permute.xlu0 %753
        %755 = vrot.lane.b32.xlu0 %v675, 120
        %v756 = vpop.permute.xlu0 %755
        %v757 = vsel %vm677, %v754, 0
        %v759 = vsel %vm677, %v756, 0
        %761 = vmatpush.xpose.msra.mxu0 0.0
        %762 = vmatpush.xpose.msra.mxu0 0.0
        %763 = vmatpush.xpose.msra.mxu0 0.0
        %764 = vmatpush.xpose.msra.mxu0 0.0
        %765 = vmatpush.xpose.msra.mxu0 0.0
        %766 = vmatpush.xpose.msra.mxu0 0.0
        %767 = vmatpush.xpose.msra.mxu0 0.0
        %768 = vmatpush.xpose.msra.mxu0 0.0
        %769 = vmatpush.xpose.msra.mxu0 0.0
        %770 = vmatpush.xpose.msra.mxu0 0.0
        %771 = vmatpush.xpose.msra.mxu0 0.0
        %772 = vmatpush.xpose.msra.mxu0 0.0
        %773 = vmatpush.xpose.msra.mxu0 0.0
        %774 = vmatpush.xpose.msra.mxu0 0.0
        %775 = vmatpush.xpose.msra.mxu0 0.0
        %776 = vmatpush.xpose.msra.mxu0 %v759
        %777 = vmatmul.f32.gmra.mxu0 %v757
        %v778 = vpop.f32.mrf.mxu0
        %v779 = vadd.f32 0.0, %v778
        %780 = vdwg.mxu0
        %v781 = vsel %vm677, %v779, -inf
        %782 = vmax.xlane.f32.xlu0 %v781
        %v783 = vpop.xlane.xlu0 %782
        %v784 = vsub.f32 %v779, %v783
        %v785 = vmul.f32 %v784, 1.442695
        %v786 = vpow.pop %v785
        %v787 = vsel %vm677, %v786, 0.0
        %788 = vadd.xlane.f32.xlu0 %v787
        %v789 = vpop.xlane.xlu0 %788
        %v790 = vrcp.pop %v789
        %v791 = vmul.f32 %v789, %v790
        %v792 = vsub.f32 1.0, %v791
        %v793 = vmul.f32 %v790, %v792
        %v794 = vadd.f32 %v790, %v793
        %vm795 = vweird.f32 %v789
        %vm796 = vweird.f32 %v790
        %vm797 = vmor %vm795, %vm796
        %v798 = vsel %vm797, %v790, %v794
        %v799 = vand.u32 2147483647, %v789
        %vm800 = vcmp.eq.f32.partialorder %v799, 8.507059e+37
        %v801 = vand.u32 %v789, 2147483648
        %v802 = vor.u32 1.1754944e-38, %v801
        %v803 = vsel %vm800, %v802, %v798
        %v804 = vmul.f32 %v786, %v803
        %s805 = scalar_lea.vmem %s569, 8 [#allocation18]
        %806 = vst.msk [vmem:[%s805] sm:$0xff] %vm677, %v804
        %808 = vrot.lane.b32.xlu0 %v676, 120
        %v809 = vpop.permute.xlu0 %808
        %v812 = vsel %vm677, %v804, 0
        %814 = vmatpush.msra.mxu0 0.0
        %815 = vmatpush.msra.mxu0 0.0
        %816 = vmatpush.msra.mxu0 0.0
        %817 = vmatpush.msra.mxu0 0.0
        %818 = vmatpush.msra.mxu0 0.0
        %819 = vmatpush.msra.mxu0 0.0
        %820 = vmatpush.msra.mxu0 0.0
        %821 = vmatpush.msra.mxu0 0.0
        %822 = vmatpush.msra.mxu0 0.0
        %823 = vmatpush.msra.mxu0 0.0
        %824 = vmatpush.msra.mxu0 0.0
        %825 = vmatpush.msra.mxu0 0.0
        %826 = vmatpush.msra.mxu0 0.0
        %827 = vmatpush.msra.mxu0 0.0
        %828 = vmatpush.msra.mxu0 0.0
        %829 = vmatpush.msra.mxu0 %v809
        %830 = vmatmul.f32.gmra.mxu0 %v812
        %v831 = vpop.f32.mrf.mxu0
        %v832 = vadd.f32 0.0, %v831
        %833 = vdwg.mxu0
        %835 = vrot.lane.b32.xlu0 %v832, 8
        %v836 = vpop.permute.xlu0 %835
        %vm838 = vcmask 130112
        %839 = vst.msk [vmem:[#allocation4] sm:$0xff] %vm838, %v836
        %840 = vrot.lane.b32.xlu0 %v674, 112
        %v841 = vpop.permute.xlu0 %840
        %842 = vrot.lane.b32.xlu0 %v675, 112
        %v843 = vpop.permute.xlu0 %842
        %v844 = vsel %vm677, %v841, 0
        %v846 = vsel %vm677, %v843, 0
        %848 = vmatpush.xpose.msra.mxu0 0.0
        %849 = vmatpush.xpose.msra.mxu0 0.0
        %850 = vmatpush.xpose.msra.mxu0 0.0
        %851 = vmatpush.xpose.msra.mxu0 0.0
        %852 = vmatpush.xpose.msra.mxu0 0.0
        %853 = vmatpush.xpose.msra.mxu0 0.0
        %854 = vmatpush.xpose.msra.mxu0 0.0
        %855 = vmatpush.xpose.msra.mxu0 0.0
        %856 = vmatpush.xpose.msra.mxu0 0.0
        %857 = vmatpush.xpose.msra.mxu0 0.0
        %858 = vmatpush.xpose.msra.mxu0 0.0
        %859 = vmatpush.xpose.msra.mxu0 0.0
        %860 = vmatpush.xpose.msra.mxu0 0.0
        %861 = vmatpush.xpose.msra.mxu0 0.0
        %862 = vmatpush.xpose.msra.mxu0 0.0
        %863 = vmatpush.xpose.msra.mxu0 %v846
        %864 = vmatmul.f32.gmra.mxu0 %v844
        %v865 = vpop.f32.mrf.mxu0
        %v866 = vadd.f32 0.0, %v865
        %867 = vdwg.mxu0
        %v868 = vsel %vm677, %v866, -inf
        %869 = vmax.xlane.f32.xlu0 %v868
        %v870 = vpop.xlane.xlu0 %869
        %v871 = vsub.f32 %v866, %v870
        %v872 = vmul.f32 %v871, 1.442695
        %v873 = vpow.pop %v872
        %v874 = vsel %vm677, %v873, 0.0
        %875 = vadd.xlane.f32.xlu0 %v874
        %v876 = vpop.xlane.xlu0 %875
        %v877 = vrcp.pop %v876
        %v878 = vmul.f32 %v876, %v877
        %v879 = vsub.f32 1.0, %v878
        %v880 = vmul.f32 %v877, %v879
        %v881 = vadd.f32 %v877, %v880
        %vm882 = vweird.f32 %v876
        %vm883 = vweird.f32 %v877
        %vm884 = vmor %vm882, %vm883
        %v885 = vsel %vm884, %v877, %v881
        %v886 = vand.u32 2147483647, %v876
        %vm887 = vcmp.eq.f32.partialorder %v886, 8.507059e+37
        %v888 = vand.u32 %v876, 2147483648
        %v889 = vor.u32 1.1754944e-38, %v888
        %v890 = vsel %vm887, %v889, %v885
        %v891 = vmul.f32 %v873, %v890
        %s892 = scalar_lea.vmem %s569, 16 [#allocation18]
        %893 = vst.msk [vmem:[%s892] sm:$0xff] %vm677, %v891
        %894 = vrot.lane.b32.xlu0 %v676, 112
        %v895 = vpop.permute.xlu0 %894
        %v898 = vsel %vm677, %v891, 0
        %900 = vmatpush.msra.mxu0 0.0
        %901 = vmatpush.msra.mxu0 0.0
        %902 = vmatpush.msra.mxu0 0.0
        %903 = vmatpush.msra.mxu0 0.0
        %904 = vmatpush.msra.mxu0 0.0
        %905 = vmatpush.msra.mxu0 0.0
        %906 = vmatpush.msra.mxu0 0.0
        %907 = vmatpush.msra.mxu0 0.0
        %908 = vmatpush.msra.mxu0 0.0
        %909 = vmatpush.msra.mxu0 0.0
        %910 = vmatpush.msra.mxu0 0.0
        %911 = vmatpush.msra.mxu0 0.0
        %912 = vmatpush.msra.mxu0 0.0
        %913 = vmatpush.msra.mxu0 0.0
        %914 = vmatpush.msra.mxu0 0.0
        %915 = vmatpush.msra.mxu0 %v895
        %916 = vmatmul.f32.gmra.mxu0 %v898
        %v917 = vpop.f32.mrf.mxu0
        %v918 = vadd.f32 0.0, %v917
        %919 = vdwg.mxu0
        %921 = vrot.lane.b32.xlu0 %v918, 16
        %v922 = vpop.permute.xlu0 %921
        %vm924 = vcmask 195712
        %925 = vst.msk [vmem:[#allocation4] sm:$0xff] %vm924, %v922
        %926 = vrot.lane.b32.xlu0 %v674, 104
        %v927 = vpop.permute.xlu0 %926
        %928 = vrot.lane.b32.xlu0 %v675, 104
        %v929 = vpop.permute.xlu0 %928
        %v930 = vsel %vm677, %v927, 0
        %v932 = vsel %vm677, %v929, 0
        %934 = vmatpush.xpose.msra.mxu0 0.0
        %935 = vmatpush.xpose.msra.mxu0 0.0
        %936 = vmatpush.xpose.msra.mxu0 0.0
        %937 = vmatpush.xpose.msra.mxu0 0.0
        %938 = vmatpush.xpose.msra.mxu0 0.0
        %939 = vmatpush.xpose.msra.mxu0 0.0
        %940 = vmatpush.xpose.msra.mxu0 0.0
        %941 = vmatpush.xpose.msra.mxu0 0.0
        %942 = vmatpush.xpose.msra.mxu0 0.0
        %943 = vmatpush.xpose.msra.mxu0 0.0
        %944 = vmatpush.xpose.msra.mxu0 0.0
        %945 = vmatpush.xpose.msra.mxu0 0.0
        %946 = vmatpush.xpose.msra.mxu0 0.0
        %947 = vmatpush.xpose.msra.mxu0 0.0
        %948 = vmatpush.xpose.msra.mxu0 0.0
        %949 = vmatpush.xpose.msra.mxu0 %v932
        %950 = vmatmul.f32.gmra.mxu0 %v930
        %v951 = vpop.f32.mrf.mxu0
        %v952 = vadd.f32 0.0, %v951
        %953 = vdwg.mxu0
        %v954 = vsel %vm677, %v952, -inf
        %955 = vmax.xlane.f32.xlu0 %v954
        %v956 = vpop.xlane.xlu0 %955
        %v957 = vsub.f32 %v952, %v956
        %v958 = vmul.f32 %v957, 1.442695
        %v959 = vpow.pop %v958
        %v960 = vsel %vm677, %v959, 0.0
        %961 = vadd.xlane.f32.xlu0 %v960
        %v962 = vpop.xlane.xlu0 %961
        %v963 = vrcp.pop %v962
        %v964 = vmul.f32 %v962, %v963
        %v965 = vsub.f32 1.0, %v964
        %v966 = vmul.f32 %v963, %v965
        %v967 = vadd.f32 %v963, %v966
        %vm968 = vweird.f32 %v962
        %vm969 = vweird.f32 %v963
        %vm970 = vmor %vm968, %vm969
        %v971 = vsel %vm970, %v963, %v967
        %v972 = vand.u32 2147483647, %v962
        %vm973 = vcmp.eq.f32.partialorder %v972, 8.507059e+37
        %v974 = vand.u32 %v962, 2147483648
        %v975 = vor.u32 1.1754944e-38, %v974
        %v976 = vsel %vm973, %v975, %v971
        %v977 = vmul.f32 %v959, %v976
        %s978 = scalar_lea.vmem %s569, 24 [#allocation18]
        %979 = vst.msk [vmem:[%s978] sm:$0xff] %vm677, %v977
        %980 = vrot.lane.b32.xlu0 %v676, 104
        %v981 = vpop.permute.xlu0 %980
        %v984 = vsel %vm677, %v977, 0
        %986 = vmatpush.msra.mxu0 0.0
        %987 = vmatpush.msra.mxu0 0.0
        %988 = vmatpush.msra.mxu0 0.0
        %989 = vmatpush.msra.mxu0 0.0
        %990 = vmatpush.msra.mxu0 0.0
        %991 = vmatpush.msra.mxu0 0.0
        %992 = vmatpush.msra.mxu0 0.0
        %993 = vmatpush.msra.mxu0 0.0
        %994 = vmatpush.msra.mxu0 0.0
        %995 = vmatpush.msra.mxu0 0.0
        %996 = vmatpush.msra.mxu0 0.0
        %997 = vmatpush.msra.mxu0 0.0
        %998 = vmatpush.msra.mxu0 0.0
        %999 = vmatpush.msra.mxu0 0.0
        %1000 = vmatpush.msra.mxu0 0.0
        %1001 = vmatpush.msra.mxu0 %v981
        %1002 = vmatmul.f32.gmra.mxu0 %v984
        %v1003 = vpop.f32.mrf.mxu0
        %v1004 = vadd.f32 0.0, %v1003
        %1005 = vdwg.mxu0
        %1007 = vrot.lane.b32.xlu0 %v1004, 24
        %v1008 = vpop.permute.xlu0 %1007
        %vm1010 = vcmask 261312
        %1011 = vst.msk [vmem:[#allocation4] sm:$0xff] %vm1010, %v1008
        %v1012 = vld [vmem:[#allocation4] sm:$0xff]
        %v1013 = vld [vmem:[#allocation16] sm:$0xff]
        %v1014 = vld [vmem:[#allocation16 + $0x8] sm:$0xff]
        %v1015 = vld [vmem:[#allocation16 + $0x10] sm:$0xff]
        %v1016 = vld [vmem:[#allocation16 + $0x18] sm:$0xff]
        %v1017 = vld [vmem:[%s10] sm:$0x1]
        %v1019 = vperm.slane %v1017, 0
        %v1022 = vsel %vm650, %v1012, 0
        %1024 = vmatpush.msra.mxu0 0.0
        %1025 = vmatpush.msra.mxu0 0.0
        %1026 = vmatpush.msra.mxu0 0.0
        %1027 = vmatpush.msra.mxu0 0.0
        %1028 = vmatpush.msra.mxu0 0.0
        %1029 = vmatpush.msra.mxu0 0.0
        %1030 = vmatpush.msra.mxu0 0.0
        %1031 = vmatpush.msra.mxu0 0.0
        %1032 = vmatpush.msra.mxu0 0.0
        %1033 = vmatpush.msra.mxu0 0.0
        %1034 = vmatpush.msra.mxu0 0.0
        %1035 = vmatpush.msra.mxu0 0.0
        %1036 = vmatpush.msra.mxu0 %v1016
        %1037 = vmatpush.msra.mxu0 %v1015
        %1038 = vmatpush.msra.mxu0 %v1014
        %1039 = vmatpush.msra.mxu0 %v1013
        %1040 = vmatmul.f32.gmra.mxu0 %v1022
        %v1041 = vpop.f32.mrf.mxu0
        %v1042 = vadd.f32 %v1019, %v1041
        %1043 = vdwg.mxu0
        %1044 = vst.msk [vmem:[%s562] sm:$0xff] %vm650, %v1042
        %s1045 = sand.u32 %s306, 1
        %s1046 = scalar_lea.sflag [#allocation7], %s1045
        %s1047 = sand.u32 %s306, 1
        %s1048 = smul.addr %s1047, 8
        %s1049 = scalar_lea.vmem [#allocation17], %s1048
        %s1050 = sand.u32 %s334, 1
        %s1051 = scalar_lea.sflag [#allocation19], %s1050
        %s1052 = sand.u32 %s334, 1
        %s1053 = smul.addr %s1052, 32
        %s1054 = scalar_lea.vmem [#allocation18], %s1053
        // Predicated region
        $region97: #{tpu_custom_call.1} parent=63 // pred_check
          %p1055 = pneg %p316
        $region98: #{tpu_custom_call.1} parent=63 // pred_check_branch
          %1057 = sbr.rel (%p1055) target = $region100
        $region99: #{tpu_custom_call.1} parent=63 // pred_region
          %1059 = vsyncadd %s1046, 0
          %s1060 = sadd.s32 %s41, %s40
          %s1061 = smul.addr %s1060, 8
          %s1062 = scalar_lea.hbm %s11, %s1061
          %s1064 = sshll.u32 %s1049, 4
          %s1065 = int_to_ptr.vmem [resolvable:$true] %s1064
          %s1066 = sshll.u32 %s1062, 4
          %s1067 = int_to_ptr.hbm [resolvable:$true] %s1066
          %1069 = dma.vmem_to_hbm [thread:$0]  %s1065, 128, %s1067, %s1046
        $region100: #{tpu_custom_call.1} parent=63 // pred_fallthru
          _
        // Predicated region
        $region101: #{tpu_custom_call.1} parent=63 // pred_check
          %p1070 = pneg %p344
        $region102: #{tpu_custom_call.1} parent=63 // pred_check_branch
          %1072 = sbr.rel (%p1070) target = $region104
        $region103: #{tpu_custom_call.1} parent=63 // pred_region
          %1074 = vsyncadd %s1051, 0
          %s1075 = smul.addr %s40, 4
          %s1076 = sadd.s32 %s41, %s1075
          %s1077 = smul.addr %s1076, 8
          %s1078 = scalar_lea.hbm %s12, %s1077
          %s1079 = sshll.u32 %s1054, 4
          %s1080 = int_to_ptr.vmem [resolvable:$true] %s1079
          %s1081 = sshll.u32 %s1078, 4
          %s1082 = int_to_ptr.hbm [resolvable:$true] %s1081
          %1087 = dma.vmem_to_hbm [thread:$0]  %s1080, 512, %s1082, %s1051, 128, 128, 8
        $region104: #{tpu_custom_call.1} parent=63 // pred_fallthru
          _
      $region64: #{tpu_custom_call.1} parent=5 // pred_fallthru
        _
      %p1088 = scmp.le.s32.totalorder 2, %s31
      // Predicated region
      $region105: #{tpu_custom_call.1} parent=5 // pred_check
        %p1089 = pneg %p1088
      $region106: #{tpu_custom_call.1} parent=5 // pred_check_branch
        %1091 = sbr.rel (%p1089) target = $region108
      $region107: #{tpu_custom_call.1} parent=5 // pred_region
        %s1092 = ssub.s32 %s31, 2
        // Predicated region
        $region109: #{tpu_custom_call.1} parent=107 // pred_check
          %p1093 = pneg %p322
        $region110: #{tpu_custom_call.1} parent=107 // pred_check_branch
          %1095 = sbr.rel (%p1093) target = $region112
        $region111: #{tpu_custom_call.1} parent=107 // pred_region
          %s1096 = sand.u32 %s307, 1
          %s1097 = scalar_lea.sflag [#allocation7], %s1096
          %s1098 = sand.u32 %s307, 1
          %s1099 = smul.addr %s1098, 8
          %s1100 = scalar_lea.vmem [#allocation17], %s1099
          %1102 = dma.done %s1097, 128
        $region112: #{tpu_custom_call.1} parent=107 // pred_fallthru
          _
        // Predicated region
        $region113: #{tpu_custom_call.1} parent=107 // pred_check
          %p1103 = pneg %p350
        $region114: #{tpu_custom_call.1} parent=107 // pred_check_branch
          %1105 = sbr.rel (%p1103) target = $region116
        $region115: #{tpu_custom_call.1} parent=107 // pred_region
          %s1106 = sand.u32 %s335, 1
          %s1107 = scalar_lea.sflag [#allocation19], %s1106
          %s1108 = sand.u32 %s335, 1
          %s1109 = smul.addr %s1108, 32
          %s1110 = scalar_lea.vmem [#allocation18], %s1109
          %1112 = dma.done %s1107, 512
        $region116: #{tpu_custom_call.1} parent=107 // pred_fallthru
          _
      $region108: #{tpu_custom_call.1} parent=5 // pred_fallthru
        _
    $region6: #{tpu_custom_call.1} parent=1 // loop_footer
      %s35 = sadd.s32 1, %s31
    $region7: #{tpu_custom_call.1} parent=1 // loop_footer_branch
      %30 = sbr.rel target = $region3
    $region8: #{tpu_custom_call.1} parent=1 // loop_exit
      _
    %1113 = vsyncpa [#allocation6], 1
    %s1114 = scalar_lea.sflag [#allocation6], 1
    %1115 = vsyncpa %s1114, 1
    %1116 = vsyncpa [#allocation9], 1
    %1117 = vsyncpa [#allocation12], 1
    %1118 = vsyncpa [#allocation15], 1
    %1119 = vsyncpa [#allocation7], 1
    %s1120 = scalar_lea.sflag [#allocation7], 1
    %1121 = vsyncpa %s1120, 1
    %1122 = vsyncpa [#allocation19], 1
    %s1123 = scalar_lea.sflag [#allocation19], 1
    %1124 = vsyncpa %s1123, 1

// kernel: tpu_custom_call.1
$region0: #{tpu_custom_call.1}
  #allocation0 [shape = 'u32[]', space=smem, size = 0x4, offset = 0x4, fixed_abs, tag = 'smem constant byte address 0x4 - core index']
  #allocation1 [shape = 'u32[72,128]{1,0:T(1,128)}', space=vmem, size = 0x9000, scoped, tag = 'internal scratch']
  #allocation2 [shape = 'f32[8,32]{1,0:T(8,128)}', space=vmem, size = 0x1000, scoped, tag = 'scratch operand']
  #allocation3 [shape = 'f32[8,32]{1,0:T(8,128)}', space=vmem, size = 0x1000, scoped, tag = 'scratch operand']
  #allocation4 [shape = 'f32[8,32]{1,0:T(8,128)}', space=vmem, size = 0x1000, scoped, tag = 'scratch operand']
  %s0 = inlined_call_operand.hbm [shape: f32[2,8,32], index: 0, kind: input, shape index: {}]
  %s1 = inlined_call_operand.hbm [shape: f32[2,8,32], index: 1, kind: input, shape index: {}]
  %s2 = inlined_call_operand.hbm [shape: f32[2,8,32], index: 2, kind: input, shape index: {}]
  %s3 = inlined_call_operand.hbm [shape: f32[32,32], index: 3, kind: input, shape index: {}]
  %s4 = inlined_call_operand.vmem [shape: f32[1,32], index: 4, kind: input, shape index: {}]
  %s5 = inlined_call_operand.hbm [shape: f32[32,32], index: 5, kind: input, shape index: {}]
  %s6 = inlined_call_operand.vmem [shape: f32[1,32], index: 6, kind: input, shape index: {}]
  %s7 = inlined_call_operand.hbm [shape: f32[32,32], index: 7, kind: input, shape index: {}]
  %s8 = inlined_call_operand.vmem [shape: f32[1,32], index: 8, kind: input, shape index: {}]
  %s9 = inlined_call_operand.hbm [shape: f32[32,32], index: 9, kind: input, shape index: {}]
  %s10 = inlined_call_operand.vmem [shape: f32[1,32], index: 10, kind: input, shape index: {}]
  %s11 = inlined_call_operand.hbm [shape: f32[2,8,32], index: 11, kind: output, shape index: {0}]
  %s12 = inlined_call_operand.hbm [shape: f32[2,4,8,8], index: 12, kind: output, shape index: {1}]
  %13 = xla_tuple %s11, %s12
  %s14 = sld [smem:[#allocation0]]
  $region117: #{tpu_custom_call.1} parent=0
    _
  %s16 = ssub.s32 1, %s14
  %s17 = scalar_select 0, %s16, %s14
  $region1: #{tpu_custom_call.1} parent=0
    #allocation5 [shape = 'u8[8192]{0}', space=vmem, size = 0x2000, scoped, tag = 'input window, operand 0']
    #allocation6 [shape = 's32[2]{0}', space=sflag, size = 0x8, scoped, tag = 'scoped memory for tpu_custom_call.1']
    #allocation7 [shape = 's32[2]{0}', space=sflag, size = 0x8, scoped, tag = 'scoped memory for tpu_custom_call.1']
    #allocation8 [shape = 'u8[8192]{0}', space=vmem, size = 0x2000, scoped, tag = 'input window, operand 1']
    #allocation9 [shape = 's32[2]{0}', space=sflag, size = 0x8, scoped, tag = 'scoped memory for tpu_custom_call.1']
    #allocation10 [shape = 'u8[8192]{0}', space=vmem, size = 0x2000, scoped, tag = 'input window, operand 2']
    #allocation11 [shape = 'u8[16384]{0}', space=vmem, size = 0x4000, scoped, tag = 'input window, operand 3, single buffered']
    #allocation12 [shape = 's32[1]{0}', space=sflag, size = 0x4, scoped, tag = 'scoped memory for tpu_custom_call.1']
    #allocation13 [shape = 'u8[16384]{0}', space=vmem, size = 0x4000, scoped, tag = 'input window, operand 5, single buffered']
    #allocation14 [shape = 'u8[16384]{0}', space=vmem, size = 0x4000, scoped, tag = 'input window, operand 7, single buffered']
    #allocation15 [shape = 's32[1]{0}', space=sflag, size = 0x4, scoped, tag = 'scoped memory for tpu_custom_call.1']
    #allocation16 [shape = 'u8[16384]{0}', space=vmem, size = 0x4000, scoped, tag = 'input window, operand 9, single buffered']
    #allocation17 [shape = 'u8[8192]{0}', space=vmem, size = 0x2000, scoped, tag = 'output window, operand 0']
    #allocation18 [shape = 'u8[32768]{0}', space=vmem, size = 0x8000, scoped, tag = 'output window, operand 1']
    #allocation19 [shape = 's32[2]{0}', space=sflag, size = 0x8, scoped, tag = 'scoped memory for tpu_custom_call.1']
    %18 = vsyncpa [#allocation6], 0
    %s19 = scalar_lea.sflag [#allocation6], 1
    %20 = vsyncpa %s19, 0
    %21 = vsyncpa [#allocation9], 0
    %s22 = scalar_lea.sflag [#allocation9], 1
    %23 = vsyncpa %s22, 0
    %24 = vsyncpa [#allocation12], 0
    %25 = vsyncpa [#allocation15], 0
    %26 = vsyncpa [#allocation7], 0
    %s27 = scalar_lea.sflag [#allocation7], 1
    %28 = vsyncpa %s27, 0
    %29 = vsyncpa [#allocation19], 0
    %s30 = scalar_lea.sflag [#allocation19], 1
    %31 = vsyncpa %s30, 0
    loop: start=0, step=1, limit=4
    $region2: #{tpu_custom_call.1} parent=1 // loop_pre_header
      _
    $region3: #{tpu_custom_call.1} parent=1 // loop_header
      %s33 = sphi 0, %s37
      %p34 = scmp.ge.s32.totalorder %s33, 4
      %s40 = sphi 0, %s52
      %s41 = sphi 0, %s48
      %s42 = sphi 0, %s40
      %s43 = sphi 0, %s41
      %s44 = sphi 0, %s42
      %s45 = sphi 0, %s43
      %s57 = sphi 0, %s59
      %s60 = sphi 0, %s57
      %s61 = sphi 0, %s60
      %s77 = sphi 0, %s61
      %s83 = sphi 0, %s85
      %s86 = sphi 0, %s83
      %s87 = sphi 0, %s86
      %s103 = sphi 0, %s87
      %s109 = sphi 0, %s111
      %s112 = sphi 0, %s109
      %s113 = sphi 0, %s112
      %s129 = sphi 0, %s113
      %s133 = sphi 0, %s133
      %s135 = sphi 0, %s133
      %s136 = sphi 0, %s135
      %s150 = sphi 0, %s136
      %s154 = sphi 0, %s154
      %s156 = sphi 0, %s154
      %s157 = sphi 0, %s156
      %s171 = sphi 0, %s157
      %s175 = sphi 0, %s175
      %s177 = sphi 0, %s175
      %s178 = sphi 0, %s177
      %s192 = sphi 0, %s178
      %s196 = sphi 0, %s196
      %s198 = sphi 0, %s196
      %s199 = sphi 0, %s198
      %s213 = sphi 0, %s199
      %s217 = sphi 0, %s217
      %s219 = sphi 0, %s217
      %s220 = sphi 0, %s219
      %s234 = sphi 0, %s220
      %s238 = sphi 0, %s238
      %s240 = sphi 0, %s238
      %s241 = sphi 0, %s240
      %s255 = sphi 0, %s241
      %s259 = sphi 0, %s259
      %s261 = sphi 0, %s259
      %s262 = sphi 0, %s261
      %s276 = sphi 0, %s262
      %s280 = sphi 0, %s280
      %s282 = sphi 0, %s280
      %s283 = sphi 0, %s282
      %s297 = sphi 0, %s283
      %s305 = sphi 0, %s307
      %s308 = sphi 0, %s305
      %s309 = sphi 0, %s308
      %s325 = sphi 0, %s309
      %s333 = sphi 0, %s335
      %s336 = sphi 0, %s333
      %s337 = sphi 0, %s336
      %s353 = sphi 0, %s337
    $region4: #{tpu_custom_call.1} parent=1 // loop_header_branch
      %36 = sbr.rel (%p34) target = $region8
    $region5: #{tpu_custom_call.1} parent=1 // loop_body
      %s38 = ssub.s32 %s33, 1
      %s39 = ssub.s32 %s33, 2
      %s46 = sadd.s32 1, %s41
      %p47 = scmp.ge.s32.totalorder %s46, 1
      %s48 = scalar_select %p47, 0, %s46
      %s49 = sadd.s32 1, %s40
      %s50 = scalar_select %p47, %s49, %s40
      %p51 = scmp.ge.s32.totalorder %s50, 2
      %s52 = scalar_select %p51, 0, %s50
      %s53 = ssub.s32 %s40, %s52
      %s54 = ssub.s32 %s41, %s48
      %s55 = sor.u32 %s53, %s54
      %p56 = scmp.eq.s32.totalorder %s55, 0
      %s58 = sadd.s32 %s57, 1
      %s59 = scalar_select %p56, %s57, %s58
      %p62 = pneg %p56
      %p63 = scmp.eq.s32.totalorder %s33, 1
      %p64 = por %p62, %p63
      %p65 = scmp.ne.s32.totalorder %s57, %s60
      %p66 = scmp.eq.s32.totalorder %s33, 0
      %p67 = por %p65, %p66
      %p68 = scmp.ne.s32.totalorder %s57, %s60
      %p69 = scmp.eq.s32.totalorder %s38, 1
      %p70 = por %p68, %p69
      %p71 = scmp.ne.s32.totalorder %s60, %s61
      %p72 = scmp.eq.s32.totalorder %s38, 0
      %p73 = por %p71, %p72
      %p74 = scmp.ne.s32.totalorder %s60, %s61
      %p75 = scmp.eq.s32.totalorder %s39, 1
      %p76 = por %p74, %p75
      %p78 = scmp.ne.s32.totalorder %s61, %s77
      %p79 = scmp.eq.s32.totalorder %s39, 0
      %p80 = por %p78, %p79
      %s81 = ssub.s32 %s40, %s52
      %p82 = scmp.eq.s32.totalorder %s81, 0
      %s84 = sadd.s32 %s83, 1
      %s85 = scalar_select %p82, %s83, %s84
      %p88 = pneg %p82
      %p89 = scmp.eq.s32.totalorder %s33, 1
      %p90 = por %p88, %p89
      %p91 = scmp.ne.s32.totalorder %s83, %s86
      %p92 = scmp.eq.s32.totalorder %s33, 0
      %p93 = por %p91, %p92
      %p94 = scmp.ne.s32.totalorder %s83, %s86
      %p95 = scmp.eq.s32.totalorder %s38, 1
      %p96 = por %p94, %p95
      %p97 = scmp.ne.s32.totalorder %s86, %s87
      %p98 = scmp.eq.s32.totalorder %s38, 0
      %p99 = por %p97, %p98
      %p100 = scmp.ne.s32.totalorder %s86, %s87
      %p101 = scmp.eq.s32.totalorder %s39, 1
      %p102 = por %p100, %p101
      %p104 = scmp.ne.s32.totalorder %s87, %s103
      %p105 = scmp.eq.s32.totalorder %s39, 0
      %p106 = por %p104, %p105
      %s107 = ssub.s32 %s40, %s52
      %p108 = scmp.eq.s32.totalorder %s107, 0
      %s110 = sadd.s32 %s109, 1
      %s111 = scalar_select %p108, %s109, %s110
      %p114 = pneg %p108
      %p115 = scmp.eq.s32.totalorder %s33, 1
      %p116 = por %p114, %p115
      %p117 = scmp.ne.s32.totalorder %s109, %s112
      %p118 = scmp.eq.s32.totalorder %s33, 0
      %p119 = por %p117, %p118
      %p120 = scmp.ne.s32.totalorder %s109, %s112
      %p121 = scmp.eq.s32.totalorder %s38, 1
      %p122 = por %p120, %p121
      %p123 = scmp.ne.s32.totalorder %s112, %s113
      %p124 = scmp.eq.s32.totalorder %s38, 0
      %p125 = por %p123, %p124
      %p126 = scmp.ne.s32.totalorder %s112, %s113
      %p127 = scmp.eq.s32.totalorder %s39, 1
      %p128 = por %p126, %p127
      %p130 = scmp.ne.s32.totalorder %s113, %s129
      %p131 = scmp.eq.s32.totalorder %s39, 0
      %p132 = por %p130, %p131
      %s134 = sadd.s32 %s133, 1
      %p137 = scmp.eq.s32.totalorder %s33, 1
      %p138 = scmp.ne.s32.totalorder %s133, %s135
      %p139 = scmp.eq.s32.totalorder %s33, 0
      %p140 = por %p138, %p139
      %p141 = scmp.ne.s32.totalorder %s133, %s135
      %p142 = scmp.eq.s32.totalorder %s38, 1
      %p143 = por %p141, %p142
      %p144 = scmp.ne.s32.totalorder %s135, %s136
      %p145 = scmp.eq.s32.totalorder %s38, 0
      %p146 = por %p144, %p145
      %p147 = scmp.ne.s32.totalorder %s135, %s136
      %p148 = scmp.eq.s32.totalorder %s39, 1
      %p149 = por %p147, %p148
      %p151 = scmp.ne.s32.totalorder %s136, %s150
      %p152 = scmp.eq.s32.totalorder %s39, 0
      %p153 = por %p151, %p152
      %s155 = sadd.s32 %s154, 1
      %p158 = scmp.eq.s32.totalorder %s33, 1
      %p159 = scmp.ne.s32.totalorder %s154, %s156
      %p160 = scmp.eq.s32.totalorder %s33, 0
      %p161 = por %p159, %p160
      %p162 = scmp.ne.s32.totalorder %s154, %s156
      %p163 = scmp.eq.s32.totalorder %s38, 1
      %p164 = por %p162, %p163
      %p165 = scmp.ne.s32.totalorder %s156, %s157
      %p166 = scmp.eq.s32.totalorder %s38, 0
      %p167 = por %p165, %p166
      %p168 = scmp.ne.s32.totalorder %s156, %s157
      %p169 = scmp.eq.s32.totalorder %s39, 1
      %p170 = por %p168, %p169
      %p172 = scmp.ne.s32.totalorder %s157, %s171
      %p173 = scmp.eq.s32.totalorder %s39, 0
      %p174 = por %p172, %p173
      %s176 = sadd.s32 %s175, 1
      %p179 = scmp.eq.s32.totalorder %s33, 1
      %p180 = scmp.ne.s32.totalorder %s175, %s177
      %p181 = scmp.eq.s32.totalorder %s33, 0
      %p182 = por %p180, %p181
      %p183 = scmp.ne.s32.totalorder %s175, %s177
      %p184 = scmp.eq.s32.totalorder %s38, 1
      %p185 = por %p183, %p184
      %p186 = scmp.ne.s32.totalorder %s177, %s178
      %p187 = scmp.eq.s32.totalorder %s38, 0
      %p188 = por %p186, %p187
      %p189 = scmp.ne.s32.totalorder %s177, %s178
      %p190 = scmp.eq.s32.totalorder %s39, 1
      %p191 = por %p189, %p190
      %p193 = scmp.ne.s32.totalorder %s178, %s192
      %p194 = scmp.eq.s32.totalorder %s39, 0
      %p195 = por %p193, %p194
      %s197 = sadd.s32 %s196, 1
      %p200 = scmp.eq.s32.totalorder %s33, 1
      %p201 = scmp.ne.s32.totalorder %s196, %s198
      %p202 = scmp.eq.s32.totalorder %s33, 0
      %p203 = por %p201, %p202
      %p204 = scmp.ne.s32.totalorder %s196, %s198
      %p205 = scmp.eq.s32.totalorder %s38, 1
      %p206 = por %p204, %p205
      %p207 = scmp.ne.s32.totalorder %s198, %s199
      %p208 = scmp.eq.s32.totalorder %s38, 0
      %p209 = por %p207, %p208
      %p210 = scmp.ne.s32.totalorder %s198, %s199
      %p211 = scmp.eq.s32.totalorder %s39, 1
      %p212 = por %p210, %p211
      %p214 = scmp.ne.s32.totalorder %s199, %s213
      %p215 = scmp.eq.s32.totalorder %s39, 0
      %p216 = por %p214, %p215
      %s218 = sadd.s32 %s217, 1
      %p221 = scmp.eq.s32.totalorder %s33, 1
      %p222 = scmp.ne.s32.totalorder %s217, %s219
      %p223 = scmp.eq.s32.totalorder %s33, 0
      %p224 = por %p222, %p223
      %p225 = scmp.ne.s32.totalorder %s217, %s219
      %p226 = scmp.eq.s32.totalorder %s38, 1
      %p227 = por %p225, %p226
      %p228 = scmp.ne.s32.totalorder %s219, %s220
      %p229 = scmp.eq.s32.totalorder %s38, 0
      %p230 = por %p228, %p229
      %p231 = scmp.ne.s32.totalorder %s219, %s220
      %p232 = scmp.eq.s32.totalorder %s39, 1
      %p233 = por %p231, %p232
      %p235 = scmp.ne.s32.totalorder %s220, %s234
      %p236 = scmp.eq.s32.totalorder %s39, 0
      %p237 = por %p235, %p236
      %s239 = sadd.s32 %s238, 1
      %p242 = scmp.eq.s32.totalorder %s33, 1
      %p243 = scmp.ne.s32.totalorder %s238, %s240
      %p244 = scmp.eq.s32.totalorder %s33, 0
      %p245 = por %p243, %p244
      %p246 = scmp.ne.s32.totalorder %s238, %s240
      %p247 = scmp.eq.s32.totalorder %s38, 1
      %p248 = por %p246, %p247
      %p249 = scmp.ne.s32.totalorder %s240, %s241
      %p250 = scmp.eq.s32.totalorder %s38, 0
      %p251 = por %p249, %p250
      %p252 = scmp.ne.s32.totalorder %s240, %s241
      %p253 = scmp.eq.s32.totalorder %s39, 1
      %p254 = por %p252, %p253
      %p256 = scmp.ne.s32.totalorder %s241, %s255
      %p257 = scmp.eq.s32.totalorder %s39, 0
      %p258 = por %p256, %p257
      %s260 = sadd.s32 %s259, 1
      %p263 = scmp.eq.s32.totalorder %s33, 1
      %p264 = scmp.ne.s32.totalorder %s259, %s261
      %p265 = scmp.eq.s32.totalorder %s33, 0
      %p266 = por %p264, %p265
      %p267 = scmp.ne.s32.totalorder %s259, %s261
      %p268 = scmp.eq.s32.totalorder %s38, 1
      %p269 = por %p267, %p268
      %p270 = scmp.ne.s32.totalorder %s261, %s262
      %p271 = scmp.eq.s32.totalorder %s38, 0
      %p272 = por %p270, %p271
      %p273 = scmp.ne.s32.totalorder %s261, %s262
      %p274 = scmp.eq.s32.totalorder %s39, 1
      %p275 = por %p273, %p274
      %p277 = scmp.ne.s32.totalorder %s262, %s276
      %p278 = scmp.eq.s32.totalorder %s39, 0
      %p279 = por %p277, %p278
      %s281 = sadd.s32 %s280, 1
      %p284 = scmp.eq.s32.totalorder %s33, 1
      %p285 = scmp.ne.s32.totalorder %s280, %s282
      %p286 = scmp.eq.s32.totalorder %s33, 0
      %p287 = por %p285, %p286
      %p288 = scmp.ne.s32.totalorder %s280, %s282
      %p289 = scmp.eq.s32.totalorder %s38, 1
      %p290 = por %p288, %p289
      %p291 = scmp.ne.s32.totalorder %s282, %s283
      %p292 = scmp.eq.s32.totalorder %s38, 0
      %p293 = por %p291, %p292
      %p294 = scmp.ne.s32.totalorder %s282, %s283
      %p295 = scmp.eq.s32.totalorder %s39, 1
      %p296 = por %p294, %p295
      %p298 = scmp.ne.s32.totalorder %s283, %s297
      %p299 = scmp.eq.s32.totalorder %s39, 0
      %p300 = por %p298, %p299
      %s301 = ssub.s32 %s40, %s52
      %s302 = ssub.s32 %s41, %s48
      %s303 = sor.u32 %s301, %s302
      %p304 = scmp.eq.s32.totalorder %s303, 0
      %s306 = sadd.s32 %s305, 1
      %s307 = scalar_select %p304, %s305, %s306
      %p310 = pneg %p304
      %p311 = scmp.eq.s32.totalorder %s33, 1
      %p312 = por %p310, %p311
      %p313 = scmp.ne.s32.totalorder %s305, %s308
      %p314 = scmp.eq.s32.totalorder %s33, 0
      %p315 = por %p313, %p314
      %p316 = scmp.ne.s32.totalorder %s305, %s308
      %p317 = scmp.eq.s32.totalorder %s38, 1
      %p318 = por %p316, %p317
      %p319 = scmp.ne.s32.totalorder %s308, %s309
      %p320 = scmp.eq.s32.totalorder %s38, 0
      %p321 = por %p319, %p320
      %p322 = scmp.ne.s32.totalorder %s308, %s309
      %p323 = scmp.eq.s32.totalorder %s39, 1
      %p324 = por %p322, %p323
      %p326 = scmp.ne.s32.totalorder %s309, %s325
      %p327 = scmp.eq.s32.totalorder %s39, 0
      %p328 = por %p326, %p327
      %s329 = ssub.s32 %s40, %s52
      %s330 = ssub.s32 %s41, %s48
      %s331 = sor.u32 %s329, %s330
      %p332 = scmp.eq.s32.totalorder %s331, 0
      %s334 = sadd.s32 %s333, 1
      %s335 = scalar_select %p332, %s333, %s334
      %p338 = pneg %p332
      %p339 = scmp.eq.s32.totalorder %s33, 1
      %p340 = por %p338, %p339
      %p341 = scmp.ne.s32.totalorder %s333, %s336
      %p342 = scmp.eq.s32.totalorder %s33, 0
      %p343 = por %p341, %p342
      %p344 = scmp.ne.s32.totalorder %s333, %s336
      %p345 = scmp.eq.s32.totalorder %s38, 1
      %p346 = por %p344, %p345
      %p347 = scmp.ne.s32.totalorder %s336, %s337
      %p348 = scmp.eq.s32.totalorder %s38, 0
      %p349 = por %p347, %p348
      %p350 = scmp.ne.s32.totalorder %s336, %s337
      %p351 = scmp.eq.s32.totalorder %s39, 1
      %p352 = por %p350, %p351
      %p354 = scmp.ne.s32.totalorder %s337, %s353
      %p355 = scmp.eq.s32.totalorder %s39, 0
      %p356 = por %p354, %p355
      %p357 = scmp.le.s32.totalorder 1, %s33
      %p358 = scmp.lt.s32.totalorder %s33, 3
      %p359 = pnand %p357, %p358
      %p360 = pneg %p359
      // Predicated region
      $region9: #{tpu_custom_call.1} parent=5 // pred_check
        _
      $region10: #{tpu_custom_call.1} parent=5 // pred_check_branch
        %362 = sbr.rel (%p359) target = $region12
      $region11: #{tpu_custom_call.1} parent=5 // pred_region
        %s363 = ssub.s32 %s33, 1
        // Predicated region
        $region13: #{tpu_custom_call.1} parent=11 // pred_check
          %p364 = pneg %p146
        $region14: #{tpu_custom_call.1} parent=11 // pred_check_branch
          %366 = sbr.rel (%p364) target = $region16
        $region15: #{tpu_custom_call.1} parent=11 // pred_region
          %368 = vsyncadd [#allocation12], 0
          %s369 = sshll.u32 %s3, 4
          %s370 = int_to_ptr.hbm [resolvable:$true] %s369
          %s371 = sshll.u32 [#allocation11], 4
          %s372 = int_to_ptr.vmem [resolvable:$true] %s371
          %377 = dma.hbm_to_vmem [thread:$0]  %s370, 512, %s372, [#allocation12], 128, 128, 8
        $region16: #{tpu_custom_call.1} parent=11 // pred_fallthru
          _
        // Predicated region
        $region17: #{tpu_custom_call.1} parent=11 // pred_check
          %p378 = pneg %p167
        $region18: #{tpu_custom_call.1} parent=11 // pred_check_branch
          %380 = sbr.rel (%p378) target = $region20
        $region19: #{tpu_custom_call.1} parent=11 // pred_region
          _
        $region20: #{tpu_custom_call.1} parent=11 // pred_fallthru
          _
        // Predicated region
        $region21: #{tpu_custom_call.1} parent=11 // pred_check
          %p381 = pneg %p188
        $region22: #{tpu_custom_call.1} parent=11 // pred_check_branch
          %383 = sbr.rel (%p381) target = $region24
        $region23: #{tpu_custom_call.1} parent=11 // pred_region
          %385 = vsyncadd [#allocation12], 0
          %s386 = sshll.u32 %s5, 4
          %s387 = int_to_ptr.hbm [resolvable:$true] %s386
          %s388 = sshll.u32 [#allocation13], 4
          %s389 = int_to_ptr.vmem [resolvable:$true] %s388
          %394 = dma.hbm_to_vmem [thread:$0]  %s387, 512, %s389, [#allocation12], 128, 128, 8
        $region24: #{tpu_custom_call.1} parent=11 // pred_fallthru
          _
        // Predicated region
        $region25: #{tpu_custom_call.1} parent=11 // pred_check
          %p395 = pneg %p209
        $region26: #{tpu_custom_call.1} parent=11 // pred_check_branch
          %397 = sbr.rel (%p395) target = $region28
        $region27: #{tpu_custom_call.1} parent=11 // pred_region
          _
        $region28: #{tpu_custom_call.1} parent=11 // pred_fallthru
          _
        // Predicated region
        $region29: #{tpu_custom_call.1} parent=11 // pred_check
          %p398 = pneg %p230
        $region30: #{tpu_custom_call.1} parent=11 // pred_check_branch
          %400 = sbr.rel (%p398) target = $region32
        $region31: #{tpu_custom_call.1} parent=11 // pred_region
          %402 = vsyncadd [#allocation15], 0
          %s403 = sshll.u32 %s7, 4
          %s404 = int_to_ptr.hbm [resolvable:$true] %s403
          %s405 = sshll.u32 [#allocation14], 4
          %s406 = int_to_ptr.vmem [resolvable:$true] %s405
          %411 = dma.hbm_to_vmem [thread:$0]  %s404, 512, %s406, [#allocation15], 128, 128, 8
        $region32: #{tpu_custom_call.1} parent=11 // pred_fallthru
          _
        // Predicated region
        $region33: #{tpu_custom_call.1} parent=11 // pred_check
          %p412 = pneg %p251
        $region34: #{tpu_custom_call.1} parent=11 // pred_check_branch
          %414 = sbr.rel (%p412) target = $region36
        $region35: #{tpu_custom_call.1} parent=11 // pred_region
          _
        $region36: #{tpu_custom_call.1} parent=11 // pred_fallthru
          _
        // Predicated region
        $region37: #{tpu_custom_call.1} parent=11 // pred_check
          %p415 = pneg %p272
        $region38: #{tpu_custom_call.1} parent=11 // pred_check_branch
          %417 = sbr.rel (%p415) target = $region40
        $region39: #{tpu_custom_call.1} parent=11 // pred_region
          %419 = vsyncadd [#allocation15], 0
          %s420 = sshll.u32 %s9, 4
          %s421 = int_to_ptr.hbm [resolvable:$true] %s420
          %s422 = sshll.u32 [#allocation16], 4
          %s423 = int_to_ptr.vmem [resolvable:$true] %s422
          %428 = dma.hbm_to_vmem [thread:$0]  %s421, 512, %s423, [#allocation15], 128, 128, 8
        $region40: #{tpu_custom_call.1} parent=11 // pred_fallthru
          _
        // Predicated region
        $region41: #{tpu_custom_call.1} parent=11 // pred_check
          %p429 = pneg %p293
        $region42: #{tpu_custom_call.1} parent=11 // pred_check_branch
          %431 = sbr.rel (%p429) target = $region44
        $region43: #{tpu_custom_call.1} parent=11 // pred_region
          _
        $region44: #{tpu_custom_call.1} parent=11 // pred_fallthru
          _
      $region12: #{tpu_custom_call.1} parent=5 // pred_fallthru
        _
      %p432 = scmp.lt.s32.totalorder %s33, 2
      // Predicated region
      $region45: #{tpu_custom_call.1} parent=5 // pred_check
        %p433 = pneg %p432
      $region46: #{tpu_custom_call.1} parent=5 // pred_check_branch
        %435 = sbr.rel (%p433) target = $region48
      $region47: #{tpu_custom_call.1} parent=5 // pred_region
        // Predicated region
        $region49: #{tpu_custom_call.1} parent=47 // pred_check
          %p436 = pneg %p67
        $region50: #{tpu_custom_call.1} parent=47 // pred_check_branch
          %438 = sbr.rel (%p436) target = $region52
        $region51: #{tpu_custom_call.1} parent=47 // pred_region
          %s439 = sand.u32 %s57, 1
          %s440 = scalar_lea.sflag [#allocation6], %s439
          %s441 = sand.u32 %s57, 1
          %s442 = smul.addr %s441, 8
          %s443 = scalar_lea.vmem [#allocation5], %s442
          %445 = vsyncadd %s440, 0
          %s446 = sadd.s32 %s41, %s40
          %s447 = smul.addr %s446, 8
          %s448 = scalar_lea.hbm %s0, %s447
          %s450 = sshll.u32 %s448, 4
          %s451 = int_to_ptr.hbm [resolvable:$true] %s450
          %s452 = sshll.u32 %s443, 4
          %s453 = int_to_ptr.vmem [resolvable:$true] %s452
          %455 = dma.hbm_to_vmem [thread:$0]  %s451, 128, %s453, %s440
        $region52: #{tpu_custom_call.1} parent=47 // pred_fallthru
          _
        // Predicated region
        $region53: #{tpu_custom_call.1} parent=47 // pred_check
          %p456 = pneg %p93
        $region54: #{tpu_custom_call.1} parent=47 // pred_check_branch
          %458 = sbr.rel (%p456) target = $region56
        $region55: #{tpu_custom_call.1} parent=47 // pred_region
          %s459 = sand.u32 %s33, 1
          %s460 = scalar_lea.sflag [#allocation9], %s459
          %s461 = sand.u32 %s83, 1
          %s462 = smul.addr %s461, 8
          %s463 = scalar_lea.vmem [#allocation8], %s462
          %465 = vsyncadd %s460, 0
          %s466 = smul.addr %s40, 8
          %s467 = scalar_lea.hbm %s1, %s466
          %s469 = sshll.u32 %s467, 4
          %s470 = int_to_ptr.hbm [resolvable:$true] %s469
          %s471 = sshll.u32 %s463, 4
          %s472 = int_to_ptr.vmem [resolvable:$true] %s471
          %474 = dma.hbm_to_vmem [thread:$0]  %s470, 128, %s472, %s460
        $region56: #{tpu_custom_call.1} parent=47 // pred_fallthru
          _
        // Predicated region
        $region57: #{tpu_custom_call.1} parent=47 // pred_check
          %p475 = pneg %p119
        $region58: #{tpu_custom_call.1} parent=47 // pred_check_branch
          %477 = sbr.rel (%p475) target = $region60
        $region59: #{tpu_custom_call.1} parent=47 // pred_region
          %s478 = sand.u32 %s33, 1
          %s479 = scalar_lea.sflag [#allocation9], %s478
          %s480 = sand.u32 %s109, 1
          %s481 = smul.addr %s480, 8
          %s482 = scalar_lea.vmem [#allocation10], %s481
          %484 = vsyncadd %s479, 0
          %s485 = smul.addr %s40, 8
          %s486 = scalar_lea.hbm %s2, %s485
          %s488 = sshll.u32 %s486, 4
          %s489 = int_to_ptr.hbm [resolvable:$true] %s488
          %s490 = sshll.u32 %s482, 4
          %s491 = int_to_ptr.vmem [resolvable:$true] %s490
          %493 = dma.hbm_to_vmem [thread:$0]  %s489, 128, %s491, %s479
        $region60: #{tpu_custom_call.1} parent=47 // pred_fallthru
          _
      $region48: #{tpu_custom_call.1} parent=5 // pred_fallthru
        _
      %p494 = scmp.le.s32.totalorder 1, %s33
      %p495 = scmp.lt.s32.totalorder %s33, 3
      %p496 = pnand %p494, %p495
      %p497 = pneg %p496
      // Predicated region
      $region61: #{tpu_custom_call.1} parent=5 // pred_check
        _
      $region62: #{tpu_custom_call.1} parent=5 // pred_check_branch
        %499 = sbr.rel (%p496) target = $region64
      $region63: #{tpu_custom_call.1} parent=5 // pred_region
        %s500 = ssub.s32 %s33, 1
        %s501 = sand.u32 %s60, 1
        %s502 = scalar_lea.sflag [#allocation6], %s501
        %s503 = sand.u32 %s60, 1
        %s504 = smul.addr %s503, 8
        %s505 = scalar_lea.vmem [#allocation5], %s504
        // Predicated region
        $region65: #{tpu_custom_call.1} parent=63 // pred_check
          %p506 = pneg %p73
        $region66: #{tpu_custom_call.1} parent=63 // pred_check_branch
          %508 = sbr.rel (%p506) target = $region68
        $region67: #{tpu_custom_call.1} parent=63 // pred_region
          %510 = dma.done %s502, 128
        $region68: #{tpu_custom_call.1} parent=63 // pred_fallthru
          _
        %s511 = sand.u32 %s38, 1
        %s512 = scalar_lea.sflag [#allocation9], %s511
        %s513 = sand.u32 %s86, 1
        %s514 = smul.addr %s513, 8
        %s515 = scalar_lea.vmem [#allocation8], %s514
        // Predicated region
        $region69: #{tpu_custom_call.1} parent=63 // pred_check
          %p516 = pneg %p99
        $region70: #{tpu_custom_call.1} parent=63 // pred_check_branch
          %518 = sbr.rel (%p516) target = $region72
        $region71: #{tpu_custom_call.1} parent=63 // pred_region
          %520 = dma.done %s512, 128
        $region72: #{tpu_custom_call.1} parent=63 // pred_fallthru
          _
        %s521 = sand.u32 %s38, 1
        %s522 = scalar_lea.sflag [#allocation9], %s521
        %s523 = sand.u32 %s112, 1
        %s524 = smul.addr %s523, 8
        %s525 = scalar_lea.vmem [#allocation10], %s524
        // Predicated region
        $region73: #{tpu_custom_call.1} parent=63 // pred_check
          %p526 = pneg %p125
        $region74: #{tpu_custom_call.1} parent=63 // pred_check_branch
          %528 = sbr.rel (%p526) target = $region76
        $region75: #{tpu_custom_call.1} parent=63 // pred_region
          %530 = dma.done %s522, 128
        $region76: #{tpu_custom_call.1} parent=63 // pred_fallthru
          _
        // Predicated region
        $region77: #{tpu_custom_call.1} parent=63 // pred_check
          %p531 = pneg %p146
        $region78: #{tpu_custom_call.1} parent=63 // pred_check_branch
          %533 = sbr.rel (%p531) target = $region80
        $region79: #{tpu_custom_call.1} parent=63 // pred_region
          %535 = dma.done [#allocation12], 512
        $region80: #{tpu_custom_call.1} parent=63 // pred_fallthru
          _
        // Predicated region
        $region81: #{tpu_custom_call.1} parent=63 // pred_check
          %p536 = pneg %p188
        $region82: #{tpu_custom_call.1} parent=63 // pred_check_branch
          %538 = sbr.rel (%p536) target = $region84
        $region83: #{tpu_custom_call.1} parent=63 // pred_region
          %540 = dma.done [#allocation12], 512
        $region84: #{tpu_custom_call.1} parent=63 // pred_fallthru
          _
        // Predicated region
        $region85: #{tpu_custom_call.1} parent=63 // pred_check
          %p541 = pneg %p230
        $region86: #{tpu_custom_call.1} parent=63 // pred_check_branch
          %543 = sbr.rel (%p541) target = $region88
        $region87: #{tpu_custom_call.1} parent=63 // pred_region
          %545 = dma.done [#allocation15], 512
        $region88: #{tpu_custom_call.1} parent=63 // pred_fallthru
          _
        // Predicated region
        $region89: #{tpu_custom_call.1} parent=63 // pred_check
          %p546 = pneg %p272
        $region90: #{tpu_custom_call.1} parent=63 // pred_check_branch
          %548 = sbr.rel (%p546) target = $region92
        $region91: #{tpu_custom_call.1} parent=63 // pred_region
          %550 = dma.done [#allocation15], 512
        $region92: #{tpu_custom_call.1} parent=63 // pred_fallthru
          _
        %s551 = sand.u32 %s60, 1
        %s552 = scalar_lea.sflag [#allocation6], %s551
        %s553 = sand.u32 %s60, 1
        %s554 = smul.addr %s553, 8
        %s555 = scalar_lea.vmem [#allocation5], %s554
        %p556 = pneg %p73
        %p557 = pneg %p70
        %s558 = sand.u32 %s38, 1
        %s559 = scalar_lea.sflag [#allocation9], %s558
        %s560 = sand.u32 %s86, 1
        %s561 = smul.addr %s560, 8
        %s562 = scalar_lea.vmem [#allocation8], %s561
        %p563 = pneg %p99
        %p564 = pneg %p96
        %s565 = sand.u32 %s38, 1
        %s566 = scalar_lea.sflag [#allocation9], %s565
        %s567 = sand.u32 %s112, 1
        %s568 = smul.addr %s567, 8
        %s569 = scalar_lea.vmem [#allocation10], %s568
        %p570 = pneg %p125
        %p571 = pneg %p122
        %p572 = pneg %p146
        %p573 = pneg %p143
        %p574 = pneg %p167
        %p575 = pneg %p164
        %p576 = pneg %p188
        %p577 = pneg %p185
        %p578 = pneg %p209
        %p579 = pneg %p206
        %p580 = pneg %p230
        %p581 = pneg %p227
        %p582 = pneg %p251
        %p583 = pneg %p248
        %p584 = pneg %p272
        %p585 = pneg %p269
        %p586 = pneg %p293
        %p587 = pneg %p290
        %p588 = pneg %p321
        %p589 = pneg %p318
        %s590 = sand.u32 %s308, 1
        %s591 = scalar_lea.sflag [#allocation7], %s590
        %s592 = sand.u32 %s308, 1
        %s593 = smul.addr %s592, 8
        %s594 = scalar_lea.vmem [#allocation17], %s593
        %p595 = pneg %p349
        %p596 = pneg %p346
        %s597 = sand.u32 %s336, 1
        %s598 = scalar_lea.sflag [#allocation19], %s597
        %s599 = sand.u32 %s336, 1
        %s600 = smul.addr %s599, 32
        %s601 = scalar_lea.vmem [#allocation18], %s600
        %p602 = scmp.eq.s32.totalorder %s43, 0
        // Predicated region
        $region93: #{tpu_custom_call.1} parent=63 // pred_check
          %p603 = pneg %p602
        $region94: #{tpu_custom_call.1} parent=63 // pred_check_branch
          %605 = sbr.rel (%p603) target = $region96
        $region95: #{tpu_custom_call.1} parent=63 // pred_region
          %v606 = vld [vmem:[%s515] sm:$0xff]
          %v607 = vld [vmem:[#allocation13] sm:$0xff]
          %v608 = vld [vmem:[#allocation13 + $0x8] sm:$0xff]
          %v609 = vld [vmem:[#allocation13 + $0x10] sm:$0xff]
          %v610 = vld [vmem:[#allocation13 + $0x18] sm:$0xff]
          %v611 = vld [vmem:[%s6] sm:$0x1]
          %v613 = vperm.slane %v611, 0
          %vm615 = vcmask 261120
          %v617 = vsel %vm615, %v606, 0
          %619 = vmatpush.msra.mxu0 0.0
          %620 = vmatpush.msra.mxu0 0.0
          %621 = vmatpush.msra.mxu0 0.0
          %622 = vmatpush.msra.mxu0 0.0
          %623 = vmatpush.msra.mxu0 0.0
          %624 = vmatpush.msra.mxu0 0.0
          %625 = vmatpush.msra.mxu0 0.0
          %626 = vmatpush.msra.mxu0 0.0
          %627 = vmatpush.msra.mxu0 0.0
          %628 = vmatpush.msra.mxu0 0.0
          %629 = vmatpush.msra.mxu0 0.0
          %630 = vmatpush.msra.mxu0 0.0
          %631 = vmatpush.msra.mxu0 %v610
          %632 = vmatpush.msra.mxu0 %v609
          %633 = vmatpush.msra.mxu0 %v608
          %634 = vmatpush.msra.mxu0 %v607
          %635 = vmatmul.f32.gmra.mxu0 %v617
          %v636 = vpop.f32.mrf.mxu0
          %v637 = vadd.f32 %v613, %v636
          %638 = vdwg.mxu0
          %v639 = vld [vmem:[%s525] sm:$0xff]
          %v640 = vld [vmem:[#allocation14] sm:$0xff]
          %v641 = vld [vmem:[#allocation14 + $0x8] sm:$0xff]
          %v642 = vld [vmem:[#allocation14 + $0x10] sm:$0xff]
          %v643 = vld [vmem:[#allocation14 + $0x18] sm:$0xff]
          %v644 = vld [vmem:[%s8] sm:$0x1]
          %v646 = vperm.slane %v644, 0
          %v649 = vsel %vm615, %v639, 0
          %651 = vmatpush.msra.mxu0 0.0
          %652 = vmatpush.msra.mxu0 0.0
          %653 = vmatpush.msra.mxu0 0.0
          %654 = vmatpush.msra.mxu0 0.0
          %655 = vmatpush.msra.mxu0 0.0
          %656 = vmatpush.msra.mxu0 0.0
          %657 = vmatpush.msra.mxu0 0.0
          %658 = vmatpush.msra.mxu0 0.0
          %659 = vmatpush.msra.mxu0 0.0
          %660 = vmatpush.msra.mxu0 0.0
          %661 = vmatpush.msra.mxu0 0.0
          %662 = vmatpush.msra.mxu0 0.0
          %663 = vmatpush.msra.mxu0 %v643
          %664 = vmatpush.msra.mxu0 %v642
          %665 = vmatpush.msra.mxu0 %v641
          %666 = vmatpush.msra.mxu0 %v640
          %667 = vmatmul.f32.gmra.mxu0 %v649
          %v668 = vpop.f32.mrf.mxu0
          %v669 = vadd.f32 %v646, %v668
          %670 = vdwg.mxu0
          %671 = vst.msk [vmem:[#allocation2] sm:$0xff] %vm615, %v637
          %672 = vst.msk [vmem:[#allocation3] sm:$0xff] %vm615, %v669
        $region96: #{tpu_custom_call.1} parent=63 // pred_fallthru
          _
        %v673 = vld [vmem:[%s505] sm:$0xff]
        %v674 = vld [vmem:[#allocation11] sm:$0xff]
        %v675 = vld [vmem:[#allocation11 + $0x8] sm:$0xff]
        %v676 = vld [vmem:[#allocation11 + $0x10] sm:$0xff]
        %v677 = vld [vmem:[#allocation11 + $0x18] sm:$0xff]
        %v678 = vld [vmem:[%s4] sm:$0x1]
        %v680 = vperm.slane %v678, 0
        %vm682 = vcmask 261120
        %v684 = vsel %vm682, %v673, 0
        %686 = vmatpush.msra.mxu0 0.0
        %687 = vmatpush.msra.mxu0 0.0
        %688 = vmatpush.msra.mxu0 0.0
        %689 = vmatpush.msra.mxu0 0.0
        %690 = vmatpush.msra.mxu0 0.0
        %691 = vmatpush.msra.mxu0 0.0
        %692 = vmatpush.msra.mxu0 0.0
        %693 = vmatpush.msra.mxu0 0.0
        %694 = vmatpush.msra.mxu0 0.0
        %695 = vmatpush.msra.mxu0 0.0
        %696 = vmatpush.msra.mxu0 0.0
        %697 = vmatpush.msra.mxu0 0.0
        %698 = vmatpush.msra.mxu0 %v677
        %699 = vmatpush.msra.mxu0 %v676
        %700 = vmatpush.msra.mxu0 %v675
        %701 = vmatpush.msra.mxu0 %v674
        %702 = vmatmul.f32.gmra.mxu0 %v684
        %v703 = vpop.f32.mrf.mxu0
        %v704 = vadd.f32 %v680, %v703
        %705 = vdwg.mxu0
        %v706 = vmul.f32 %v704, 0.35355338
        %v707 = vld [vmem:[#allocation2] sm:$0xff]
        %v708 = vld [vmem:[#allocation3] sm:$0xff]
        %vm709 = vcmask 64512
        %v711 = vsel %vm709, %v706, 0
        %v714 = vsel %vm709, %v707, 0
        %716 = vmatpush.xpose.msra.mxu0 0.0
        %717 = vmatpush.xpose.msra.mxu0 0.0
        %718 = vmatpush.xpose.msra.mxu0 0.0
        %719 = vmatpush.xpose.msra.mxu0 0.0
        %720 = vmatpush.xpose.msra.mxu0 0.0
        %721 = vmatpush.xpose.msra.mxu0 0.0
        %722 = vmatpush.xpose.msra.mxu0 0.0
        %723 = vmatpush.xpose.msra.mxu0 0.0
        %724 = vmatpush.xpose.msra.mxu0 0.0
        %725 = vmatpush.xpose.msra.mxu0 0.0
        %726 = vmatpush.xpose.msra.mxu0 0.0
        %727 = vmatpush.xpose.msra.mxu0 0.0
        %728 = vmatpush.xpose.msra.mxu0 0.0
        %729 = vmatpush.xpose.msra.mxu0 0.0
        %730 = vmatpush.xpose.msra.mxu0 0.0
        %731 = vmatpush.xpose.msra.mxu0 %v714
        %732 = vmatmul.f32.gmra.mxu0 %v711
        %v733 = vpop.f32.mrf.mxu0
        %v734 = vadd.f32 0.0, %v733
        %735 = vdwg.mxu0
        %v736 = vsel %vm709, %v734, -inf
        %737 = vmax.xlane.f32.xlu0 %v736
        %v738 = vpop.xlane.xlu0 %737
        %v739 = vsub.f32 %v734, %v738
        %v740 = vmul.f32 %v739, 1.442695
        %v741 = vpow.pop %v740
        %v742 = vsel %vm709, %v741, 0.0
        %743 = vadd.xlane.f32.xlu0 %v742
        %v744 = vpop.xlane.xlu0 %743
        %v745 = vrcp.pop %v744
        %v746 = vmul.f32 %v744, %v745
        %v747 = vsub.f32 1.0, %v746
        %v748 = vmul.f32 %v745, %v747
        %v749 = vadd.f32 %v745, %v748
        %vm750 = vweird.f32 %v744
        %vm751 = vweird.f32 %v745
        %vm752 = vmor %vm750, %vm751
        %v753 = vsel %vm752, %v745, %v749
        %v754 = vand.u32 2147483647, %v744
        %vm755 = vcmp.eq.f32.partialorder %v754, 8.507059e+37
        %v756 = vand.u32 %v744, 2147483648
        %v757 = vor.u32 1.1754944e-38, %v756
        %v758 = vsel %vm755, %v757, %v753
        %v759 = vmul.f32 %v741, %v758
        %760 = vst.msk [vmem:[%s601] sm:$0xff] %vm709, %v759
        %v762 = vsel %vm709, %v759, 0
        %764 = vmatpush.msra.mxu0 0.0
        %765 = vmatpush.msra.mxu0 0.0
        %766 = vmatpush.msra.mxu0 0.0
        %767 = vmatpush.msra.mxu0 0.0
        %768 = vmatpush.msra.mxu0 0.0
        %769 = vmatpush.msra.mxu0 0.0
        %770 = vmatpush.msra.mxu0 0.0
        %771 = vmatpush.msra.mxu0 0.0
        %772 = vmatpush.msra.mxu0 0.0
        %773 = vmatpush.msra.mxu0 0.0
        %774 = vmatpush.msra.mxu0 0.0
        %775 = vmatpush.msra.mxu0 0.0
        %776 = vmatpush.msra.mxu0 0.0
        %777 = vmatpush.msra.mxu0 0.0
        %778 = vmatpush.msra.mxu0 0.0
        %779 = vmatpush.msra.mxu0 %v708
        %780 = vmatmul.f32.gmra.mxu0 %v762
        %v781 = vpop.f32.mrf.mxu0
        %v782 = vadd.f32 0.0, %v781
        %783 = vdwg.mxu0
        %784 = vst.msk [vmem:[#allocation4] sm:$0xff] %vm709, %v782
        %785 = vrot.lane.b32.xlu0 %v706, 120
        %v786 = vpop.permute.xlu0 %785
        %787 = vrot.lane.b32.xlu0 %v707, 120
        %v788 = vpop.permute.xlu0 %787
        %v789 = vsel %vm709, %v786, 0
        %v791 = vsel %vm709, %v788, 0
        %793 = vmatpush.xpose.msra.mxu0 0.0
        %794 = vmatpush.xpose.msra.mxu0 0.0
        %795 = vmatpush.xpose.msra.mxu0 0.0
        %796 = vmatpush.xpose.msra.mxu0 0.0
        %797 = vmatpush.xpose.msra.mxu0 0.0
        %798 = vmatpush.xpose.msra.mxu0 0.0
        %799 = vmatpush.xpose.msra.mxu0 0.0
        %800 = vmatpush.xpose.msra.mxu0 0.0
        %801 = vmatpush.xpose.msra.mxu0 0.0
        %802 = vmatpush.xpose.msra.mxu0 0.0
        %803 = vmatpush.xpose.msra.mxu0 0.0
        %804 = vmatpush.xpose.msra.mxu0 0.0
        %805 = vmatpush.xpose.msra.mxu0 0.0
        %806 = vmatpush.xpose.msra.mxu0 0.0
        %807 = vmatpush.xpose.msra.mxu0 0.0
        %808 = vmatpush.xpose.msra.mxu0 %v791
        %809 = vmatmul.f32.gmra.mxu0 %v789
        %v810 = vpop.f32.mrf.mxu0
        %v811 = vadd.f32 0.0, %v810
        %812 = vdwg.mxu0
        %v813 = vsel %vm709, %v811, -inf
        %814 = vmax.xlane.f32.xlu0 %v813
        %v815 = vpop.xlane.xlu0 %814
        %v816 = vsub.f32 %v811, %v815
        %v817 = vmul.f32 %v816, 1.442695
        %v818 = vpow.pop %v817
        %v819 = vsel %vm709, %v818, 0.0
        %820 = vadd.xlane.f32.xlu0 %v819
        %v821 = vpop.xlane.xlu0 %820
        %v822 = vrcp.pop %v821
        %v823 = vmul.f32 %v821, %v822
        %v824 = vsub.f32 1.0, %v823
        %v825 = vmul.f32 %v822, %v824
        %v826 = vadd.f32 %v822, %v825
        %vm827 = vweird.f32 %v821
        %vm828 = vweird.f32 %v822
        %vm829 = vmor %vm827, %vm828
        %v830 = vsel %vm829, %v822, %v826
        %v831 = vand.u32 2147483647, %v821
        %vm832 = vcmp.eq.f32.partialorder %v831, 8.507059e+37
        %v833 = vand.u32 %v821, 2147483648
        %v834 = vor.u32 1.1754944e-38, %v833
        %v835 = vsel %vm832, %v834, %v830
        %v836 = vmul.f32 %v818, %v835
        %s837 = scalar_lea.vmem %s601, 8 [#allocation18]
        %838 = vst.msk [vmem:[%s837] sm:$0xff] %vm709, %v836
        %840 = vrot.lane.b32.xlu0 %v708, 120
        %v841 = vpop.permute.xlu0 %840
        %v844 = vsel %vm709, %v836, 0
        %846 = vmatpush.msra.mxu0 0.0
        %847 = vmatpush.msra.mxu0 0.0
        %848 = vmatpush.msra.mxu0 0.0
        %849 = vmatpush.msra.mxu0 0.0
        %850 = vmatpush.msra.mxu0 0.0
        %851 = vmatpush.msra.mxu0 0.0
        %852 = vmatpush.msra.mxu0 0.0
        %853 = vmatpush.msra.mxu0 0.0
        %854 = vmatpush.msra.mxu0 0.0
        %855 = vmatpush.msra.mxu0 0.0
        %856 = vmatpush.msra.mxu0 0.0
        %857 = vmatpush.msra.mxu0 0.0
        %858 = vmatpush.msra.mxu0 0.0
        %859 = vmatpush.msra.mxu0 0.0
        %860 = vmatpush.msra.mxu0 0.0
        %861 = vmatpush.msra.mxu0 %v841
        %862 = vmatmul.f32.gmra.mxu0 %v844
        %v863 = vpop.f32.mrf.mxu0
        %v864 = vadd.f32 0.0, %v863
        %865 = vdwg.mxu0
        %867 = vrot.lane.b32.xlu0 %v864, 8
        %v868 = vpop.permute.xlu0 %867
        %vm870 = vcmask 130112
        %871 = vst.msk [vmem:[#allocation4] sm:$0xff] %vm870, %v868
        %872 = vrot.lane.b32.xlu0 %v706, 112
        %v873 = vpop.permute.xlu0 %872
        %874 = vrot.lane.b32.xlu0 %v707, 112
        %v875 = vpop.permute.xlu0 %874
        %v876 = vsel %vm709, %v873, 0
        %v878 = vsel %vm709, %v875, 0
        %880 = vmatpush.xpose.msra.mxu0 0.0
        %881 = vmatpush.xpose.msra.mxu0 0.0
        %882 = vmatpush.xpose.msra.mxu0 0.0
        %883 = vmatpush.xpose.msra.mxu0 0.0
        %884 = vmatpush.xpose.msra.mxu0 0.0
        %885 = vmatpush.xpose.msra.mxu0 0.0
        %886 = vmatpush.xpose.msra.mxu0 0.0
        %887 = vmatpush.xpose.msra.mxu0 0.0
        %888 = vmatpush.xpose.msra.mxu0 0.0
        %889 = vmatpush.xpose.msra.mxu0 0.0
        %890 = vmatpush.xpose.msra.mxu0 0.0
        %891 = vmatpush.xpose.msra.mxu0 0.0
        %892 = vmatpush.xpose.msra.mxu0 0.0
        %893 = vmatpush.xpose.msra.mxu0 0.0
        %894 = vmatpush.xpose.msra.mxu0 0.0
        %895 = vmatpush.xpose.msra.mxu0 %v878
        %896 = vmatmul.f32.gmra.mxu0 %v876
        %v897 = vpop.f32.mrf.mxu0
        %v898 = vadd.f32 0.0, %v897
        %899 = vdwg.mxu0
        %v900 = vsel %vm709, %v898, -inf
        %901 = vmax.xlane.f32.xlu0 %v900
        %v902 = vpop.xlane.xlu0 %901
        %v903 = vsub.f32 %v898, %v902
        %v904 = vmul.f32 %v903, 1.442695
        %v905 = vpow.pop %v904
        %v906 = vsel %vm709, %v905, 0.0
        %907 = vadd.xlane.f32.xlu0 %v906
        %v908 = vpop.xlane.xlu0 %907
        %v909 = vrcp.pop %v908
        %v910 = vmul.f32 %v908, %v909
        %v911 = vsub.f32 1.0, %v910
        %v912 = vmul.f32 %v909, %v911
        %v913 = vadd.f32 %v909, %v912
        %vm914 = vweird.f32 %v908
        %vm915 = vweird.f32 %v909
        %vm916 = vmor %vm914, %vm915
        %v917 = vsel %vm916, %v909, %v913
        %v918 = vand.u32 2147483647, %v908
        %vm919 = vcmp.eq.f32.partialorder %v918, 8.507059e+37
        %v920 = vand.u32 %v908, 2147483648
        %v921 = vor.u32 1.1754944e-38, %v920
        %v922 = vsel %vm919, %v921, %v917
        %v923 = vmul.f32 %v905, %v922
        %s924 = scalar_lea.vmem %s601, 16 [#allocation18]
        %925 = vst.msk [vmem:[%s924] sm:$0xff] %vm709, %v923
        %926 = vrot.lane.b32.xlu0 %v708, 112
        %v927 = vpop.permute.xlu0 %926
        %v930 = vsel %vm709, %v923, 0
        %932 = vmatpush.msra.mxu0 0.0
        %933 = vmatpush.msra.mxu0 0.0
        %934 = vmatpush.msra.mxu0 0.0
        %935 = vmatpush.msra.mxu0 0.0
        %936 = vmatpush.msra.mxu0 0.0
        %937 = vmatpush.msra.mxu0 0.0
        %938 = vmatpush.msra.mxu0 0.0
        %939 = vmatpush.msra.mxu0 0.0
        %940 = vmatpush.msra.mxu0 0.0
        %941 = vmatpush.msra.mxu0 0.0
        %942 = vmatpush.msra.mxu0 0.0
        %943 = vmatpush.msra.mxu0 0.0
        %944 = vmatpush.msra.mxu0 0.0
        %945 = vmatpush.msra.mxu0 0.0
        %946 = vmatpush.msra.mxu0 0.0
        %947 = vmatpush.msra.mxu0 %v927
        %948 = vmatmul.f32.gmra.mxu0 %v930
        %v949 = vpop.f32.mrf.mxu0
        %v950 = vadd.f32 0.0, %v949
        %951 = vdwg.mxu0
        %953 = vrot.lane.b32.xlu0 %v950, 16
        %v954 = vpop.permute.xlu0 %953
        %vm956 = vcmask 195712
        %957 = vst.msk [vmem:[#allocation4] sm:$0xff] %vm956, %v954
        %958 = vrot.lane.b32.xlu0 %v706, 104
        %v959 = vpop.permute.xlu0 %958
        %960 = vrot.lane.b32.xlu0 %v707, 104
        %v961 = vpop.permute.xlu0 %960
        %v962 = vsel %vm709, %v959, 0
        %v964 = vsel %vm709, %v961, 0
        %966 = vmatpush.xpose.msra.mxu0 0.0
        %967 = vmatpush.xpose.msra.mxu0 0.0
        %968 = vmatpush.xpose.msra.mxu0 0.0
        %969 = vmatpush.xpose.msra.mxu0 0.0
        %970 = vmatpush.xpose.msra.mxu0 0.0
        %971 = vmatpush.xpose.msra.mxu0 0.0
        %972 = vmatpush.xpose.msra.mxu0 0.0
        %973 = vmatpush.xpose.msra.mxu0 0.0
        %974 = vmatpush.xpose.msra.mxu0 0.0
        %975 = vmatpush.xpose.msra.mxu0 0.0
        %976 = vmatpush.xpose.msra.mxu0 0.0
        %977 = vmatpush.xpose.msra.mxu0 0.0
        %978 = vmatpush.xpose.msra.mxu0 0.0
        %979 = vmatpush.xpose.msra.mxu0 0.0
        %980 = vmatpush.xpose.msra.mxu0 0.0
        %981 = vmatpush.xpose.msra.mxu0 %v964
        %982 = vmatmul.f32.gmra.mxu0 %v962
        %v983 = vpop.f32.mrf.mxu0
        %v984 = vadd.f32 0.0, %v983
        %985 = vdwg.mxu0
        %v986 = vsel %vm709, %v984, -inf
        %987 = vmax.xlane.f32.xlu0 %v986
        %v988 = vpop.xlane.xlu0 %987
        %v989 = vsub.f32 %v984, %v988
        %v990 = vmul.f32 %v989, 1.442695
        %v991 = vpow.pop %v990
        %v992 = vsel %vm709, %v991, 0.0
        %993 = vadd.xlane.f32.xlu0 %v992
        %v994 = vpop.xlane.xlu0 %993
        %v995 = vrcp.pop %v994
        %v996 = vmul.f32 %v994, %v995
        %v997 = vsub.f32 1.0, %v996
        %v998 = vmul.f32 %v995, %v997
        %v999 = vadd.f32 %v995, %v998
        %vm1000 = vweird.f32 %v994
        %vm1001 = vweird.f32 %v995
        %vm1002 = vmor %vm1000, %vm1001
        %v1003 = vsel %vm1002, %v995, %v999
        %v1004 = vand.u32 2147483647, %v994
        %vm1005 = vcmp.eq.f32.partialorder %v1004, 8.507059e+37
        %v1006 = vand.u32 %v994, 2147483648
        %v1007 = vor.u32 1.1754944e-38, %v1006
        %v1008 = vsel %vm1005, %v1007, %v1003
        %v1009 = vmul.f32 %v991, %v1008
        %s1010 = scalar_lea.vmem %s601, 24 [#allocation18]
        %1011 = vst.msk [vmem:[%s1010] sm:$0xff] %vm709, %v1009
        %1012 = vrot.lane.b32.xlu0 %v708, 104
        %v1013 = vpop.permute.xlu0 %1012
        %v1016 = vsel %vm709, %v1009, 0
        %1018 = vmatpush.msra.mxu0 0.0
        %1019 = vmatpush.msra.mxu0 0.0
        %1020 = vmatpush.msra.mxu0 0.0
        %1021 = vmatpush.msra.mxu0 0.0
        %1022 = vmatpush.msra.mxu0 0.0
        %1023 = vmatpush.msra.mxu0 0.0
        %1024 = vmatpush.msra.mxu0 0.0
        %1025 = vmatpush.msra.mxu0 0.0
        %1026 = vmatpush.msra.mxu0 0.0
        %1027 = vmatpush.msra.mxu0 0.0
        %1028 = vmatpush.msra.mxu0 0.0
        %1029 = vmatpush.msra.mxu0 0.0
        %1030 = vmatpush.msra.mxu0 0.0
        %1031 = vmatpush.msra.mxu0 0.0
        %1032 = vmatpush.msra.mxu0 0.0
        %1033 = vmatpush.msra.mxu0 %v1013
        %1034 = vmatmul.f32.gmra.mxu0 %v1016
        %v1035 = vpop.f32.mrf.mxu0
        %v1036 = vadd.f32 0.0, %v1035
        %1037 = vdwg.mxu0
        %1039 = vrot.lane.b32.xlu0 %v1036, 24
        %v1040 = vpop.permute.xlu0 %1039
        %vm1042 = vcmask 261312
        %1043 = vst.msk [vmem:[#allocation4] sm:$0xff] %vm1042, %v1040
        %v1044 = vld [vmem:[#allocation4] sm:$0xff]
        %v1045 = vld [vmem:[#allocation16] sm:$0xff]
        %v1046 = vld [vmem:[#allocation16 + $0x8] sm:$0xff]
        %v1047 = vld [vmem:[#allocation16 + $0x10] sm:$0xff]
        %v1048 = vld [vmem:[#allocation16 + $0x18] sm:$0xff]
        %v1049 = vld [vmem:[%s10] sm:$0x1]
        %v1051 = vperm.slane %v1049, 0
        %v1054 = vsel %vm682, %v1044, 0
        %1056 = vmatpush.msra.mxu0 0.0
        %1057 = vmatpush.msra.mxu0 0.0
        %1058 = vmatpush.msra.mxu0 0.0
        %1059 = vmatpush.msra.mxu0 0.0
        %1060 = vmatpush.msra.mxu0 0.0
        %1061 = vmatpush.msra.mxu0 0.0
        %1062 = vmatpush.msra.mxu0 0.0
        %1063 = vmatpush.msra.mxu0 0.0
        %1064 = vmatpush.msra.mxu0 0.0
        %1065 = vmatpush.msra.mxu0 0.0
        %1066 = vmatpush.msra.mxu0 0.0
        %1067 = vmatpush.msra.mxu0 0.0
        %1068 = vmatpush.msra.mxu0 %v1048
        %1069 = vmatpush.msra.mxu0 %v1047
        %1070 = vmatpush.msra.mxu0 %v1046
        %1071 = vmatpush.msra.mxu0 %v1045
        %1072 = vmatmul.f32.gmra.mxu0 %v1054
        %v1073 = vpop.f32.mrf.mxu0
        %v1074 = vadd.f32 %v1051, %v1073
        %1075 = vdwg.mxu0
        %1076 = vst.msk [vmem:[%s594] sm:$0xff] %vm682, %v1074
        %s1077 = sand.u32 %s308, 1
        %s1078 = scalar_lea.sflag [#allocation7], %s1077
        %s1079 = sand.u32 %s308, 1
        %s1080 = smul.addr %s1079, 8
        %s1081 = scalar_lea.vmem [#allocation17], %s1080
        %s1082 = sand.u32 %s336, 1
        %s1083 = scalar_lea.sflag [#allocation19], %s1082
        %s1084 = sand.u32 %s336, 1
        %s1085 = smul.addr %s1084, 32
        %s1086 = scalar_lea.vmem [#allocation18], %s1085
        // Predicated region
        $region97: #{tpu_custom_call.1} parent=63 // pred_check
          %p1087 = pneg %p318
        $region98: #{tpu_custom_call.1} parent=63 // pred_check_branch
          %1089 = sbr.rel (%p1087) target = $region100
        $region99: #{tpu_custom_call.1} parent=63 // pred_region
          %1091 = vsyncadd %s1078, 0
          %s1092 = sadd.s32 %s43, %s42
          %s1093 = smul.addr %s1092, 8
          %s1094 = scalar_lea.hbm %s11, %s1093
          %s1096 = sshll.u32 %s1081, 4
          %s1097 = int_to_ptr.vmem [resolvable:$true] %s1096
          %s1098 = sshll.u32 %s1094, 4
          %s1099 = int_to_ptr.hbm [resolvable:$true] %s1098
          %1101 = dma.vmem_to_hbm [thread:$0]  %s1097, 128, %s1099, %s1078
        $region100: #{tpu_custom_call.1} parent=63 // pred_fallthru
          _
        // Predicated region
        $region101: #{tpu_custom_call.1} parent=63 // pred_check
          %p1102 = pneg %p346
        $region102: #{tpu_custom_call.1} parent=63 // pred_check_branch
          %1104 = sbr.rel (%p1102) target = $region104
        $region103: #{tpu_custom_call.1} parent=63 // pred_region
          %1106 = vsyncadd %s1083, 0
          %s1107 = smul.addr %s42, 4
          %s1108 = sadd.s32 %s43, %s1107
          %s1109 = smul.addr %s1108, 8
          %s1110 = scalar_lea.hbm %s12, %s1109
          %s1111 = sshll.u32 %s1086, 4
          %s1112 = int_to_ptr.vmem [resolvable:$true] %s1111
          %s1113 = sshll.u32 %s1110, 4
          %s1114 = int_to_ptr.hbm [resolvable:$true] %s1113
          %1119 = dma.vmem_to_hbm [thread:$0]  %s1112, 512, %s1114, %s1083, 128, 128, 8
        $region104: #{tpu_custom_call.1} parent=63 // pred_fallthru
          _
      $region64: #{tpu_custom_call.1} parent=5 // pred_fallthru
        _
      %p1120 = scmp.le.s32.totalorder 2, %s33
      // Predicated region
      $region105: #{tpu_custom_call.1} parent=5 // pred_check
        %p1121 = pneg %p1120
      $region106: #{tpu_custom_call.1} parent=5 // pred_check_branch
        %1123 = sbr.rel (%p1121) target = $region108
      $region107: #{tpu_custom_call.1} parent=5 // pred_region
        %s1124 = ssub.s32 %s33, 2
        // Predicated region
        $region109: #{tpu_custom_call.1} parent=107 // pred_check
          %p1125 = pneg %p324
        $region110: #{tpu_custom_call.1} parent=107 // pred_check_branch
          %1127 = sbr.rel (%p1125) target = $region112
        $region111: #{tpu_custom_call.1} parent=107 // pred_region
          %s1128 = sand.u32 %s309, 1
          %s1129 = scalar_lea.sflag [#allocation7], %s1128
          %s1130 = sand.u32 %s309, 1
          %s1131 = smul.addr %s1130, 8
          %s1132 = scalar_lea.vmem [#allocation17], %s1131
          %1134 = dma.done %s1129, 128
        $region112: #{tpu_custom_call.1} parent=107 // pred_fallthru
          _
        // Predicated region
        $region113: #{tpu_custom_call.1} parent=107 // pred_check
          %p1135 = pneg %p352
        $region114: #{tpu_custom_call.1} parent=107 // pred_check_branch
          %1137 = sbr.rel (%p1135) target = $region116
        $region115: #{tpu_custom_call.1} parent=107 // pred_region
          %s1138 = sand.u32 %s337, 1
          %s1139 = scalar_lea.sflag [#allocation19], %s1138
          %s1140 = sand.u32 %s337, 1
          %s1141 = smul.addr %s1140, 32
          %s1142 = scalar_lea.vmem [#allocation18], %s1141
          %1144 = dma.done %s1139, 512
        $region116: #{tpu_custom_call.1} parent=107 // pred_fallthru
          _
      $region108: #{tpu_custom_call.1} parent=5 // pred_fallthru
        _
    $region6: #{tpu_custom_call.1} parent=1 // loop_footer
      %s37 = sadd.s32 1, %s33
    $region7: #{tpu_custom_call.1} parent=1 // loop_footer_branch
      %32 = sbr.rel target = $region3
    $region8: #{tpu_custom_call.1} parent=1 // loop_exit
      _
    %1145 = vsyncpa [#allocation6], 1
    %s1146 = scalar_lea.sflag [#allocation6], 1
    %1147 = vsyncpa %s1146, 1
    %1148 = vsyncpa [#allocation9], 1
    %s1149 = scalar_lea.sflag [#allocation9], 1
    %1150 = vsyncpa %s1149, 1
    %1151 = vsyncpa [#allocation12], 1
    %1152 = vsyncpa [#allocation15], 1
    %1153 = vsyncpa [#allocation7], 1
    %s1154 = scalar_lea.sflag [#allocation7], 1
    %1155 = vsyncpa %s1154, 1
    %1156 = vsyncpa [#allocation19], 1
    %s1157 = scalar_lea.sflag [#allocation19], 1
    %1158 = vsyncpa %s1157, 1

</llo_original>
